<compile_context>
chip_gen: v6e
topology: v6e:2x2x1
jax: 0.10.0
libtpu: 0.0.40
codegen_flags: <defaults>
</compile_context>

<pallas_src>
import functools

import numpy as np

import jax
import jax.numpy as jnp
from jax import lax
from jax.experimental import pallas as pl
from jax.experimental.pallas import tpu as pltpu


# ----------------------------------------------------------------------------
# Fused forward kernel: TB samples per grid step, everything in VMEM.
# ----------------------------------------------------------------------------
def _net_kernel(x_ref, s1_ref, s2_ref, wf1_ref, wf2_ref, bias_ref, o_ref, *, tb):
    f32 = jnp.float32
    bf16 = jnp.bfloat16

    # Consolidated bias bank (static, 128-aligned lane slices).
    b1 = bias_ref[:, 0:120]       # conv1 bias tiled over 12 w positions
    b2 = bias_ref[:, 128:208]     # conv2 bias tiled over 4 w positions
    bf1 = bias_ref[:, 256:306]    # fc1 bias
    bf2 = bias_ref[:, 384:512]    # fc2 bias padded to 128 (pad lanes = -1e30)

    s1 = s1_ref[...]              # (140, 240) banded conv1 weights

    # ---- conv1: one wide-K matmul per output-row group (h % 4 == r) --------
    # x_ref[r] is (6*tb, 140): rows (j*tb + b) = height-im2row patch of conv
    # output row h = r + 4j for sample b.  Output column order:
    # (w//2)*10 + co, even-w in cols [0,120), odd-w in cols [120,240).
    def conv1_group(r):
        return jnp.dot(x_ref[r], s1, preferred_element_type=f32)   # (6*tb, 240)

    def pool_bias_relu(c_a, c_b, bias, half):
        hp = jnp.maximum(c_a, c_b)                     # pool over h pairs
        wp = jnp.maximum(hp[:, :half], hp[:, half:])   # pool over w pairs
        return jnp.maximum(wp + bias, 0.0)             # per-channel bias + ReLU

    # pooled rows: even p in a1_e (rows j*tb+b -> p=2j), odd p in a1_o (p=2j+1)
    a1_e = pool_bias_relu(conv1_group(0), conv1_group(1), b1, 120)   # (6*tb,120)
    a1_o = pool_bias_relu(conv1_group(2), conv1_group(3), b1, 120)   # (6*tb,120)
    a1_e16 = a1_e.astype(bf16)
    a1_o16 = a1_o.astype(bf16)

    # ---- conv2: 5 banded matmuls per output-row parity ----------------------
    # TODO(synk): Dropout2d is a stochastic training-time op; identity here.
    def conv2_group(parity):
        acc = jnp.zeros((4 * tb, 160), f32)
        for kh in range(5):
            if parity == 0:                            # output rows h2 = 0,2,4,6
                src = a1_e16 if kh % 2 == 0 else a1_o16
                st = kh // 2
            else:                                      # output rows h2 = 1,3,5,7
                src = a1_o16 if kh % 2 == 0 else a1_e16
                st = kh // 2 if kh % 2 == 0 else (kh + 1) // 2
            acc = acc + jnp.dot(src[st * tb:(st + 4) * tb, :], s2_ref[kh],
                                preferred_element_type=f32)
        return acc

    # pooled a2: rows (h3*tb + b), cols w3*20 + co  == NHWC (4,4,20)
    a2 = pool_bias_relu(conv2_group(0), conv2_group(1), b2, 80)      # (4*tb, 80)
    a2_16 = a2.astype(bf16)

    # ---- fc1 + relu (NCHW flatten folded into the packed weights) ----------
    y = jnp.zeros((tb, 50), f32)
    for h in range(4):
        y = y + jnp.dot(a2_16[h * tb:(h + 1) * tb, :], wf1_ref[h],
                        preferred_element_type=f32)
    h1 = jnp.maximum(y + bf1, 0.0)                                    # (tb, 50)
    # TODO(synk): dropout before fc2 is a training-time op; identity here.

    # ---- fc2 (class dim padded to 128 lanes) + log_softmax ------------------
    logits = jnp.dot(h1.astype(bf16), wf2_ref[...],
                     preferred_element_type=f32) + bf2                # (tb, 128)
    m = jnp.max(logits, axis=-1, keepdims=True)
    e = jnp.exp(logits - m)
    s = jnp.sum(e, axis=-1, keepdims=True)
    o_ref[...] = (logits - m - jnp.log(s)).astype(o_ref.dtype)


# ----------------------------------------------------------------------------
# Wrapper: single fused pallas_call, TB samples per grid step.
# ----------------------------------------------------------------------------
def net_forward(x_nchw, packed, tb=32):
    """x_nchw: (B, 1, 28, 28) float32 -> (B, 10) log-probabilities."""
    B = x_nchw.shape[0]
    nb = -(-B // tb)
    Bp = nb * tb

    xs = x_nchw[:, 0]                                         # (B, 28, 28)
    if Bp != B:
        xs = jnp.concatenate(
            [xs, jnp.zeros((Bp - B, 28, 28), xs.dtype)], axis=0)

    # Height-only im2row: patches[b, h, kh*28 + u] = x[b, h+kh, u]
    patches = jnp.concatenate([xs[:, kh:kh + 24, :] for kh in range(5)],
                              axis=-1)                        # (Bp, 24, 140)
    # Split conv-output rows by h % 4 and pack batch into sublanes:
    # xpk[s*4 + r, j*tb + b, :] = patch(sample s*tb+b, row r + 4j)
    groups = jnp.stack([patches[:, r::4, :] for r in range(4)],
                       axis=1)                                # (Bp, 4, 6, 140)
    xpk = (groups.reshape(nb, tb, 4, 6, 140)
                 .transpose(0, 2, 3, 1, 4)
                 .reshape(nb * 4, 6 * tb, 140)
                 .astype(jnp.bfloat16))

    kernel = functools.partial(_net_kernel, tb=tb)

    flops_per_step = 2 * (4 * 6 * tb * 140 * 240 + 10 * 4 * tb * 120 * 160
                          + 4 * tb * 80 * 50 + tb * 50 * 128)
    cost = pl.CostEstimate(
        flops=nb * flops_per_step,
        transcendentals=nb * tb * 130,
        bytes_accessed=nb * (4 * 6 * tb * 140 * 2 + tb * 128 * 4) + 320_000,
    )

    out = pl.pallas_call(
        kernel,
        out_shape=jax.ShapeDtypeStruct((Bp, 128), jnp.float32),
        grid=(nb,),
        in_specs=[
            pl.BlockSpec((4, 6 * tb, 140), lambda i: (i, 0, 0)),   # batched input
            pl.BlockSpec((140, 240), lambda i: (0, 0)),            # conv1 banded
            pl.BlockSpec((5, 120, 160), lambda i: (0, 0, 0)),      # conv2 banded
            pl.BlockSpec((4, 80, 50), lambda i: (0, 0, 0)),        # fc1 (folded)
            pl.BlockSpec((50, 128), lambda i: (0, 0)),             # fc2 padded
            pl.BlockSpec((1, 512), lambda i: (0, 0)),              # bias bank
        ],
        out_specs=pl.BlockSpec((tb, 128), lambda i: (i, 0)),
        compiler_params=pltpu.CompilerParams(
            dimension_semantics=("parallel",)),
        cost_estimate=cost,
    )(xpk, packed["s1"], packed["s2"], packed["wf1"], packed["wf2"],
      packed["bias"])
    return out[:B, :10]


# ----------------------------------------------------------------------------
# Parameter init (torch layout) + one-time repacking into kernel layout.
# ----------------------------------------------------------------------------
def init_raw_params():
    key = jax.random.PRNGKey(42)
    ks = jax.random.split(key, 8)
    return {
        "w1": 0.1 * jax.random.normal(ks[0], (10, 1, 5, 5), jnp.float32),
        "b1": 0.1 * jax.random.normal(ks[1], (10,), jnp.float32),
        "w2": 0.1 * jax.random.normal(ks[2], (20, 10, 5, 5), jnp.float32),
        "b2": 0.1 * jax.random.normal(ks[3], (20,), jnp.float32),
        "wf1": 0.1 * jax.random.normal(ks[4], (50, 320), jnp.float32),
        "bf1": 0.1 * jax.random.normal(ks[5], (50,), jnp.float32),
        "wf2": 0.1 * jax.random.normal(ks[6], (10, 50), jnp.float32),
        "bf2": 0.1 * jax.random.normal(ks[7], (10,), jnp.float32),
    }


def pack_params(raw):
    w1 = np.asarray(raw["w1"]); b1 = np.asarray(raw["b1"])
    w2 = np.asarray(raw["w2"]); b2 = np.asarray(raw["b2"])
    wf1 = np.asarray(raw["wf1"]); bf1 = np.asarray(raw["bf1"])
    wf2 = np.asarray(raw["wf2"]); bf2 = np.asarray(raw["bf2"])

    # conv1 banded matrix (kh folded into K):
    # S1[kh*28 + w + kw, col(w,co)] = w1[co,0,kh,kw]
    # col(w,co) = (w//2)*10 + co + 120*(w%2)   (even-w | odd-w blocks)
    s1 = np.zeros((140, 240), np.float32)
    for kh in range(5):
        for w in range(24):
            c0 = (w // 2) * 10 + 120 * (w % 2)
            for kw in range(5):
                s1[kh * 28 + w + kw, c0:c0 + 10] = w1[:, 0, kh, kw]

    # conv2 banded matrices: rows = w_in*10 + ci,
    # cols = (w2//2)*20 + co + 80*(w2%2)
    s2 = np.zeros((5, 120, 160), np.float32)
    for kh in range(5):
        for w in range(8):
            c0 = (w // 2) * 20 + 80 * (w % 2)
            for kw in range(5):
                for ci in range(10):
                    s2[kh, (w + kw) * 10 + ci, c0:c0 + 20] = w2[:, ci, kh, kw]

    # fc1 with torch's NCHW flatten folded in:
    # a2[h3*TB+b, w3*20 + c] pairs with wf1[:, c*16 + h3*4 + w3]
    wf1p = np.zeros((4, 80, 50), np.float32)
    for h in range(4):
        for w in range(4):
            for c in range(20):
                wf1p[h, w * 20 + c, :] = wf1[:, c * 16 + h * 4 + w]

    # fc2 weights padded to 128 output lanes (pad cols = 0).
    wf2p = np.zeros((50, 128), np.float32)
    wf2p[:, :10] = wf2.T

    # Consolidated bias bank (1, 512), 128-aligned slots; fc2 pad lanes -1e30
    # so the padded classes vanish under softmax.
    bias = np.zeros((1, 512), np.float32)
    bias[0, 0:120] = np.tile(b1, 12)
    bias[0, 128:208] = np.tile(b2, 4)
    bias[0, 256:306] = bf1
    bias[0, 384:394] = bf2
    bias[0, 394:512] = -1e30

    return {
        "s1": jnp.asarray(s1, jnp.bfloat16),
        "s2": jnp.asarray(s2, jnp.bfloat16),
        "wf1": jnp.asarray(wf1p, jnp.bfloat16),
        "wf2": jnp.asarray(wf2p, jnp.bfloat16),
        "bias": jnp.asarray(bias, jnp.float32),
    }


# ----------------------------------------------------------------------------
# Pure-JAX reference (torch-layout weights, f32) for validation.
# ----------------------------------------------------------------------------
def reference_forward(x_nchw, raw):
    hi = lax.Precision.HIGHEST

    def conv(x, w):
        return lax.conv_general_dilated(
            x, w, window_strides=(1, 1), padding="VALID",
            dimension_numbers=("NCHW", "OIHW", "NCHW"), precision=hi)

    def pool2(y):
        b, c, hh, ww = y.shape
        return y.reshape(b, c, hh // 2, 2, ww // 2, 2).max(axis=(3, 5))

    y = conv(x_nchw, raw["w1"]) + raw["b1"][None, :, None, None]
    y = jnp.maximum(pool2(y), 0.0)
    y = conv(y, raw["w2"]) + raw["b2"][None, :, None, None]
    y = jnp.maximum(pool2(y), 0.0)
    flat = y.reshape(y.shape[0], 320)
    h = jnp.maximum(jnp.dot(flat, raw["wf1"].T, precision=hi) + raw["bf1"], 0.0)
    o = jnp.dot(h, raw["wf2"].T, precision=hi) + raw["bf2"]
    return jax.nn.log_softmax(o, axis=-1)


if __name__ == "__main__":
    raw = init_raw_params()
    packed = pack_params(raw)

    B = 64
    x = jax.random.normal(jax.random.PRNGKey(0), (B, 1, 28, 28), jnp.float32)

    fwd = jax.jit(lambda xx: net_forward(xx, packed, tb=32))
    out = jax.block_until_ready(fwd(x))

    assert out.shape == (B, 10), out.shape
    # log_softmax rows must exponentiate to ~1
    row_sums = jnp.sum(jnp.exp(out), axis=-1)
    assert bool(jnp.all(jnp.abs(row_sums - 1.0) < 1e-3)), row_sums

    # Validate against a pure-JAX f32 reference (kernel uses bf16 matmuls
    # with f32 accumulation, so allow a small tolerance).
    ref = reference_forward(x, raw)
    err = float(jnp.max(jnp.abs(out - ref)))
    assert err < 5e-2, f"max abs diff vs reference: {err}"

    # Small-batch path (exercises batch padding to a full TB tile).
    x2 = x[:2]
    out2 = jax.block_until_ready(jax.jit(
        lambda xx: net_forward(xx, packed, tb=32))(x2))
    assert out2.shape == (2, 10), out2.shape
    err2 = float(jnp.max(jnp.abs(out2 - ref[:2])))
    assert err2 < 5e-2, f"max abs diff vs reference (B=2): {err2}"

    print("KERNEL_OK")
</pallas_src>

<mosaic_0001>
module attributes {stable_mosaic.version = 11 : i64} {
  func.func @_net_kernel(%arg0: i32, %arg1: memref<4x192x140xbf16, #tpu.memory_space<vmem>>, %arg2: memref<140x240xbf16, #tpu.memory_space<vmem>>, %arg3: memref<5x120x160xbf16, #tpu.memory_space<vmem>>, %arg4: memref<4x80x50xbf16, #tpu.memory_space<vmem>>, %arg5: memref<50x128xbf16, #tpu.memory_space<vmem>>, %arg6: memref<1x512xf32, #tpu.memory_space<vmem>>, %arg7: memref<32x128xf32, #tpu.memory_space<vmem>>) attributes {dimension_semantics = [#tpu.dimension_semantics<parallel>], iteration_bounds = array<i64: 2>, scalar_prefetch = 0 : i64, scratch_operands = 0 : i64, tpu.core_type = #tpu.core_type<tc>, window_params = [{transform_indices = @transform_0, window_bounds = array<i64: 4, 192, 140>}, {pipeline_mode = #tpu.pipeline_mode<synchronous>, transform_indices = @transform_1, window_bounds = array<i64: 140, 240>}, {pipeline_mode = #tpu.pipeline_mode<synchronous>, transform_indices = @transform_2, window_bounds = array<i64: 5, 120, 160>}, {pipeline_mode = #tpu.pipeline_mode<synchronous>, transform_indices = @transform_3, window_bounds = array<i64: 4, 80, 50>}, {pipeline_mode = #tpu.pipeline_mode<synchronous>, transform_indices = @transform_4, window_bounds = array<i64: 50, 128>}, {pipeline_mode = #tpu.pipeline_mode<synchronous>, transform_indices = @transform_5, window_bounds = array<i64: 1, 512>}, {transform_indices = @transform_6, window_bounds = array<i64: 32, 128>}]} {
    %c0 = arith.constant 0 : index
    %c0_0 = arith.constant 0 : index
    %0 = vector.load %arg6[%c0, %c0_0] : memref<1x512xf32, #tpu.memory_space<vmem>>, vector<1x120xf32>
    %c0_1 = arith.constant 0 : index
    %c128 = arith.constant 128 : index
    %1 = vector.load %arg6[%c0_1, %c128] : memref<1x512xf32, #tpu.memory_space<vmem>>, vector<1x80xf32>
    %c0_2 = arith.constant 0 : index
    %c256 = arith.constant 256 : index
    %2 = vector.load %arg6[%c0_2, %c256] : memref<1x512xf32, #tpu.memory_space<vmem>>, vector<1x50xf32>
    %c0_3 = arith.constant 0 : index
    %c384 = arith.constant 384 : index
    %3 = vector.load %arg6[%c0_3, %c384] : memref<1x512xf32, #tpu.memory_space<vmem>>, vector<1x128xf32>
    %c0_4 = arith.constant 0 : index
    %c0_5 = arith.constant 0 : index
    %4 = vector.load %arg2[%c0_4, %c0_5] : memref<140x240xbf16, #tpu.memory_space<vmem>>, vector<140x240xbf16>
    %c0_6 = arith.constant 0 : index
    %c0_7 = arith.constant 0 : index
    %c0_8 = arith.constant 0 : index
    %5 = vector.load %arg1[%c0_6, %c0_7, %c0_8] : memref<4x192x140xbf16, #tpu.memory_space<vmem>>, vector<1x192x140xbf16>
    %6 = vector.shape_cast %5 : vector<1x192x140xbf16> to vector<192x140xbf16>
    %cst = arith.constant dense<0.000000e+00> : vector<192x240xf32>
    %7 = tpu.matmul %6, %4, %cst {dimension_numbers = #tpu.dot_dimension_numbers<[1], [0], [0], [1], [0, 0, 1, 1], [], []>} : vector<192x140xbf16>, vector<140x240xbf16>, vector<192x240xf32> -> vector<192x240xf32>
    %c1 = arith.constant 1 : index
    %c0_9 = arith.constant 0 : index
    %c0_10 = arith.constant 0 : index
    %8 = vector.load %arg1[%c1, %c0_9, %c0_10] : memref<4x192x140xbf16, #tpu.memory_space<vmem>>, vector<1x192x140xbf16>
    %9 = vector.shape_cast %8 : vector<1x192x140xbf16> to vector<192x140xbf16>
    %cst_11 = arith.constant dense<0.000000e+00> : vector<192x240xf32>
    %10 = tpu.matmul %9, %4, %cst_11 {dimension_numbers = #tpu.dot_dimension_numbers<[1], [0], [0], [1], [0, 0, 1, 1], [], []>} : vector<192x140xbf16>, vector<140x240xbf16>, vector<192x240xf32> -> vector<192x240xf32>
    %11 = arith.maximumf %7, %10 : vector<192x240xf32>
    %12 = vector.extract_strided_slice %11 {offsets = [0, 0], sizes = [192, 120], strides = [1, 1]} : vector<192x240xf32> to vector<192x120xf32>
    %13 = vector.extract_strided_slice %11 {offsets = [0, 120], sizes = [192, 120], strides = [1, 1]} : vector<192x240xf32> to vector<192x120xf32>
    %14 = arith.maximumf %12, %13 : vector<192x120xf32>
    %15 = vector.broadcast %0 : vector<1x120xf32> to vector<192x120xf32>
    %16 = arith.addf %14, %15 : vector<192x120xf32>
    %cst_12 = arith.constant 0.000000e+00 : f32
    %17 = vector.broadcast %cst_12 : f32 to vector<192x120xf32>
    %18 = arith.maximumf %16, %17 : vector<192x120xf32>
    %c2 = arith.constant 2 : index
    %c0_13 = arith.constant 0 : index
    %c0_14 = arith.constant 0 : index
    %19 = vector.load %arg1[%c2, %c0_13, %c0_14] : memref<4x192x140xbf16, #tpu.memory_space<vmem>>, vector<1x192x140xbf16>
    %20 = vector.shape_cast %19 : vector<1x192x140xbf16> to vector<192x140xbf16>
    %cst_15 = arith.constant dense<0.000000e+00> : vector<192x240xf32>
    %21 = tpu.matmul %20, %4, %cst_15 {dimension_numbers = #tpu.dot_dimension_numbers<[1], [0], [0], [1], [0, 0, 1, 1], [], []>} : vector<192x140xbf16>, vector<140x240xbf16>, vector<192x240xf32> -> vector<192x240xf32>
    %c3 = arith.constant 3 : index
    %c0_16 = arith.constant 0 : index
    %c0_17 = arith.constant 0 : index
    %22 = vector.load %arg1[%c3, %c0_16, %c0_17] : memref<4x192x140xbf16, #tpu.memory_space<vmem>>, vector<1x192x140xbf16>
    %23 = vector.shape_cast %22 : vector<1x192x140xbf16> to vector<192x140xbf16>
    %cst_18 = arith.constant dense<0.000000e+00> : vector<192x240xf32>
    %24 = tpu.matmul %23, %4, %cst_18 {dimension_numbers = #tpu.dot_dimension_numbers<[1], [0], [0], [1], [0, 0, 1, 1], [], []>} : vector<192x140xbf16>, vector<140x240xbf16>, vector<192x240xf32> -> vector<192x240xf32>
    %25 = arith.maximumf %21, %24 : vector<192x240xf32>
    %26 = vector.extract_strided_slice %25 {offsets = [0, 0], sizes = [192, 120], strides = [1, 1]} : vector<192x240xf32> to vector<192x120xf32>
    %27 = vector.extract_strided_slice %25 {offsets = [0, 120], sizes = [192, 120], strides = [1, 1]} : vector<192x240xf32> to vector<192x120xf32>
    %28 = arith.maximumf %26, %27 : vector<192x120xf32>
    %29 = vector.broadcast %0 : vector<1x120xf32> to vector<192x120xf32>
    %30 = arith.addf %28, %29 : vector<192x120xf32>
    %cst_19 = arith.constant 0.000000e+00 : f32
    %31 = vector.broadcast %cst_19 : f32 to vector<192x120xf32>
    %32 = arith.maximumf %30, %31 : vector<192x120xf32>
    %33 = arith.truncf %18 : vector<192x120xf32> to vector<192x120xbf16>
    %34 = arith.truncf %32 : vector<192x120xf32> to vector<192x120xbf16>
    %cst_20 = arith.constant 0.000000e+00 : f32
    %35 = vector.broadcast %cst_20 : f32 to vector<128x160xf32>
    %36 = vector.extract_strided_slice %33 {offsets = [0, 0], sizes = [128, 120], strides = [1, 1]} : vector<192x120xbf16> to vector<128x120xbf16>
    %c0_21 = arith.constant 0 : index
    %c0_22 = arith.constant 0 : index
    %c0_23 = arith.constant 0 : index
    %37 = vector.load %arg3[%c0_21, %c0_22, %c0_23] : memref<5x120x160xbf16, #tpu.memory_space<vmem>>, vector<1x120x160xbf16>
    %38 = vector.shape_cast %37 : vector<1x120x160xbf16> to vector<120x160xbf16>
    %cst_24 = arith.constant dense<0.000000e+00> : vector<128x160xf32>
    %39 = tpu.matmul %36, %38, %cst_24 {dimension_numbers = #tpu.dot_dimension_numbers<[1], [0], [0], [1], [0, 0, 1, 1], [], []>} : vector<128x120xbf16>, vector<120x160xbf16>, vector<128x160xf32> -> vector<128x160xf32>
    %40 = arith.addf %35, %39 : vector<128x160xf32>
    %41 = vector.extract_strided_slice %34 {offsets = [0, 0], sizes = [128, 120], strides = [1, 1]} : vector<192x120xbf16> to vector<128x120xbf16>
    %c1_25 = arith.constant 1 : index
    %c0_26 = arith.constant 0 : index
    %c0_27 = arith.constant 0 : index
    %42 = vector.load %arg3[%c1_25, %c0_26, %c0_27] : memref<5x120x160xbf16, #tpu.memory_space<vmem>>, vector<1x120x160xbf16>
    %43 = vector.shape_cast %42 : vector<1x120x160xbf16> to vector<120x160xbf16>
    %cst_28 = arith.constant dense<0.000000e+00> : vector<128x160xf32>
    %44 = tpu.matmul %41, %43, %cst_28 {dimension_numbers = #tpu.dot_dimension_numbers<[1], [0], [0], [1], [0, 0, 1, 1], [], []>} : vector<128x120xbf16>, vector<120x160xbf16>, vector<128x160xf32> -> vector<128x160xf32>
    %45 = arith.addf %40, %44 : vector<128x160xf32>
    %46 = vector.extract_strided_slice %33 {offsets = [32, 0], sizes = [128, 120], strides = [1, 1]} : vector<192x120xbf16> to vector<128x120xbf16>
    %c2_29 = arith.constant 2 : index
    %c0_30 = arith.constant 0 : index
    %c0_31 = arith.constant 0 : index
    %47 = vector.load %arg3[%c2_29, %c0_30, %c0_31] : memref<5x120x160xbf16, #tpu.memory_space<vmem>>, vector<1x120x160xbf16>
    %48 = vector.shape_cast %47 : vector<1x120x160xbf16> to vector<120x160xbf16>
    %cst_32 = arith.constant dense<0.000000e+00> : vector<128x160xf32>
    %49 = tpu.matmul %46, %48, %cst_32 {dimension_numbers = #tpu.dot_dimension_numbers<[1], [0], [0], [1], [0, 0, 1, 1], [], []>} : vector<128x120xbf16>, vector<120x160xbf16>, vector<128x160xf32> -> vector<128x160xf32>
    %50 = arith.addf %45, %49 : vector<128x160xf32>
    %51 = vector.extract_strided_slice %34 {offsets = [32, 0], sizes = [128, 120], strides = [1, 1]} : vector<192x120xbf16> to vector<128x120xbf16>
    %c3_33 = arith.constant 3 : index
    %c0_34 = arith.constant 0 : index
    %c0_35 = arith.constant 0 : index
    %52 = vector.load %arg3[%c3_33, %c0_34, %c0_35] : memref<5x120x160xbf16, #tpu.memory_space<vmem>>, vector<1x120x160xbf16>
    %53 = vector.shape_cast %52 : vector<1x120x160xbf16> to vector<120x160xbf16>
    %cst_36 = arith.constant dense<0.000000e+00> : vector<128x160xf32>
    %54 = tpu.matmul %51, %53, %cst_36 {dimension_numbers = #tpu.dot_dimension_numbers<[1], [0], [0], [1], [0, 0, 1, 1], [], []>} : vector<128x120xbf16>, vector<120x160xbf16>, vector<128x160xf32> -> vector<128x160xf32>
    %55 = arith.addf %50, %54 : vector<128x160xf32>
    %56 = vector.extract_strided_slice %33 {offsets = [64, 0], sizes = [128, 120], strides = [1, 1]} : vector<192x120xbf16> to vector<128x120xbf16>
    %c4 = arith.constant 4 : index
    %c0_37 = arith.constant 0 : index
    %c0_38 = arith.constant 0 : index
    %57 = vector.load %arg3[%c4, %c0_37, %c0_38] : memref<5x120x160xbf16, #tpu.memory_space<vmem>>, vector<1x120x160xbf16>
    %58 = vector.shape_cast %57 : vector<1x120x160xbf16> to vector<120x160xbf16>
    %cst_39 = arith.constant dense<0.000000e+00> : vector<128x160xf32>
    %59 = tpu.matmul %56, %58, %cst_39 {dimension_numbers = #tpu.dot_dimension_numbers<[1], [0], [0], [1], [0, 0, 1, 1], [], []>} : vector<128x120xbf16>, vector<120x160xbf16>, vector<128x160xf32> -> vector<128x160xf32>
    %60 = arith.addf %55, %59 : vector<128x160xf32>
    %cst_40 = arith.constant 0.000000e+00 : f32
    %61 = vector.broadcast %cst_40 : f32 to vector<128x160xf32>
    %62 = vector.extract_strided_slice %34 {offsets = [0, 0], sizes = [128, 120], strides = [1, 1]} : vector<192x120xbf16> to vector<128x120xbf16>
    %c0_41 = arith.constant 0 : index
    %c0_42 = arith.constant 0 : index
    %c0_43 = arith.constant 0 : index
    %63 = vector.load %arg3[%c0_41, %c0_42, %c0_43] : memref<5x120x160xbf16, #tpu.memory_space<vmem>>, vector<1x120x160xbf16>
    %64 = vector.shape_cast %63 : vector<1x120x160xbf16> to vector<120x160xbf16>
    %cst_44 = arith.constant dense<0.000000e+00> : vector<128x160xf32>
    %65 = tpu.matmul %62, %64, %cst_44 {dimension_numbers = #tpu.dot_dimension_numbers<[1], [0], [0], [1], [0, 0, 1, 1], [], []>} : vector<128x120xbf16>, vector<120x160xbf16>, vector<128x160xf32> -> vector<128x160xf32>
    %66 = arith.addf %61, %65 : vector<128x160xf32>
    %67 = vector.extract_strided_slice %33 {offsets = [32, 0], sizes = [128, 120], strides = [1, 1]} : vector<192x120xbf16> to vector<128x120xbf16>
    %c1_45 = arith.constant 1 : index
    %c0_46 = arith.constant 0 : index
    %c0_47 = arith.constant 0 : index
    %68 = vector.load %arg3[%c1_45, %c0_46, %c0_47] : memref<5x120x160xbf16, #tpu.memory_space<vmem>>, vector<1x120x160xbf16>
    %69 = vector.shape_cast %68 : vector<1x120x160xbf16> to vector<120x160xbf16>
    %cst_48 = arith.constant dense<0.000000e+00> : vector<128x160xf32>
    %70 = tpu.matmul %67, %69, %cst_48 {dimension_numbers = #tpu.dot_dimension_numbers<[1], [0], [0], [1], [0, 0, 1, 1], [], []>} : vector<128x120xbf16>, vector<120x160xbf16>, vector<128x160xf32> -> vector<128x160xf32>
    %71 = arith.addf %66, %70 : vector<128x160xf32>
    %72 = vector.extract_strided_slice %34 {offsets = [32, 0], sizes = [128, 120], strides = [1, 1]} : vector<192x120xbf16> to vector<128x120xbf16>
    %c2_49 = arith.constant 2 : index
    %c0_50 = arith.constant 0 : index
    %c0_51 = arith.constant 0 : index
    %73 = vector.load %arg3[%c2_49, %c0_50, %c0_51] : memref<5x120x160xbf16, #tpu.memory_space<vmem>>, vector<1x120x160xbf16>
    %74 = vector.shape_cast %73 : vector<1x120x160xbf16> to vector<120x160xbf16>
    %cst_52 = arith.constant dense<0.000000e+00> : vector<128x160xf32>
    %75 = tpu.matmul %72, %74, %cst_52 {dimension_numbers = #tpu.dot_dimension_numbers<[1], [0], [0], [1], [0, 0, 1, 1], [], []>} : vector<128x120xbf16>, vector<120x160xbf16>, vector<128x160xf32> -> vector<128x160xf32>
    %76 = arith.addf %71, %75 : vector<128x160xf32>
    %77 = vector.extract_strided_slice %33 {offsets = [64, 0], sizes = [128, 120], strides = [1, 1]} : vector<192x120xbf16> to vector<128x120xbf16>
    %c3_53 = arith.constant 3 : index
    %c0_54 = arith.constant 0 : index
    %c0_55 = arith.constant 0 : index
    %78 = vector.load %arg3[%c3_53, %c0_54, %c0_55] : memref<5x120x160xbf16, #tpu.memory_space<vmem>>, vector<1x120x160xbf16>
    %79 = vector.shape_cast %78 : vector<1x120x160xbf16> to vector<120x160xbf16>
    %cst_56 = arith.constant dense<0.000000e+00> : vector<128x160xf32>
    %80 = tpu.matmul %77, %79, %cst_56 {dimension_numbers = #tpu.dot_dimension_numbers<[1], [0], [0], [1], [0, 0, 1, 1], [], []>} : vector<128x120xbf16>, vector<120x160xbf16>, vector<128x160xf32> -> vector<128x160xf32>
    %81 = arith.addf %76, %80 : vector<128x160xf32>
    %82 = vector.extract_strided_slice %34 {offsets = [64, 0], sizes = [128, 120], strides = [1, 1]} : vector<192x120xbf16> to vector<128x120xbf16>
    %c4_57 = arith.constant 4 : index
    %c0_58 = arith.constant 0 : index
    %c0_59 = arith.constant 0 : index
    %83 = vector.load %arg3[%c4_57, %c0_58, %c0_59] : memref<5x120x160xbf16, #tpu.memory_space<vmem>>, vector<1x120x160xbf16>
    %84 = vector.shape_cast %83 : vector<1x120x160xbf16> to vector<120x160xbf16>
    %cst_60 = arith.constant dense<0.000000e+00> : vector<128x160xf32>
    %85 = tpu.matmul %82, %84, %cst_60 {dimension_numbers = #tpu.dot_dimension_numbers<[1], [0], [0], [1], [0, 0, 1, 1], [], []>} : vector<128x120xbf16>, vector<120x160xbf16>, vector<128x160xf32> -> vector<128x160xf32>
    %86 = arith.addf %81, %85 : vector<128x160xf32>
    %87 = arith.maximumf %60, %86 : vector<128x160xf32>
    %88 = vector.extract_strided_slice %87 {offsets = [0, 0], sizes = [128, 80], strides = [1, 1]} : vector<128x160xf32> to vector<128x80xf32>
    %89 = vector.extract_strided_slice %87 {offsets = [0, 80], sizes = [128, 80], strides = [1, 1]} : vector<128x160xf32> to vector<128x80xf32>
    %90 = arith.maximumf %88, %89 : vector<128x80xf32>
    %91 = vector.broadcast %1 : vector<1x80xf32> to vector<128x80xf32>
    %92 = arith.addf %90, %91 : vector<128x80xf32>
    %cst_61 = arith.constant 0.000000e+00 : f32
    %93 = vector.broadcast %cst_61 : f32 to vector<128x80xf32>
    %94 = arith.maximumf %92, %93 : vector<128x80xf32>
    %95 = arith.truncf %94 : vector<128x80xf32> to vector<128x80xbf16>
    %cst_62 = arith.constant 0.000000e+00 : f32
    %96 = vector.broadcast %cst_62 : f32 to vector<32x50xf32>
    %97 = vector.extract_strided_slice %95 {offsets = [0, 0], sizes = [32, 80], strides = [1, 1]} : vector<128x80xbf16> to vector<32x80xbf16>
    %c0_63 = arith.constant 0 : index
    %c0_64 = arith.constant 0 : index
    %c0_65 = arith.constant 0 : index
    %98 = vector.load %arg4[%c0_63, %c0_64, %c0_65] : memref<4x80x50xbf16, #tpu.memory_space<vmem>>, vector<1x80x50xbf16>
    %99 = vector.shape_cast %98 : vector<1x80x50xbf16> to vector<80x50xbf16>
    %cst_66 = arith.constant dense<0.000000e+00> : vector<32x50xf32>
    %100 = tpu.matmul %97, %99, %cst_66 {dimension_numbers = #tpu.dot_dimension_numbers<[1], [0], [0], [1], [0, 0, 1, 1], [], []>} : vector<32x80xbf16>, vector<80x50xbf16>, vector<32x50xf32> -> vector<32x50xf32>
    %101 = arith.addf %96, %100 : vector<32x50xf32>
    %102 = vector.extract_strided_slice %95 {offsets = [32, 0], sizes = [32, 80], strides = [1, 1]} : vector<128x80xbf16> to vector<32x80xbf16>
    %c1_67 = arith.constant 1 : index
    %c0_68 = arith.constant 0 : index
    %c0_69 = arith.constant 0 : index
    %103 = vector.load %arg4[%c1_67, %c0_68, %c0_69] : memref<4x80x50xbf16, #tpu.memory_space<vmem>>, vector<1x80x50xbf16>
    %104 = vector.shape_cast %103 : vector<1x80x50xbf16> to vector<80x50xbf16>
    %cst_70 = arith.constant dense<0.000000e+00> : vector<32x50xf32>
    %105 = tpu.matmul %102, %104, %cst_70 {dimension_numbers = #tpu.dot_dimension_numbers<[1], [0], [0], [1], [0, 0, 1, 1], [], []>} : vector<32x80xbf16>, vector<80x50xbf16>, vector<32x50xf32> -> vector<32x50xf32>
    %106 = arith.addf %101, %105 : vector<32x50xf32>
    %107 = vector.extract_strided_slice %95 {offsets = [64, 0], sizes = [32, 80], strides = [1, 1]} : vector<128x80xbf16> to vector<32x80xbf16>
    %c2_71 = arith.constant 2 : index
    %c0_72 = arith.constant 0 : index
    %c0_73 = arith.constant 0 : index
    %108 = vector.load %arg4[%c2_71, %c0_72, %c0_73] : memref<4x80x50xbf16, #tpu.memory_space<vmem>>, vector<1x80x50xbf16>
    %109 = vector.shape_cast %108 : vector<1x80x50xbf16> to vector<80x50xbf16>
    %cst_74 = arith.constant dense<0.000000e+00> : vector<32x50xf32>
    %110 = tpu.matmul %107, %109, %cst_74 {dimension_numbers = #tpu.dot_dimension_numbers<[1], [0], [0], [1], [0, 0, 1, 1], [], []>} : vector<32x80xbf16>, vector<80x50xbf16>, vector<32x50xf32> -> vector<32x50xf32>
    %111 = arith.addf %106, %110 : vector<32x50xf32>
    %112 = vector.extract_strided_slice %95 {offsets = [96, 0], sizes = [32, 80], strides = [1, 1]} : vector<128x80xbf16> to vector<32x80xbf16>
    %c3_75 = arith.constant 3 : index
    %c0_76 = arith.constant 0 : index
    %c0_77 = arith.constant 0 : index
    %113 = vector.load %arg4[%c3_75, %c0_76, %c0_77] : memref<4x80x50xbf16, #tpu.memory_space<vmem>>, vector<1x80x50xbf16>
    %114 = vector.shape_cast %113 : vector<1x80x50xbf16> to vector<80x50xbf16>
    %cst_78 = arith.constant dense<0.000000e+00> : vector<32x50xf32>
    %115 = tpu.matmul %112, %114, %cst_78 {dimension_numbers = #tpu.dot_dimension_numbers<[1], [0], [0], [1], [0, 0, 1, 1], [], []>} : vector<32x80xbf16>, vector<80x50xbf16>, vector<32x50xf32> -> vector<32x50xf32>
    %116 = arith.addf %111, %115 : vector<32x50xf32>
    %117 = vector.broadcast %2 : vector<1x50xf32> to vector<32x50xf32>
    %118 = arith.addf %116, %117 : vector<32x50xf32>
    %cst_79 = arith.constant 0.000000e+00 : f32
    %119 = vector.broadcast %cst_79 : f32 to vector<32x50xf32>
    %120 = arith.maximumf %118, %119 : vector<32x50xf32>
    %121 = arith.truncf %120 : vector<32x50xf32> to vector<32x50xbf16>
    %c0_80 = arith.constant 0 : index
    %c0_81 = arith.constant 0 : index
    %122 = vector.load %arg5[%c0_80, %c0_81] : memref<50x128xbf16, #tpu.memory_space<vmem>>, vector<50x128xbf16>
    %cst_82 = arith.constant dense<0.000000e+00> : vector<32x128xf32>
    %123 = tpu.matmul %121, %122, %cst_82 {dimension_numbers = #tpu.dot_dimension_numbers<[1], [0], [0], [1], [0, 0, 1, 1], [], []>} : vector<32x50xbf16>, vector<50x128xbf16>, vector<32x128xf32> -> vector<32x128xf32>
    %124 = vector.broadcast %3 : vector<1x128xf32> to vector<32x128xf32>
    %125 = arith.addf %123, %124 : vector<32x128xf32>
    %cst_83 = arith.constant dense<0xFF800000> : vector<32xf32>
    %126 = vector.multi_reduction <maximumf>, %125, %cst_83 [1] : vector<32x128xf32> to vector<32xf32>
    %127 = vector.shape_cast %126 : vector<32xf32> to vector<32x1xf32>
    %128 = vector.broadcast %127 : vector<32x1xf32> to vector<32x128xf32>
    %129 = arith.subf %125, %128 : vector<32x128xf32>
    %130 = math.exp %129 : vector<32x128xf32>
    %cst_84 = arith.constant dense<0.000000e+00> : vector<32xf32>
    %131 = vector.multi_reduction <add>, %130, %cst_84 [1] : vector<32x128xf32> to vector<32xf32>
    %132 = vector.shape_cast %131 : vector<32xf32> to vector<32x1xf32>
    %133 = vector.broadcast %127 : vector<32x1xf32> to vector<32x128xf32>
    %134 = arith.subf %125, %133 : vector<32x128xf32>
    %135 = math.log %132 : vector<32x1xf32>
    %136 = vector.broadcast %135 : vector<32x1xf32> to vector<32x128xf32>
    %137 = arith.subf %134, %136 : vector<32x128xf32>
    %c0_85 = arith.constant 0 : index
    %c0_86 = arith.constant 0 : index
    %138 = vector.load %arg7[%c0_85, %c0_86] : memref<32x128xf32, #tpu.memory_space<vmem>>, vector<32x128xf32>
    tpu.vector_store %arg7[%c0_85, %c0_86], %137 {strides = array<i32>} : memref<32x128xf32, #tpu.memory_space<vmem>>, vector<32x128xf32>,
    return
  }
  func.func @transform_0(%arg0: i32) -> (i32, i32, i32) {
    %c0_i32 = arith.constant 0 : i32
    %c0_i32_0 = arith.constant 0 : i32
    %c0_i32_1 = arith.constant 0 : i32
    return %arg0, %c0_i32, %c0_i32_0 : i32, i32, i32
  }
  func.func @transform_1(%arg0: i32) -> (i32, i32) {
    %c0_i32 = arith.constant 0 : i32
    %c0_i32_0 = arith.constant 0 : i32
    %c0_i32_1 = arith.constant 0 : i32
    return %c0_i32, %c0_i32_0 : i32, i32
  }
  func.func @transform_2(%arg0: i32) -> (i32, i32, i32) {
    %c0_i32 = arith.constant 0 : i32
    %c0_i32_0 = arith.constant 0 : i32
    %c0_i32_1 = arith.constant 0 : i32
    %c0_i32_2 = arith.constant 0 : i32
    return %c0_i32, %c0_i32_0, %c0_i32_1 : i32, i32, i32
  }
  func.func @transform_3(%arg0: i32) -> (i32, i32, i32) {
    %c0_i32 = arith.constant 0 : i32
    %c0_i32_0 = arith.constant 0 : i32
    %c0_i32_1 = arith.constant 0 : i32
    %c0_i32_2 = arith.constant 0 : i32
    return %c0_i32, %c0_i32_0, %c0_i32_1 : i32, i32, i32
  }
  func.func @transform_4(%arg0: i32) -> (i32, i32) {
    %c0_i32 = arith.constant 0 : i32
    %c0_i32_0 = arith.constant 0 : i32
    %c0_i32_1 = arith.constant 0 : i32
    return %c0_i32, %c0_i32_0 : i32, i32
  }
  func.func @transform_5(%arg0: i32) -> (i32, i32) {
    %c0_i32 = arith.constant 0 : i32
    %c0_i32_0 = arith.constant 0 : i32
    %c0_i32_1 = arith.constant 0 : i32
    return %c0_i32, %c0_i32_0 : i32, i32
  }
  func.func @transform_6(%arg0: i32) -> (i32, i32) {
    %c0_i32 = arith.constant 0 : i32
    %c0_i32_0 = arith.constant 0 : i32
    return %arg0, %c0_i32 : i32, i32
  }
}

</mosaic_0001>

<llo_original>
// kernel: _lambda_.1
$region0: #{_lambda_.1}
  #allocation0 [shape = 'u32[]', space=smem, size = 0x4, offset = 0x4, fixed_abs, tag = 'smem constant byte address 0x4 - core index']
  #allocation1 [shape = 'u32[144,128]{1,0:T(1,128)}', space=vmem, size = 0x12000, scoped, tag = 'internal scratch']
  %s0 = inlined_call_operand.vmem [shape: bf16[8,192,140], index: 0, kind: input, shape index: {}]
  %s1 = inlined_call_operand.vmem [shape: bf16[140,240], index: 1, kind: input, shape index: {}]
  %s2 = inlined_call_operand.vmem [shape: bf16[5,120,160], index: 2, kind: input, shape index: {}]
  %s3 = inlined_call_operand.vmem [shape: bf16[4,80,50], index: 3, kind: input, shape index: {}]
  %s4 = inlined_call_operand.vmem [shape: bf16[50,128], index: 4, kind: input, shape index: {}]
  %s5 = inlined_call_operand.vmem [shape: f32[1,512], index: 5, kind: input, shape index: {}]
  %s6 = inlined_call_operand.vmem [shape: f32[64,128], index: 6, kind: output, shape index: {}]
  %s7 = sld [smem:[#allocation0]]
  $region57: #{_lambda_.1} parent=0
    _
  %s9 = ssub.s32 1, %s7
  %s10 = scalar_select 0, %s9, %s7
  loop: start=0, step=1, limit=4
  $region2: #{_lambda_.1} parent=0 // loop_pre_header
    _
  $region3: #{_lambda_.1} parent=0 // loop_header
    %s12 = sphi 0, %s16
    %p13 = scmp.ge.s32.totalorder %s12, 4
    %s22 = sphi 0, %s24
    %s25 = sphi 0, %s22
    %s26 = sphi 0, %s25
    %s42 = sphi 0, %s26
    %s46 = sphi 0, %s46
    %s48 = sphi 0, %s46
    %s49 = sphi 0, %s48
    %s63 = sphi 0, %s49
    %s67 = sphi 0, %s67
    %s69 = sphi 0, %s67
    %s70 = sphi 0, %s69
    %s84 = sphi 0, %s70
    %s88 = sphi 0, %s88
    %s90 = sphi 0, %s88
    %s91 = sphi 0, %s90
    %s105 = sphi 0, %s91
    %s109 = sphi 0, %s109
    %s111 = sphi 0, %s109
    %s112 = sphi 0, %s111
    %s126 = sphi 0, %s112
    %s130 = sphi 0, %s130
    %s132 = sphi 0, %s130
    %s133 = sphi 0, %s132
    %s147 = sphi 0, %s133
    %s153 = sphi 0, %s155
    %s156 = sphi 0, %s153
    %s157 = sphi 0, %s156
    %s173 = sphi 0, %s157
  $region4: #{_lambda_.1} parent=0 // loop_header_branch
    %15 = sbr.rel (%p13) target = $region8
  $region5: #{_lambda_.1} parent=0 // loop_body
    %s17 = ssub.s32 %s12, 1
    %s18 = ssub.s32 %s12, 2
    %s19 = sadd.s32 %s12, 1
    %s20 = ssub.s32 %s12, %s19
    %p21 = scmp.eq.s32.totalorder %s20, 0
    %s23 = sadd.s32 %s22, 1
    %s24 = scalar_select %p21, %s22, %s23
    %p27 = pneg %p21
    %p28 = scmp.eq.s32.totalorder %s12, 1
    %p29 = por %p27, %p28
    %p30 = scmp.ne.s32.totalorder %s22, %s25
    %p31 = scmp.eq.s32.totalorder %s12, 0
    %p32 = por %p30, %p31
    %p33 = scmp.ne.s32.totalorder %s22, %s25
    %p34 = scmp.eq.s32.totalorder %s17, 1
    %p35 = por %p33, %p34
    %p36 = scmp.ne.s32.totalorder %s25, %s26
    %p37 = scmp.eq.s32.totalorder %s17, 0
    %p38 = por %p36, %p37
    %p39 = scmp.ne.s32.totalorder %s25, %s26
    %p40 = scmp.eq.s32.totalorder %s18, 1
    %p41 = por %p39, %p40
    %p43 = scmp.ne.s32.totalorder %s26, %s42
    %p44 = scmp.eq.s32.totalorder %s18, 0
    %p45 = por %p43, %p44
    %s47 = sadd.s32 %s46, 1
    %p50 = scmp.eq.s32.totalorder %s12, 1
    %p51 = scmp.ne.s32.totalorder %s46, %s48
    %p52 = scmp.eq.s32.totalorder %s12, 0
    %p53 = por %p51, %p52
    %p54 = scmp.ne.s32.totalorder %s46, %s48
    %p55 = scmp.eq.s32.totalorder %s17, 1
    %p56 = por %p54, %p55
    %p57 = scmp.ne.s32.totalorder %s48, %s49
    %p58 = scmp.eq.s32.totalorder %s17, 0
    %p59 = por %p57, %p58
    %p60 = scmp.ne.s32.totalorder %s48, %s49
    %p61 = scmp.eq.s32.totalorder %s18, 1
    %p62 = por %p60, %p61
    %p64 = scmp.ne.s32.totalorder %s49, %s63
    %p65 = scmp.eq.s32.totalorder %s18, 0
    %p66 = por %p64, %p65
    %s68 = sadd.s32 %s67, 1
    %p71 = scmp.eq.s32.totalorder %s12, 1
    %p72 = scmp.ne.s32.totalorder %s67, %s69
    %p73 = scmp.eq.s32.totalorder %s12, 0
    %p74 = por %p72, %p73
    %p75 = scmp.ne.s32.totalorder %s67, %s69
    %p76 = scmp.eq.s32.totalorder %s17, 1
    %p77 = por %p75, %p76
    %p78 = scmp.ne.s32.totalorder %s69, %s70
    %p79 = scmp.eq.s32.totalorder %s17, 0
    %p80 = por %p78, %p79
    %p81 = scmp.ne.s32.totalorder %s69, %s70
    %p82 = scmp.eq.s32.totalorder %s18, 1
    %p83 = por %p81, %p82
    %p85 = scmp.ne.s32.totalorder %s70, %s84
    %p86 = scmp.eq.s32.totalorder %s18, 0
    %p87 = por %p85, %p86
    %s89 = sadd.s32 %s88, 1
    %p92 = scmp.eq.s32.totalorder %s12, 1
    %p93 = scmp.ne.s32.totalorder %s88, %s90
    %p94 = scmp.eq.s32.totalorder %s12, 0
    %p95 = por %p93, %p94
    %p96 = scmp.ne.s32.totalorder %s88, %s90
    %p97 = scmp.eq.s32.totalorder %s17, 1
    %p98 = por %p96, %p97
    %p99 = scmp.ne.s32.totalorder %s90, %s91
    %p100 = scmp.eq.s32.totalorder %s17, 0
    %p101 = por %p99, %p100
    %p102 = scmp.ne.s32.totalorder %s90, %s91
    %p103 = scmp.eq.s32.totalorder %s18, 1
    %p104 = por %p102, %p103
    %p106 = scmp.ne.s32.totalorder %s91, %s105
    %p107 = scmp.eq.s32.totalorder %s18, 0
    %p108 = por %p106, %p107
    %s110 = sadd.s32 %s109, 1
    %p113 = scmp.eq.s32.totalorder %s12, 1
    %p114 = scmp.ne.s32.totalorder %s109, %s111
    %p115 = scmp.eq.s32.totalorder %s12, 0
    %p116 = por %p114, %p115
    %p117 = scmp.ne.s32.totalorder %s109, %s111
    %p118 = scmp.eq.s32.totalorder %s17, 1
    %p119 = por %p117, %p118
    %p120 = scmp.ne.s32.totalorder %s111, %s112
    %p121 = scmp.eq.s32.totalorder %s17, 0
    %p122 = por %p120, %p121
    %p123 = scmp.ne.s32.totalorder %s111, %s112
    %p124 = scmp.eq.s32.totalorder %s18, 1
    %p125 = por %p123, %p124
    %p127 = scmp.ne.s32.totalorder %s112, %s126
    %p128 = scmp.eq.s32.totalorder %s18, 0
    %p129 = por %p127, %p128
    %s131 = sadd.s32 %s130, 1
    %p134 = scmp.eq.s32.totalorder %s12, 1
    %p135 = scmp.ne.s32.totalorder %s130, %s132
    %p136 = scmp.eq.s32.totalorder %s12, 0
    %p137 = por %p135, %p136
    %p138 = scmp.ne.s32.totalorder %s130, %s132
    %p139 = scmp.eq.s32.totalorder %s17, 1
    %p140 = por %p138, %p139
    %p141 = scmp.ne.s32.totalorder %s132, %s133
    %p142 = scmp.eq.s32.totalorder %s17, 0
    %p143 = por %p141, %p142
    %p144 = scmp.ne.s32.totalorder %s132, %s133
    %p145 = scmp.eq.s32.totalorder %s18, 1
    %p146 = por %p144, %p145
    %p148 = scmp.ne.s32.totalorder %s133, %s147
    %p149 = scmp.eq.s32.totalorder %s18, 0
    %p150 = por %p148, %p149
    %s151 = ssub.s32 %s12, %s19
    %p152 = scmp.eq.s32.totalorder %s151, 0
    %s154 = sadd.s32 %s153, 1
    %s155 = scalar_select %p152, %s153, %s154
    %p158 = pneg %p152
    %p159 = scmp.eq.s32.totalorder %s12, 1
    %p160 = por %p158, %p159
    %p161 = scmp.ne.s32.totalorder %s153, %s156
    %p162 = scmp.eq.s32.totalorder %s12, 0
    %p163 = por %p161, %p162
    %p164 = scmp.ne.s32.totalorder %s153, %s156
    %p165 = scmp.eq.s32.totalorder %s17, 1
    %p166 = por %p164, %p165
    %p167 = scmp.ne.s32.totalorder %s156, %s157
    %p168 = scmp.eq.s32.totalorder %s17, 0
    %p169 = por %p167, %p168
    %p170 = scmp.ne.s32.totalorder %s156, %s157
    %p171 = scmp.eq.s32.totalorder %s18, 1
    %p172 = por %p170, %p171
    %p174 = scmp.ne.s32.totalorder %s157, %s173
    %p175 = scmp.eq.s32.totalorder %s18, 0
    %p176 = por %p174, %p175
    %p177 = scmp.le.s32.totalorder 1, %s12
    %p178 = scmp.lt.s32.totalorder %s12, 3
    %p179 = pnand %p177, %p178
    %p180 = pneg %p179
    // Predicated region
    $region9: #{_lambda_.1} parent=5 // pred_check
      _
    $region10: #{_lambda_.1} parent=5 // pred_check_branch
      %182 = sbr.rel (%p179) target = $region12
    $region11: #{_lambda_.1} parent=5 // pred_region
      %s183 = ssub.s32 %s12, 1
      // Predicated region
      $region13: #{_lambda_.1} parent=11 // pred_check
        %p184 = pneg %p59
      $region14: #{_lambda_.1} parent=11 // pred_check_branch
        %186 = sbr.rel (%p184) target = $region16
      $region15: #{_lambda_.1} parent=11 // pred_region
        _
      $region16: #{_lambda_.1} parent=11 // pred_fallthru
        _
      // Predicated region
      $region17: #{_lambda_.1} parent=11 // pred_check
        %p187 = pneg %p80
      $region18: #{_lambda_.1} parent=11 // pred_check_branch
        %189 = sbr.rel (%p187) target = $region20
      $region19: #{_lambda_.1} parent=11 // pred_region
        _
      $region20: #{_lambda_.1} parent=11 // pred_fallthru
        _
      // Predicated region
      $region21: #{_lambda_.1} parent=11 // pred_check
        %p190 = pneg %p101
      $region22: #{_lambda_.1} parent=11 // pred_check_branch
        %192 = sbr.rel (%p190) target = $region24
      $region23: #{_lambda_.1} parent=11 // pred_region
        _
      $region24: #{_lambda_.1} parent=11 // pred_fallthru
        _
      // Predicated region
      $region25: #{_lambda_.1} parent=11 // pred_check
        %p193 = pneg %p122
      $region26: #{_lambda_.1} parent=11 // pred_check_branch
        %195 = sbr.rel (%p193) target = $region28
      $region27: #{_lambda_.1} parent=11 // pred_region
        _
      $region28: #{_lambda_.1} parent=11 // pred_fallthru
        _
      // Predicated region
      $region29: #{_lambda_.1} parent=11 // pred_check
        %p196 = pneg %p143
      $region30: #{_lambda_.1} parent=11 // pred_check_branch
        %198 = sbr.rel (%p196) target = $region32
      $region31: #{_lambda_.1} parent=11 // pred_region
        _
      $region32: #{_lambda_.1} parent=11 // pred_fallthru
        _
    $region12: #{_lambda_.1} parent=5 // pred_fallthru
      _
    %p199 = scmp.lt.s32.totalorder %s12, 2
    // Predicated region
    $region33: #{_lambda_.1} parent=5 // pred_check
      %p200 = pneg %p199
    $region34: #{_lambda_.1} parent=5 // pred_check_branch
      %202 = sbr.rel (%p200) target = $region36
    $region35: #{_lambda_.1} parent=5 // pred_region
      // Predicated region
      $region37: #{_lambda_.1} parent=35 // pred_check
        %p203 = pneg %p32
      $region38: #{_lambda_.1} parent=35 // pred_check_branch
        %205 = sbr.rel (%p203) target = $region40
      $region39: #{_lambda_.1} parent=35 // pred_region
        %s206 = smul.u32 4, %s12
        %p207 = scmp.lt.s32.totalorder %s206, 7
        %s208 = scalar_select %p207, %s206, 7
        %s209 = smul.addr %s208, 48
        %s210 = smul.addr %s209, 4
        %s211 = scalar_lea.vmem %s0, %s210
        %s212 = smul.u32 4, %s12
      $region40: #{_lambda_.1} parent=35 // pred_fallthru
        _
    $region36: #{_lambda_.1} parent=5 // pred_fallthru
      _
    %p213 = scmp.le.s32.totalorder 1, %s12
    %p214 = scmp.lt.s32.totalorder %s12, 3
    %p215 = pnand %p213, %p214
    %p216 = pneg %p215
    // Predicated region
    $region41: #{_lambda_.1} parent=5 // pred_check
      _
    $region42: #{_lambda_.1} parent=5 // pred_check_branch
      %218 = sbr.rel (%p215) target = $region44
    $region43: #{_lambda_.1} parent=5 // pred_region
      %s219 = ssub.s32 %s12, 1
      %s220 = smul.u32 4, %s17
      %p221 = scmp.lt.s32.totalorder %s220, 7
      %s222 = scalar_select %p221, %s220, 7
      %s223 = smul.addr %s222, 48
      %s224 = smul.addr %s223, 4
      %s225 = scalar_lea.vmem %s0, %s224
      %p226 = pneg %p38
      %p227 = pneg %p35
      %p228 = pneg %p59
      %p229 = pneg %p56
      %p230 = pneg %p80
      %p231 = pneg %p77
      %p232 = pneg %p101
      %p233 = pneg %p98
      %p234 = pneg %p122
      %p235 = pneg %p119
      %p236 = pneg %p143
      %p237 = pneg %p140
      %p238 = pneg %p169
      %p239 = pneg %p166
      %s240 = smul.u32 4, %s17
      %p241 = scmp.lt.s32.totalorder %s240, 7
      %s242 = scalar_select %p241, %s240, 7
      %s243 = smul.addr %s242, 8
      %s244 = scalar_lea.vmem %s6, %s243
      %s245 = smul.u32 4, %s17
      %p246 = scmp.lt.s32.totalorder %s245, 7
      %s247 = scalar_select %p246, %s245, 7
      %s248 = smul.addr %s247, 48
      %s249 = smul.addr %s248, 4
      %s250 = scalar_lea.vmem %s0, %s249
      %s251 = smul.u32 4, %s17
      %s252 = smul.u32 4, %s17
      %p253 = scmp.lt.s32.totalorder %s252, 7
      %s254 = scalar_select %p253, %s252, 7
      %s255 = smul.addr %s254, 8
      %s256 = scalar_lea.vmem %s6, %s255
      %s257 = smul.u32 4, %s17
      %v259 = vld [vmem:[%s5] sm:$0x1]
      %v260 = vld [vmem:[%s5 + $0x1] sm:$0x1]
      %v261 = vld [vmem:[%s5 + $0x2] sm:$0x1]
      %v262 = vld [vmem:[%s5 + $0x3] sm:$0x1]
      %v263 = vld [vmem:[%s1] sm:$0xff]
      %v264 = vld [vmem:[%s1 + $0x8] sm:$0xff]
      %v265 = vld [vmem:[%s1 + $0x10] sm:$0xff]
      %v266 = vld [vmem:[%s1 + $0x18] sm:$0xff]
      %v267 = vld [vmem:[%s1 + $0x20] sm:$0xff]
      %v268 = vld [vmem:[%s1 + $0x28] sm:$0xff]
      %v269 = vld [vmem:[%s1 + $0x30] sm:$0xff]
      %v270 = vld [vmem:[%s1 + $0x38] sm:$0xff]
      %v271 = vld [vmem:[%s1 + $0x40] sm:$0xff]
      %v272 = vld [vmem:[%s1 + $0x48] sm:$0xff]
      %v273 = vld [vmem:[%s1 + $0x50] sm:$0xff]
      %v274 = vld [vmem:[%s1 + $0x58] sm:$0xff]
      %v275 = vld [vmem:[%s1 + $0x60] sm:$0xff]
      %v276 = vld [vmem:[%s1 + $0x68] sm:$0xff]
      %v277 = vld [vmem:[%s1 + $0x70] sm:$0xff]
      %v278 = vld [vmem:[%s1 + $0x78] sm:$0xff]
      %v279 = vld [vmem:[%s1 + $0x80] sm:$0xff]
      %v280 = vld [vmem:[%s1 + $0x88] sm:$0x33]
      %v281 = vld [vmem:[%s250] sm:$0xff]
      %v282 = vld [vmem:[%s250 + $0x8] sm:$0xff]
      %v283 = vld [vmem:[%s250 + $0x10] sm:$0xff]
      %v284 = vld [vmem:[%s250 + $0x18] sm:$0xff]
      %v285 = vld [vmem:[%s250 + $0x20] sm:$0xff]
      %v286 = vld [vmem:[%s250 + $0x28] sm:$0xff]
      %v287 = vld [vmem:[%s250 + $0x30] sm:$0xff]
      %v288 = vld [vmem:[%s250 + $0x38] sm:$0xff]
      %v289 = vld [vmem:[%s250 + $0x40] sm:$0xff]
      %v290 = vld [vmem:[%s250 + $0x48] sm:$0xff]
      %v291 = vld [vmem:[%s250 + $0x50] sm:$0xff]
      %v292 = vld [vmem:[%s250 + $0x58] sm:$0xff]
      %v293 = vld [vmem:[%s250 + $0x60] sm:$0xff]
      %v294 = vld [vmem:[%s250 + $0x68] sm:$0xff]
      %v295 = vld [vmem:[%s250 + $0x70] sm:$0xff]
      %v296 = vld [vmem:[%s250 + $0x78] sm:$0xff]
      %v297 = vld [vmem:[%s250 + $0x80] sm:$0xff]
      %v298 = vld [vmem:[%s250 + $0x88] sm:$0xff]
      %v299 = vld [vmem:[%s250 + $0x90] sm:$0xff]
      %v300 = vld [vmem:[%s250 + $0x98] sm:$0xff]
      %v301 = vld [vmem:[%s250 + $0xa0] sm:$0xff]
      %v302 = vld [vmem:[%s250 + $0xa8] sm:$0xff]
      %v303 = vld [vmem:[%s250 + $0xb0] sm:$0xff]
      %v304 = vld [vmem:[%s250 + $0xb8] sm:$0xff]
      %v329 = vunpack.c.l.b16 %v281
      %v330 = vunpack.c.h.b16 %v281
      %v331 = vunpack.c.l.b16 %v282
      %v332 = vunpack.c.h.b16 %v282
      %v333 = vunpack.c.l.b16 %v283
      %v334 = vunpack.c.h.b16 %v283
      %v335 = vunpack.c.l.b16 %v284
      %v336 = vunpack.c.h.b16 %v284
      %v337 = vunpack.c.l.b16 %v285
      %v338 = vunpack.c.h.b16 %v285
      %v339 = vunpack.c.l.b16 %v286
      %v340 = vunpack.c.h.b16 %v286
      %v341 = vunpack.c.l.b16 %v287
      %v342 = vunpack.c.h.b16 %v287
      %v343 = vunpack.c.l.b16 %v288
      %v344 = vunpack.c.h.b16 %v288
      %v345 = vunpack.c.l.b16 %v289
      %v346 = vunpack.c.h.b16 %v289
      %v347 = vunpack.c.l.b16 %v290
      %v348 = vunpack.c.h.b16 %v290
      %v349 = vunpack.c.l.b16 %v291
      %v350 = vunpack.c.h.b16 %v291
      %v351 = vunpack.c.l.b16 %v292
      %v352 = vunpack.c.h.b16 %v292
      %v353 = vunpack.c.l.b16 %v293
      %v354 = vunpack.c.h.b16 %v293
      %v355 = vunpack.c.l.b16 %v294
      %v356 = vunpack.c.h.b16 %v294
      %v357 = vunpack.c.l.b16 %v295
      %v358 = vunpack.c.h.b16 %v295
      %v359 = vunpack.c.l.b16 %v296
      %v360 = vunpack.c.h.b16 %v296
      %v361 = vunpack.c.l.b16 %v297
      %v362 = vunpack.c.h.b16 %v297
      %v363 = vunpack.c.l.b16 %v298
      %v364 = vunpack.c.h.b16 %v298
      %v365 = vunpack.c.l.b16 %v299
      %v366 = vunpack.c.h.b16 %v299
      %v367 = vunpack.c.l.b16 %v300
      %v368 = vunpack.c.h.b16 %v300
      %v369 = vunpack.c.l.b16 %v301
      %v370 = vunpack.c.h.b16 %v301
      %v371 = vunpack.c.l.b16 %v302
      %v372 = vunpack.c.h.b16 %v302
      %v373 = vunpack.c.l.b16 %v303
      %v374 = vunpack.c.h.b16 %v303
      %v375 = vunpack.c.l.b16 %v304
      %v376 = vunpack.c.h.b16 %v304
      %v377 = vpack.c.b16 %v331, %v329
      %v378 = vpack.c.b16 %v332, %v330
      %v379 = vpack.c.b16 %v335, %v333
      %v380 = vpack.c.b16 %v336, %v334
      %v381 = vpack.c.b16 %v339, %v337
      %v382 = vpack.c.b16 %v340, %v338
      %v383 = vpack.c.b16 %v343, %v341
      %v384 = vpack.c.b16 %v344, %v342
      %v385 = vpack.c.b16 %v347, %v345
      %v386 = vpack.c.b16 %v348, %v346
      %v387 = vpack.c.b16 %v351, %v349
      %v388 = vpack.c.b16 %v352, %v350
      %v389 = vpack.c.b16 %v355, %v353
      %v390 = vpack.c.b16 %v356, %v354
      %v391 = vpack.c.b16 %v359, %v357
      %v392 = vpack.c.b16 %v360, %v358
      %v393 = vpack.c.b16 %v363, %v361
      %v394 = vpack.c.b16 %v364, %v362
      %v395 = vpack.c.b16 %v367, %v365
      %v396 = vpack.c.b16 %v368, %v366
      %v397 = vpack.c.b16 %v371, %v369
      %v398 = vpack.c.b16 %v372, %v370
      %v399 = vpack.c.b16 %v375, %v373
      %v400 = vpack.c.b16 %v376, %v374
      %v431 = vunpack.c.l.b16 %v263
      %v432 = vunpack.c.h.b16 %v263
      %v433 = vunpack.c.l.b16 %v264
      %v434 = vunpack.c.h.b16 %v264
      %v435 = vunpack.c.l.b16 %v265
      %v436 = vunpack.c.h.b16 %v265
      %v437 = vunpack.c.l.b16 %v266
      %v438 = vunpack.c.h.b16 %v266
      %v439 = vunpack.c.l.b16 %v267
      %v440 = vunpack.c.h.b16 %v267
      %v441 = vunpack.c.l.b16 %v268
      %v442 = vunpack.c.h.b16 %v268
      %v443 = vunpack.c.l.b16 %v269
      %v444 = vunpack.c.h.b16 %v269
      %v445 = vunpack.c.l.b16 %v270
      %v446 = vunpack.c.h.b16 %v270
      %v447 = vunpack.c.l.b16 %v271
      %v448 = vunpack.c.h.b16 %v271
      %v449 = vunpack.c.l.b16 %v272
      %v450 = vunpack.c.h.b16 %v272
      %v451 = vunpack.c.l.b16 %v273
      %v452 = vunpack.c.h.b16 %v273
      %v453 = vunpack.c.l.b16 %v274
      %v454 = vunpack.c.h.b16 %v274
      %v455 = vunpack.c.l.b16 %v275
      %v456 = vunpack.c.h.b16 %v275
      %v457 = vunpack.c.l.b16 %v276
      %v458 = vunpack.c.h.b16 %v276
      %v459 = vunpack.c.l.b16 %v277
      %v460 = vunpack.c.h.b16 %v277
      %v461 = vunpack.c.l.b16 %v278
      %v462 = vunpack.c.h.b16 %v278
      %v463 = vunpack.c.l.b16 %v279
      %v464 = vunpack.c.h.b16 %v279
      %v465 = vunpack.c.l.b16 %v280
      %v466 = vunpack.c.h.b16 %v280
      %v467 = vpack.c.b16 %v433, %v431
      %v468 = vpack.c.b16 %v434, %v432
      %v469 = vpack.c.b16 %v437, %v435
      %v470 = vpack.c.b16 %v438, %v436
      %v471 = vpack.c.b16 %v441, %v439
      %v472 = vpack.c.b16 %v442, %v440
      %v473 = vpack.c.b16 %v445, %v443
      %v474 = vpack.c.b16 %v446, %v444
      %v475 = vpack.c.b16 %v449, %v447
      %v476 = vpack.c.b16 %v450, %v448
      %v477 = vpack.c.b16 %v453, %v451
      %v478 = vpack.c.b16 %v454, %v452
      %v479 = vpack.c.b16 %v457, %v455
      %v480 = vpack.c.b16 %v458, %v456
      %v481 = vpack.c.b16 %v461, %v459
      %v482 = vpack.c.b16 %v462, %v460
      %v483 = vpack.c.b16 %v465, %v463
      %v484 = vpack.c.b16 %v466, %v464
      %vm501 = vcmask 97280
      %v503 = vsel %vm501, %v378, 0
      %v506 = vsel %vm501, %v380, 0
      %v509 = vsel %vm501, %v382, 0
      %v512 = vsel %vm501, %v384, 0
      %v515 = vsel %vm501, %v386, 0
      %v518 = vsel %vm501, %v388, 0
      %v521 = vsel %vm501, %v390, 0
      %v524 = vsel %vm501, %v392, 0
      %v527 = vsel %vm501, %v394, 0
      %v530 = vsel %vm501, %v396, 0
      %v533 = vsel %vm501, %v398, 0
      %v536 = vsel %vm501, %v400, 0
      %vm538 = vcmask 1045504
      %v540 = vsel %vm538, %v483, 0
      %v543 = vsel %vm538, %v484, 0
      %545 = vmatprep.subr.bf16.mxu0 %v482
      %546 = vmatpush1.bf16.msra.mxu0 %v481
      %547 = vmatprep.subr.bf16.mxu0 %v480
      %548 = vmatpush1.bf16.msra.mxu0 %v479
      %549 = vmatprep.subr.bf16.mxu0 %v478
      %550 = vmatpush1.bf16.msra.mxu0 %v477
      %551 = vmatprep.subr.bf16.mxu0 %v476
      %552 = vmatpush1.bf16.msra.mxu0 %v475
      %553 = vmatprep.subr.bf16.mxu0 %v474
      %554 = vmatpush1.bf16.msra.mxu0 %v473
      %555 = vmatprep.subr.bf16.mxu0 %v472
      %556 = vmatpush1.bf16.msra.mxu0 %v471
      %557 = vmatprep.subr.bf16.mxu0 %v470
      %558 = vmatpush1.bf16.msra.mxu0 %v469
      %559 = vmatprep.subr.bf16.mxu0 %v468
      %560 = vmatpush1.bf16.msra.mxu0 %v467
      %561 = vmatprep.subr.bf16.mxu0 0
      %562 = vmatpush2.bf16.msra.mxu0 0
      %563 = vmatprep.subr.bf16.mxu0 0
      %564 = vmatpush2.bf16.msra.mxu0 0
      %565 = vmatprep.subr.bf16.mxu0 0
      %566 = vmatpush2.bf16.msra.mxu0 0
      %567 = vmatprep.subr.bf16.mxu0 0
      %568 = vmatpush2.bf16.msra.mxu0 0
      %569 = vmatprep.subr.bf16.mxu0 0
      %570 = vmatpush2.bf16.msra.mxu0 0
      %571 = vmatprep.subr.bf16.mxu0 0
      %572 = vmatpush2.bf16.msra.mxu0 0
      %573 = vmatprep.subr.bf16.mxu0 0
      %574 = vmatpush2.bf16.msra.mxu0 0
      %575 = vmatprep.subr.bf16.mxu0 %v543
      %576 = vmatpush2.bf16.msra.mxu0 %v540
      %577 = vmatprep.mubr.bf16.mxu0 %v503
      %578 = vmatmul.mubr.bf16.gmra.mxu0 %v377
      %v579 = vpop.f32.mrf.mxu0
      %v580 = vadd.f32 0.0, %v579
      %v581 = vpop.f32.mrf.mxu0
      %v582 = vadd.f32 0.0, %v581
      %v583 = vpop.f32.mrf.mxu0
      %v584 = vadd.f32 0.0, %v583
      %v585 = vpop.f32.mrf.mxu0
      %v586 = vadd.f32 0.0, %v585
      %587 = vmatprep.mubr.bf16.mxu0 %v506
      %588 = vmatmul.mubr.bf16.gmra.mxu0 %v379
      %v589 = vpop.f32.mrf.mxu0
      %v590 = vadd.f32 0.0, %v589
      %v591 = vpop.f32.mrf.mxu0
      %v592 = vadd.f32 0.0, %v591
      %v593 = vpop.f32.mrf.mxu0
      %v594 = vadd.f32 0.0, %v593
      %v595 = vpop.f32.mrf.mxu0
      %v596 = vadd.f32 0.0, %v595
      %597 = vmatprep.mubr.bf16.mxu0 %v509
      %598 = vmatmul.mubr.bf16.gmra.mxu0 %v381
      %v599 = vpop.f32.mrf.mxu0
      %v600 = vadd.f32 0.0, %v599
      %v601 = vpop.f32.mrf.mxu0
      %v602 = vadd.f32 0.0, %v601
      %v603 = vpop.f32.mrf.mxu0
      %v604 = vadd.f32 0.0, %v603
      %v605 = vpop.f32.mrf.mxu0
      %v606 = vadd.f32 0.0, %v605
      %607 = vmatprep.mubr.bf16.mxu0 %v512
      %608 = vmatmul.mubr.bf16.gmra.mxu0 %v383
      %v609 = vpop.f32.mrf.mxu0
      %v610 = vadd.f32 0.0, %v609
      %v611 = vpop.f32.mrf.mxu0
      %v612 = vadd.f32 0.0, %v611
      %v613 = vpop.f32.mrf.mxu0
      %v614 = vadd.f32 0.0, %v613
      %v615 = vpop.f32.mrf.mxu0
      %v616 = vadd.f32 0.0, %v615
      %617 = vmatprep.mubr.bf16.mxu0 %v515
      %618 = vmatmul.mubr.bf16.gmra.mxu0 %v385
      %v619 = vpop.f32.mrf.mxu0
      %v620 = vadd.f32 0.0, %v619
      %v621 = vpop.f32.mrf.mxu0
      %v622 = vadd.f32 0.0, %v621
      %v623 = vpop.f32.mrf.mxu0
      %v624 = vadd.f32 0.0, %v623
      %v625 = vpop.f32.mrf.mxu0
      %v626 = vadd.f32 0.0, %v625
      %627 = vmatprep.mubr.bf16.mxu0 %v518
      %628 = vmatmul.mubr.bf16.gmra.mxu0 %v387
      %v629 = vpop.f32.mrf.mxu0
      %v630 = vadd.f32 0.0, %v629
      %v631 = vpop.f32.mrf.mxu0
      %v632 = vadd.f32 0.0, %v631
      %v633 = vpop.f32.mrf.mxu0
      %v634 = vadd.f32 0.0, %v633
      %v635 = vpop.f32.mrf.mxu0
      %v636 = vadd.f32 0.0, %v635
      %637 = vmatprep.mubr.bf16.mxu0 %v521
      %638 = vmatmul.mubr.bf16.gmra.mxu0 %v389
      %v639 = vpop.f32.mrf.mxu0
      %v640 = vadd.f32 0.0, %v639
      %v641 = vpop.f32.mrf.mxu0
      %v642 = vadd.f32 0.0, %v641
      %v643 = vpop.f32.mrf.mxu0
      %v644 = vadd.f32 0.0, %v643
      %v645 = vpop.f32.mrf.mxu0
      %v646 = vadd.f32 0.0, %v645
      %647 = vmatprep.mubr.bf16.mxu0 %v524
      %648 = vmatmul.mubr.bf16.gmra.mxu0 %v391
      %v649 = vpop.f32.mrf.mxu0
      %v650 = vadd.f32 0.0, %v649
      %v651 = vpop.f32.mrf.mxu0
      %v652 = vadd.f32 0.0, %v651
      %v653 = vpop.f32.mrf.mxu0
      %v654 = vadd.f32 0.0, %v653
      %v655 = vpop.f32.mrf.mxu0
      %v656 = vadd.f32 0.0, %v655
      %657 = vmatprep.mubr.bf16.mxu0 %v527
      %658 = vmatmul.mubr.bf16.gmra.mxu0 %v393
      %v659 = vpop.f32.mrf.mxu0
      %v660 = vadd.f32 0.0, %v659
      %v661 = vpop.f32.mrf.mxu0
      %v662 = vadd.f32 0.0, %v661
      %v663 = vpop.f32.mrf.mxu0
      %v664 = vadd.f32 0.0, %v663
      %v665 = vpop.f32.mrf.mxu0
      %v666 = vadd.f32 0.0, %v665
      %667 = vmatprep.mubr.bf16.mxu0 %v530
      %668 = vmatmul.mubr.bf16.gmra.mxu0 %v395
      %v669 = vpop.f32.mrf.mxu0
      %v670 = vadd.f32 0.0, %v669
      %v671 = vpop.f32.mrf.mxu0
      %v672 = vadd.f32 0.0, %v671
      %v673 = vpop.f32.mrf.mxu0
      %v674 = vadd.f32 0.0, %v673
      %v675 = vpop.f32.mrf.mxu0
      %v676 = vadd.f32 0.0, %v675
      %677 = vmatprep.mubr.bf16.mxu0 %v533
      %678 = vmatmul.mubr.bf16.gmra.mxu0 %v397
      %v679 = vpop.f32.mrf.mxu0
      %v680 = vadd.f32 0.0, %v679
      %v681 = vpop.f32.mrf.mxu0
      %v682 = vadd.f32 0.0, %v681
      %v683 = vpop.f32.mrf.mxu0
      %v684 = vadd.f32 0.0, %v683
      %v685 = vpop.f32.mrf.mxu0
      %v686 = vadd.f32 0.0, %v685
      %687 = vmatprep.mubr.bf16.mxu0 %v536
      %688 = vmatmul.mubr.bf16.gmra.mxu0 %v399
      %v689 = vpop.f32.mrf.mxu0
      %v690 = vadd.f32 0.0, %v689
      %v691 = vpop.f32.mrf.mxu0
      %v692 = vadd.f32 0.0, %v691
      %v693 = vpop.f32.mrf.mxu0
      %v694 = vadd.f32 0.0, %v693
      %v695 = vpop.f32.mrf.mxu0
      %v696 = vadd.f32 0.0, %v695
      %697 = vdwg.mxu0
      %s698 = scalar_lea.vmem %s250, 192
      %v699 = vld [vmem:[%s698] sm:$0xff]
      %v700 = vld [vmem:[%s698 + $0x8] sm:$0xff]
      %v701 = vld [vmem:[%s698 + $0x10] sm:$0xff]
      %v702 = vld [vmem:[%s698 + $0x18] sm:$0xff]
      %v703 = vld [vmem:[%s698 + $0x20] sm:$0xff]
      %v704 = vld [vmem:[%s698 + $0x28] sm:$0xff]
      %v705 = vld [vmem:[%s698 + $0x30] sm:$0xff]
      %v706 = vld [vmem:[%s698 + $0x38] sm:$0xff]
      %v707 = vld [vmem:[%s698 + $0x40] sm:$0xff]
      %v708 = vld [vmem:[%s698 + $0x48] sm:$0xff]
      %v709 = vld [vmem:[%s698 + $0x50] sm:$0xff]
      %v710 = vld [vmem:[%s698 + $0x58] sm:$0xff]
      %v711 = vld [vmem:[%s698 + $0x60] sm:$0xff]
      %v712 = vld [vmem:[%s698 + $0x68] sm:$0xff]
      %v713 = vld [vmem:[%s698 + $0x70] sm:$0xff]
      %v714 = vld [vmem:[%s698 + $0x78] sm:$0xff]
      %v715 = vld [vmem:[%s698 + $0x80] sm:$0xff]
      %v716 = vld [vmem:[%s698 + $0x88] sm:$0xff]
      %v717 = vld [vmem:[%s698 + $0x90] sm:$0xff]
      %v718 = vld [vmem:[%s698 + $0x98] sm:$0xff]
      %v719 = vld [vmem:[%s698 + $0xa0] sm:$0xff]
      %v720 = vld [vmem:[%s698 + $0xa8] sm:$0xff]
      %v721 = vld [vmem:[%s698 + $0xb0] sm:$0xff]
      %v722 = vld [vmem:[%s698 + $0xb8] sm:$0xff]
      %v747 = vunpack.c.l.b16 %v699
      %v748 = vunpack.c.h.b16 %v699
      %v749 = vunpack.c.l.b16 %v700
      %v750 = vunpack.c.h.b16 %v700
      %v751 = vunpack.c.l.b16 %v701
      %v752 = vunpack.c.h.b16 %v701
      %v753 = vunpack.c.l.b16 %v702
      %v754 = vunpack.c.h.b16 %v702
      %v755 = vunpack.c.l.b16 %v703
      %v756 = vunpack.c.h.b16 %v703
      %v757 = vunpack.c.l.b16 %v704
      %v758 = vunpack.c.h.b16 %v704
      %v759 = vunpack.c.l.b16 %v705
      %v760 = vunpack.c.h.b16 %v705
      %v761 = vunpack.c.l.b16 %v706
      %v762 = vunpack.c.h.b16 %v706
      %v763 = vunpack.c.l.b16 %v707
      %v764 = vunpack.c.h.b16 %v707
      %v765 = vunpack.c.l.b16 %v708
      %v766 = vunpack.c.h.b16 %v708
      %v767 = vunpack.c.l.b16 %v709
      %v768 = vunpack.c.h.b16 %v709
      %v769 = vunpack.c.l.b16 %v710
      %v770 = vunpack.c.h.b16 %v710
      %v771 = vunpack.c.l.b16 %v711
      %v772 = vunpack.c.h.b16 %v711
      %v773 = vunpack.c.l.b16 %v712
      %v774 = vunpack.c.h.b16 %v712
      %v775 = vunpack.c.l.b16 %v713
      %v776 = vunpack.c.h.b16 %v713
      %v777 = vunpack.c.l.b16 %v714
      %v778 = vunpack.c.h.b16 %v714
      %v779 = vunpack.c.l.b16 %v715
      %v780 = vunpack.c.h.b16 %v715
      %v781 = vunpack.c.l.b16 %v716
      %v782 = vunpack.c.h.b16 %v716
      %v783 = vunpack.c.l.b16 %v717
      %v784 = vunpack.c.h.b16 %v717
      %v785 = vunpack.c.l.b16 %v718
      %v786 = vunpack.c.h.b16 %v718
      %v787 = vunpack.c.l.b16 %v719
      %v788 = vunpack.c.h.b16 %v719
      %v789 = vunpack.c.l.b16 %v720
      %v790 = vunpack.c.h.b16 %v720
      %v791 = vunpack.c.l.b16 %v721
      %v792 = vunpack.c.h.b16 %v721
      %v793 = vunpack.c.l.b16 %v722
      %v794 = vunpack.c.h.b16 %v722
      %v795 = vpack.c.b16 %v749, %v747
      %v796 = vpack.c.b16 %v750, %v748
      %v797 = vpack.c.b16 %v753, %v751
      %v798 = vpack.c.b16 %v754, %v752
      %v799 = vpack.c.b16 %v757, %v755
      %v800 = vpack.c.b16 %v758, %v756
      %v801 = vpack.c.b16 %v761, %v759
      %v802 = vpack.c.b16 %v762, %v760
      %v803 = vpack.c.b16 %v765, %v763
      %v804 = vpack.c.b16 %v766, %v764
      %v805 = vpack.c.b16 %v769, %v767
      %v806 = vpack.c.b16 %v770, %v768
      %v807 = vpack.c.b16 %v773, %v771
      %v808 = vpack.c.b16 %v774, %v772
      %v809 = vpack.c.b16 %v777, %v775
      %v810 = vpack.c.b16 %v778, %v776
      %v811 = vpack.c.b16 %v781, %v779
      %v812 = vpack.c.b16 %v782, %v780
      %v813 = vpack.c.b16 %v785, %v783
      %v814 = vpack.c.b16 %v786, %v784
      %v815 = vpack.c.b16 %v789, %v787
      %v816 = vpack.c.b16 %v790, %v788
      %v817 = vpack.c.b16 %v793, %v791
      %v818 = vpack.c.b16 %v794, %v792
      %v832 = vsel %vm501, %v796, 0
      %v835 = vsel %vm501, %v798, 0
      %v838 = vsel %vm501, %v800, 0
      %v841 = vsel %vm501, %v802, 0
      %v844 = vsel %vm501, %v804, 0
      %v847 = vsel %vm501, %v806, 0
      %v850 = vsel %vm501, %v808, 0
      %v853 = vsel %vm501, %v810, 0
      %v856 = vsel %vm501, %v812, 0
      %v859 = vsel %vm501, %v814, 0
      %v862 = vsel %vm501, %v816, 0
      %v865 = vsel %vm501, %v818, 0
      %867 = vmatprep.subr.bf16.mxu0 %v482
      %868 = vmatpush1.bf16.msra.mxu0 %v481
      %869 = vmatprep.subr.bf16.mxu0 %v480
      %870 = vmatpush1.bf16.msra.mxu0 %v479
      %871 = vmatprep.subr.bf16.mxu0 %v478
      %872 = vmatpush1.bf16.msra.mxu0 %v477
      %873 = vmatprep.subr.bf16.mxu0 %v476
      %874 = vmatpush1.bf16.msra.mxu0 %v475
      %875 = vmatprep.subr.bf16.mxu0 %v474
      %876 = vmatpush1.bf16.msra.mxu0 %v473
      %877 = vmatprep.subr.bf16.mxu0 %v472
      %878 = vmatpush1.bf16.msra.mxu0 %v471
      %879 = vmatprep.subr.bf16.mxu0 %v470
      %880 = vmatpush1.bf16.msra.mxu0 %v469
      %881 = vmatprep.subr.bf16.mxu0 %v468
      %882 = vmatpush1.bf16.msra.mxu0 %v467
      %883 = vmatprep.subr.bf16.mxu0 0
      %884 = vmatpush2.bf16.msra.mxu0 0
      %885 = vmatprep.subr.bf16.mxu0 0
      %886 = vmatpush2.bf16.msra.mxu0 0
      %887 = vmatprep.subr.bf16.mxu0 0
      %888 = vmatpush2.bf16.msra.mxu0 0
      %889 = vmatprep.subr.bf16.mxu0 0
      %890 = vmatpush2.bf16.msra.mxu0 0
      %891 = vmatprep.subr.bf16.mxu0 0
      %892 = vmatpush2.bf16.msra.mxu0 0
      %893 = vmatprep.subr.bf16.mxu0 0
      %894 = vmatpush2.bf16.msra.mxu0 0
      %895 = vmatprep.subr.bf16.mxu0 0
      %896 = vmatpush2.bf16.msra.mxu0 0
      %897 = vmatprep.subr.bf16.mxu0 %v543
      %898 = vmatpush2.bf16.msra.mxu0 %v540
      %899 = vmatprep.mubr.bf16.mxu0 %v832
      %900 = vmatmul.mubr.bf16.gmra.mxu0 %v795
      %v901 = vpop.f32.mrf.mxu0
      %v902 = vadd.f32 0.0, %v901
      %v903 = vpop.f32.mrf.mxu0
      %v904 = vadd.f32 0.0, %v903
      %v905 = vpop.f32.mrf.mxu0
      %v906 = vadd.f32 0.0, %v905
      %v907 = vpop.f32.mrf.mxu0
      %v908 = vadd.f32 0.0, %v907
      %909 = vmatprep.mubr.bf16.mxu0 %v835
      %910 = vmatmul.mubr.bf16.gmra.mxu0 %v797
      %v911 = vpop.f32.mrf.mxu0
      %v912 = vadd.f32 0.0, %v911
      %v913 = vpop.f32.mrf.mxu0
      %v914 = vadd.f32 0.0, %v913
      %v915 = vpop.f32.mrf.mxu0
      %v916 = vadd.f32 0.0, %v915
      %v917 = vpop.f32.mrf.mxu0
      %v918 = vadd.f32 0.0, %v917
      %919 = vmatprep.mubr.bf16.mxu0 %v838
      %920 = vmatmul.mubr.bf16.gmra.mxu0 %v799
      %v921 = vpop.f32.mrf.mxu0
      %v922 = vadd.f32 0.0, %v921
      %v923 = vpop.f32.mrf.mxu0
      %v924 = vadd.f32 0.0, %v923
      %v925 = vpop.f32.mrf.mxu0
      %v926 = vadd.f32 0.0, %v925
      %v927 = vpop.f32.mrf.mxu0
      %v928 = vadd.f32 0.0, %v927
      %929 = vmatprep.mubr.bf16.mxu0 %v841
      %930 = vmatmul.mubr.bf16.gmra.mxu0 %v801
      %v931 = vpop.f32.mrf.mxu0
      %v932 = vadd.f32 0.0, %v931
      %v933 = vpop.f32.mrf.mxu0
      %v934 = vadd.f32 0.0, %v933
      %v935 = vpop.f32.mrf.mxu0
      %v936 = vadd.f32 0.0, %v935
      %v937 = vpop.f32.mrf.mxu0
      %v938 = vadd.f32 0.0, %v937
      %939 = vmatprep.mubr.bf16.mxu0 %v844
      %940 = vmatmul.mubr.bf16.gmra.mxu0 %v803
      %v941 = vpop.f32.mrf.mxu0
      %v942 = vadd.f32 0.0, %v941
      %v943 = vpop.f32.mrf.mxu0
      %v944 = vadd.f32 0.0, %v943
      %v945 = vpop.f32.mrf.mxu0
      %v946 = vadd.f32 0.0, %v945
      %v947 = vpop.f32.mrf.mxu0
      %v948 = vadd.f32 0.0, %v947
      %949 = vmatprep.mubr.bf16.mxu0 %v847
      %950 = vmatmul.mubr.bf16.gmra.mxu0 %v805
      %v951 = vpop.f32.mrf.mxu0
      %v952 = vadd.f32 0.0, %v951
      %v953 = vpop.f32.mrf.mxu0
      %v954 = vadd.f32 0.0, %v953
      %v955 = vpop.f32.mrf.mxu0
      %v956 = vadd.f32 0.0, %v955
      %v957 = vpop.f32.mrf.mxu0
      %v958 = vadd.f32 0.0, %v957
      %959 = vmatprep.mubr.bf16.mxu0 %v850
      %960 = vmatmul.mubr.bf16.gmra.mxu0 %v807
      %v961 = vpop.f32.mrf.mxu0
      %v962 = vadd.f32 0.0, %v961
      %v963 = vpop.f32.mrf.mxu0
      %v964 = vadd.f32 0.0, %v963
      %v965 = vpop.f32.mrf.mxu0
      %v966 = vadd.f32 0.0, %v965
      %v967 = vpop.f32.mrf.mxu0
      %v968 = vadd.f32 0.0, %v967
      %969 = vmatprep.mubr.bf16.mxu0 %v853
      %970 = vmatmul.mubr.bf16.gmra.mxu0 %v809
      %v971 = vpop.f32.mrf.mxu0
      %v972 = vadd.f32 0.0, %v971
      %v973 = vpop.f32.mrf.mxu0
      %v974 = vadd.f32 0.0, %v973
      %v975 = vpop.f32.mrf.mxu0
      %v976 = vadd.f32 0.0, %v975
      %v977 = vpop.f32.mrf.mxu0
      %v978 = vadd.f32 0.0, %v977
      %979 = vmatprep.mubr.bf16.mxu0 %v856
      %980 = vmatmul.mubr.bf16.gmra.mxu0 %v811
      %v981 = vpop.f32.mrf.mxu0
      %v982 = vadd.f32 0.0, %v981
      %v983 = vpop.f32.mrf.mxu0
      %v984 = vadd.f32 0.0, %v983
      %v985 = vpop.f32.mrf.mxu0
      %v986 = vadd.f32 0.0, %v985
      %v987 = vpop.f32.mrf.mxu0
      %v988 = vadd.f32 0.0, %v987
      %989 = vmatprep.mubr.bf16.mxu0 %v859
      %990 = vmatmul.mubr.bf16.gmra.mxu0 %v813
      %v991 = vpop.f32.mrf.mxu0
      %v992 = vadd.f32 0.0, %v991
      %v993 = vpop.f32.mrf.mxu0
      %v994 = vadd.f32 0.0, %v993
      %v995 = vpop.f32.mrf.mxu0
      %v996 = vadd.f32 0.0, %v995
      %v997 = vpop.f32.mrf.mxu0
      %v998 = vadd.f32 0.0, %v997
      %999 = vmatprep.mubr.bf16.mxu0 %v862
      %1000 = vmatmul.mubr.bf16.gmra.mxu0 %v815
      %v1001 = vpop.f32.mrf.mxu0
      %v1002 = vadd.f32 0.0, %v1001
      %v1003 = vpop.f32.mrf.mxu0
      %v1004 = vadd.f32 0.0, %v1003
      %v1005 = vpop.f32.mrf.mxu0
      %v1006 = vadd.f32 0.0, %v1005
      %v1007 = vpop.f32.mrf.mxu0
      %v1008 = vadd.f32 0.0, %v1007
      %1009 = vmatprep.mubr.bf16.mxu0 %v865
      %1010 = vmatmul.mubr.bf16.gmra.mxu0 %v817
      %v1011 = vpop.f32.mrf.mxu0
      %v1012 = vadd.f32 0.0, %v1011
      %v1013 = vpop.f32.mrf.mxu0
      %v1014 = vadd.f32 0.0, %v1013
      %v1015 = vpop.f32.mrf.mxu0
      %v1016 = vadd.f32 0.0, %v1015
      %v1017 = vpop.f32.mrf.mxu0
      %v1018 = vadd.f32 0.0, %v1017
      %1019 = vdwg.mxu0
      %v1020 = vmax.f32 %v580, %v902
      %v1021 = vmax.f32 %v582, %v904
      %v1022 = vmax.f32 %v584, %v906
      %v1023 = vmax.f32 %v586, %v908
      %v1024 = vmax.f32 %v590, %v912
      %v1025 = vmax.f32 %v592, %v914
      %v1026 = vmax.f32 %v594, %v916
      %v1027 = vmax.f32 %v596, %v918
      %v1028 = vmax.f32 %v600, %v922
      %v1029 = vmax.f32 %v602, %v924
      %v1030 = vmax.f32 %v604, %v926
      %v1031 = vmax.f32 %v606, %v928
      %v1032 = vmax.f32 %v610, %v932
      %v1033 = vmax.f32 %v612, %v934
      %v1034 = vmax.f32 %v614, %v936
      %v1035 = vmax.f32 %v616, %v938
      %v1036 = vmax.f32 %v620, %v942
      %v1037 = vmax.f32 %v622, %v944
      %v1038 = vmax.f32 %v624, %v946
      %v1039 = vmax.f32 %v626, %v948
      %v1040 = vmax.f32 %v630, %v952
      %v1041 = vmax.f32 %v632, %v954
      %v1042 = vmax.f32 %v634, %v956
      %v1043 = vmax.f32 %v636, %v958
      %v1044 = vmax.f32 %v640, %v962
      %v1045 = vmax.f32 %v642, %v964
      %v1046 = vmax.f32 %v644, %v966
      %v1047 = vmax.f32 %v646, %v968
      %v1048 = vmax.f32 %v650, %v972
      %v1049 = vmax.f32 %v652, %v974
      %v1050 = vmax.f32 %v654, %v976
      %v1051 = vmax.f32 %v656, %v978
      %v1052 = vmax.f32 %v660, %v982
      %v1053 = vmax.f32 %v662, %v984
      %v1054 = vmax.f32 %v664, %v986
      %v1055 = vmax.f32 %v666, %v988
      %v1056 = vmax.f32 %v670, %v992
      %v1057 = vmax.f32 %v672, %v994
      %v1058 = vmax.f32 %v674, %v996
      %v1059 = vmax.f32 %v676, %v998
      %v1060 = vmax.f32 %v680, %v1002
      %v1061 = vmax.f32 %v682, %v1004
      %v1062 = vmax.f32 %v684, %v1006
      %v1063 = vmax.f32 %v686, %v1008
      %v1064 = vmax.f32 %v690, %v1012
      %v1065 = vmax.f32 %v692, %v1014
      %v1066 = vmax.f32 %v694, %v1016
      %v1067 = vmax.f32 %v696, %v1018
      %1116 = vrot.lane.b32.xlu0 %v1020, 8
      %v1117 = vpop.permute.xlu0 %1116
      %1118 = vrot.lane.b32.xlu0 %v1021, 8
      %v1119 = vpop.permute.xlu0 %1118
      %1120 = vrot.lane.b32.xlu0 %v1022, 8
      %v1121 = vpop.permute.xlu0 %1120
      %1122 = vrot.lane.b32.xlu0 %v1023, 8
      %v1123 = vpop.permute.xlu0 %1122
      %1124 = vrot.lane.b32.xlu0 %v1024, 8
      %v1125 = vpop.permute.xlu0 %1124
      %1126 = vrot.lane.b32.xlu0 %v1025, 8
      %v1127 = vpop.permute.xlu0 %1126
      %1128 = vrot.lane.b32.xlu0 %v1026, 8
      %v1129 = vpop.permute.xlu0 %1128
      %1130 = vrot.lane.b32.xlu0 %v1027, 8
      %v1131 = vpop.permute.xlu0 %1130
      %1132 = vrot.lane.b32.xlu0 %v1028, 8
      %v1133 = vpop.permute.xlu0 %1132
      %1134 = vrot.lane.b32.xlu0 %v1029, 8
      %v1135 = vpop.permute.xlu0 %1134
      %1136 = vrot.lane.b32.xlu0 %v1030, 8
      %v1137 = vpop.permute.xlu0 %1136
      %1138 = vrot.lane.b32.xlu0 %v1031, 8
      %v1139 = vpop.permute.xlu0 %1138
      %1140 = vrot.lane.b32.xlu0 %v1032, 8
      %v1141 = vpop.permute.xlu0 %1140
      %1142 = vrot.lane.b32.xlu0 %v1033, 8
      %v1143 = vpop.permute.xlu0 %1142
      %1144 = vrot.lane.b32.xlu0 %v1034, 8
      %v1145 = vpop.permute.xlu0 %1144
      %1146 = vrot.lane.b32.xlu0 %v1035, 8
      %v1147 = vpop.permute.xlu0 %1146
      %1148 = vrot.lane.b32.xlu0 %v1036, 8
      %v1149 = vpop.permute.xlu0 %1148
      %1150 = vrot.lane.b32.xlu0 %v1037, 8
      %v1151 = vpop.permute.xlu0 %1150
      %1152 = vrot.lane.b32.xlu0 %v1038, 8
      %v1153 = vpop.permute.xlu0 %1152
      %1154 = vrot.lane.b32.xlu0 %v1039, 8
      %v1155 = vpop.permute.xlu0 %1154
      %1156 = vrot.lane.b32.xlu0 %v1040, 8
      %v1157 = vpop.permute.xlu0 %1156
      %1158 = vrot.lane.b32.xlu0 %v1041, 8
      %v1159 = vpop.permute.xlu0 %1158
      %1160 = vrot.lane.b32.xlu0 %v1042, 8
      %v1161 = vpop.permute.xlu0 %1160
      %1162 = vrot.lane.b32.xlu0 %v1043, 8
      %v1163 = vpop.permute.xlu0 %1162
      %1164 = vrot.lane.b32.xlu0 %v1044, 8
      %v1165 = vpop.permute.xlu0 %1164
      %1166 = vrot.lane.b32.xlu0 %v1045, 8
      %v1167 = vpop.permute.xlu0 %1166
      %1168 = vrot.lane.b32.xlu0 %v1046, 8
      %v1169 = vpop.permute.xlu0 %1168
      %1170 = vrot.lane.b32.xlu0 %v1047, 8
      %v1171 = vpop.permute.xlu0 %1170
      %1172 = vrot.lane.b32.xlu0 %v1048, 8
      %v1173 = vpop.permute.xlu0 %1172
      %1174 = vrot.lane.b32.xlu0 %v1049, 8
      %v1175 = vpop.permute.xlu0 %1174
      %1176 = vrot.lane.b32.xlu0 %v1050, 8
      %v1177 = vpop.permute.xlu0 %1176
      %1178 = vrot.lane.b32.xlu0 %v1051, 8
      %v1179 = vpop.permute.xlu0 %1178
      %1180 = vrot.lane.b32.xlu0 %v1052, 8
      %v1181 = vpop.permute.xlu0 %1180
      %1182 = vrot.lane.b32.xlu0 %v1053, 8
      %v1183 = vpop.permute.xlu0 %1182
      %1184 = vrot.lane.b32.xlu0 %v1054, 8
      %v1185 = vpop.permute.xlu0 %1184
      %1186 = vrot.lane.b32.xlu0 %v1055, 8
      %v1187 = vpop.permute.xlu0 %1186
      %1188 = vrot.lane.b32.xlu0 %v1056, 8
      %v1189 = vpop.permute.xlu0 %1188
      %1190 = vrot.lane.b32.xlu0 %v1057, 8
      %v1191 = vpop.permute.xlu0 %1190
      %1192 = vrot.lane.b32.xlu0 %v1058, 8
      %v1193 = vpop.permute.xlu0 %1192
      %1194 = vrot.lane.b32.xlu0 %v1059, 8
      %v1195 = vpop.permute.xlu0 %1194
      %1196 = vrot.lane.b32.xlu0 %v1060, 8
      %v1197 = vpop.permute.xlu0 %1196
      %1198 = vrot.lane.b32.xlu0 %v1061, 8
      %v1199 = vpop.permute.xlu0 %1198
      %1200 = vrot.lane.b32.xlu0 %v1062, 8
      %v1201 = vpop.permute.xlu0 %1200
      %1202 = vrot.lane.b32.xlu0 %v1063, 8
      %v1203 = vpop.permute.xlu0 %1202
      %1204 = vrot.lane.b32.xlu0 %v1064, 8
      %v1205 = vpop.permute.xlu0 %1204
      %1206 = vrot.lane.b32.xlu0 %v1065, 8
      %v1207 = vpop.permute.xlu0 %1206
      %1208 = vrot.lane.b32.xlu0 %v1066, 8
      %v1209 = vpop.permute.xlu0 %1208
      %1210 = vrot.lane.b32.xlu0 %v1067, 8
      %v1211 = vpop.permute.xlu0 %1210
      %vm1212 = vcmask 64512
      %v1213 = vsel %vm1212, %v1117, %v1119
      %v1214 = vsel %vm1212, %v1121, %v1123
      %v1215 = vsel %vm1212, %v1125, %v1127
      %v1216 = vsel %vm1212, %v1129, %v1131
      %v1217 = vsel %vm1212, %v1133, %v1135
      %v1218 = vsel %vm1212, %v1137, %v1139
      %v1219 = vsel %vm1212, %v1141, %v1143
      %v1220 = vsel %vm1212, %v1145, %v1147
      %v1221 = vsel %vm1212, %v1149, %v1151
      %v1222 = vsel %vm1212, %v1153, %v1155
      %v1223 = vsel %vm1212, %v1157, %v1159
      %v1224 = vsel %vm1212, %v1161, %v1163
      %v1225 = vsel %vm1212, %v1165, %v1167
      %v1226 = vsel %vm1212, %v1169, %v1171
      %v1227 = vsel %vm1212, %v1173, %v1175
      %v1228 = vsel %vm1212, %v1177, %v1179
      %v1229 = vsel %vm1212, %v1181, %v1183
      %v1230 = vsel %vm1212, %v1185, %v1187
      %v1231 = vsel %vm1212, %v1189, %v1191
      %v1232 = vsel %vm1212, %v1193, %v1195
      %v1233 = vsel %vm1212, %v1197, %v1199
      %v1234 = vsel %vm1212, %v1201, %v1203
      %v1235 = vsel %vm1212, %v1205, %v1207
      %v1236 = vsel %vm1212, %v1209, %v1211
      %v1261 = vmax.f32 %v1020, %v1213
      %v1262 = vmax.f32 %v1022, %v1214
      %v1263 = vmax.f32 %v1024, %v1215
      %v1264 = vmax.f32 %v1026, %v1216
      %v1265 = vmax.f32 %v1028, %v1217
      %v1266 = vmax.f32 %v1030, %v1218
      %v1267 = vmax.f32 %v1032, %v1219
      %v1268 = vmax.f32 %v1034, %v1220
      %v1269 = vmax.f32 %v1036, %v1221
      %v1270 = vmax.f32 %v1038, %v1222
      %v1271 = vmax.f32 %v1040, %v1223
      %v1272 = vmax.f32 %v1042, %v1224
      %v1273 = vmax.f32 %v1044, %v1225
      %v1274 = vmax.f32 %v1046, %v1226
      %v1275 = vmax.f32 %v1048, %v1227
      %v1276 = vmax.f32 %v1050, %v1228
      %v1277 = vmax.f32 %v1052, %v1229
      %v1278 = vmax.f32 %v1054, %v1230
      %v1279 = vmax.f32 %v1056, %v1231
      %v1280 = vmax.f32 %v1058, %v1232
      %v1281 = vmax.f32 %v1060, %v1233
      %v1282 = vmax.f32 %v1062, %v1234
      %v1283 = vmax.f32 %v1064, %v1235
      %v1284 = vmax.f32 %v1066, %v1236
      %v1286 = vlaneseq
      %v1287 = vshrl.u32 %v1286, 7
      %v1288 = vsub.s32 0, %v1287
      %v1289 = vrot.slane %v259, %v1288
      %v1291 = vadd.f32 %v1261, %v1289
      %v1292 = vadd.f32 %v1262, %v1289
      %v1293 = vadd.f32 %v1263, %v1289
      %v1294 = vadd.f32 %v1264, %v1289
      %v1295 = vadd.f32 %v1265, %v1289
      %v1296 = vadd.f32 %v1266, %v1289
      %v1297 = vadd.f32 %v1267, %v1289
      %v1298 = vadd.f32 %v1268, %v1289
      %v1299 = vadd.f32 %v1269, %v1289
      %v1300 = vadd.f32 %v1270, %v1289
      %v1301 = vadd.f32 %v1271, %v1289
      %v1302 = vadd.f32 %v1272, %v1289
      %v1303 = vadd.f32 %v1273, %v1289
      %v1304 = vadd.f32 %v1274, %v1289
      %v1305 = vadd.f32 %v1275, %v1289
      %v1306 = vadd.f32 %v1276, %v1289
      %v1307 = vadd.f32 %v1277, %v1289
      %v1308 = vadd.f32 %v1278, %v1289
      %v1309 = vadd.f32 %v1279, %v1289
      %v1310 = vadd.f32 %v1280, %v1289
      %v1311 = vadd.f32 %v1281, %v1289
      %v1312 = vadd.f32 %v1282, %v1289
      %v1313 = vadd.f32 %v1283, %v1289
      %v1314 = vadd.f32 %v1284, %v1289
      %v1315 = vmax.f32 %v1291, 0.0
      %v1316 = vmax.f32 %v1292, 0.0
      %v1317 = vmax.f32 %v1293, 0.0
      %v1318 = vmax.f32 %v1294, 0.0
      %v1319 = vmax.f32 %v1295, 0.0
      %v1320 = vmax.f32 %v1296, 0.0
      %v1321 = vmax.f32 %v1297, 0.0
      %v1322 = vmax.f32 %v1298, 0.0
      %v1323 = vmax.f32 %v1299, 0.0
      %v1324 = vmax.f32 %v1300, 0.0
      %v1325 = vmax.f32 %v1301, 0.0
      %v1326 = vmax.f32 %v1302, 0.0
      %v1327 = vmax.f32 %v1303, 0.0
      %v1328 = vmax.f32 %v1304, 0.0
      %v1329 = vmax.f32 %v1305, 0.0
      %v1330 = vmax.f32 %v1306, 0.0
      %v1331 = vmax.f32 %v1307, 0.0
      %v1332 = vmax.f32 %v1308, 0.0
      %v1333 = vmax.f32 %v1309, 0.0
      %v1334 = vmax.f32 %v1310, 0.0
      %v1335 = vmax.f32 %v1311, 0.0
      %v1336 = vmax.f32 %v1312, 0.0
      %v1337 = vmax.f32 %v1313, 0.0
      %v1338 = vmax.f32 %v1314, 0.0
      %s1339 = scalar_lea.vmem %s250, 384
      %v1340 = vld [vmem:[%s1339] sm:$0xff]
      %v1341 = vld [vmem:[%s1339 + $0x8] sm:$0xff]
      %v1342 = vld [vmem:[%s1339 + $0x10] sm:$0xff]
      %v1343 = vld [vmem:[%s1339 + $0x18] sm:$0xff]
      %v1344 = vld [vmem:[%s1339 + $0x20] sm:$0xff]
      %v1345 = vld [vmem:[%s1339 + $0x28] sm:$0xff]
      %v1346 = vld [vmem:[%s1339 + $0x30] sm:$0xff]
      %v1347 = vld [vmem:[%s1339 + $0x38] sm:$0xff]
      %v1348 = vld [vmem:[%s1339 + $0x40] sm:$0xff]
      %v1349 = vld [vmem:[%s1339 + $0x48] sm:$0xff]
      %v1350 = vld [vmem:[%s1339 + $0x50] sm:$0xff]
      %v1351 = vld [vmem:[%s1339 + $0x58] sm:$0xff]
      %v1352 = vld [vmem:[%s1339 + $0x60] sm:$0xff]
      %v1353 = vld [vmem:[%s1339 + $0x68] sm:$0xff]
      %v1354 = vld [vmem:[%s1339 + $0x70] sm:$0xff]
      %v1355 = vld [vmem:[%s1339 + $0x78] sm:$0xff]
      %v1356 = vld [vmem:[%s1339 + $0x80] sm:$0xff]
      %v1357 = vld [vmem:[%s1339 + $0x88] sm:$0xff]
      %v1358 = vld [vmem:[%s1339 + $0x90] sm:$0xff]
      %v1359 = vld [vmem:[%s1339 + $0x98] sm:$0xff]
      %v1360 = vld [vmem:[%s1339 + $0xa0] sm:$0xff]
      %v1361 = vld [vmem:[%s1339 + $0xa8] sm:$0xff]
      %v1362 = vld [vmem:[%s1339 + $0xb0] sm:$0xff]
      %v1363 = vld [vmem:[%s1339 + $0xb8] sm:$0xff]
      %v1388 = vunpack.c.l.b16 %v1340
      %v1389 = vunpack.c.h.b16 %v1340
      %v1390 = vunpack.c.l.b16 %v1341
      %v1391 = vunpack.c.h.b16 %v1341
      %v1392 = vunpack.c.l.b16 %v1342
      %v1393 = vunpack.c.h.b16 %v1342
      %v1394 = vunpack.c.l.b16 %v1343
      %v1395 = vunpack.c.h.b16 %v1343
      %v1396 = vunpack.c.l.b16 %v1344
      %v1397 = vunpack.c.h.b16 %v1344
      %v1398 = vunpack.c.l.b16 %v1345
      %v1399 = vunpack.c.h.b16 %v1345
      %v1400 = vunpack.c.l.b16 %v1346
      %v1401 = vunpack.c.h.b16 %v1346
      %v1402 = vunpack.c.l.b16 %v1347
      %v1403 = vunpack.c.h.b16 %v1347
      %v1404 = vunpack.c.l.b16 %v1348
      %v1405 = vunpack.c.h.b16 %v1348
      %v1406 = vunpack.c.l.b16 %v1349
      %v1407 = vunpack.c.h.b16 %v1349
      %v1408 = vunpack.c.l.b16 %v1350
      %v1409 = vunpack.c.h.b16 %v1350
      %v1410 = vunpack.c.l.b16 %v1351
      %v1411 = vunpack.c.h.b16 %v1351
      %v1412 = vunpack.c.l.b16 %v1352
      %v1413 = vunpack.c.h.b16 %v1352
      %v1414 = vunpack.c.l.b16 %v1353
      %v1415 = vunpack.c.h.b16 %v1353
      %v1416 = vunpack.c.l.b16 %v1354
      %v1417 = vunpack.c.h.b16 %v1354
      %v1418 = vunpack.c.l.b16 %v1355
      %v1419 = vunpack.c.h.b16 %v1355
      %v1420 = vunpack.c.l.b16 %v1356
      %v1421 = vunpack.c.h.b16 %v1356
      %v1422 = vunpack.c.l.b16 %v1357
      %v1423 = vunpack.c.h.b16 %v1357
      %v1424 = vunpack.c.l.b16 %v1358
      %v1425 = vunpack.c.h.b16 %v1358
      %v1426 = vunpack.c.l.b16 %v1359
      %v1427 = vunpack.c.h.b16 %v1359
      %v1428 = vunpack.c.l.b16 %v1360
      %v1429 = vunpack.c.h.b16 %v1360
      %v1430 = vunpack.c.l.b16 %v1361
      %v1431 = vunpack.c.h.b16 %v1361
      %v1432 = vunpack.c.l.b16 %v1362
      %v1433 = vunpack.c.h.b16 %v1362
      %v1434 = vunpack.c.l.b16 %v1363
      %v1435 = vunpack.c.h.b16 %v1363
      %v1436 = vpack.c.b16 %v1390, %v1388
      %v1437 = vpack.c.b16 %v1391, %v1389
      %v1438 = vpack.c.b16 %v1394, %v1392
      %v1439 = vpack.c.b16 %v1395, %v1393
      %v1440 = vpack.c.b16 %v1398, %v1396
      %v1441 = vpack.c.b16 %v1399, %v1397
      %v1442 = vpack.c.b16 %v1402, %v1400
      %v1443 = vpack.c.b16 %v1403, %v1401
      %v1444 = vpack.c.b16 %v1406, %v1404
      %v1445 = vpack.c.b16 %v1407, %v1405
      %v1446 = vpack.c.b16 %v1410, %v1408
      %v1447 = vpack.c.b16 %v1411, %v1409
      %v1448 = vpack.c.b16 %v1414, %v1412
      %v1449 = vpack.c.b16 %v1415, %v1413
      %v1450 = vpack.c.b16 %v1418, %v1416
      %v1451 = vpack.c.b16 %v1419, %v1417
      %v1452 = vpack.c.b16 %v1422, %v1420
      %v1453 = vpack.c.b16 %v1423, %v1421
      %v1454 = vpack.c.b16 %v1426, %v1424
      %v1455 = vpack.c.b16 %v1427, %v1425
      %v1456 = vpack.c.b16 %v1430, %v1428
      %v1457 = vpack.c.b16 %v1431, %v1429
      %v1458 = vpack.c.b16 %v1434, %v1432
      %v1459 = vpack.c.b16 %v1435, %v1433
      %v1473 = vsel %vm501, %v1437, 0
      %v1476 = vsel %vm501, %v1439, 0
      %v1479 = vsel %vm501, %v1441, 0
      %v1482 = vsel %vm501, %v1443, 0
      %v1485 = vsel %vm501, %v1445, 0
      %v1488 = vsel %vm501, %v1447, 0
      %v1491 = vsel %vm501, %v1449, 0
      %v1494 = vsel %vm501, %v1451, 0
      %v1497 = vsel %vm501, %v1453, 0
      %v1500 = vsel %vm501, %v1455, 0
      %v1503 = vsel %vm501, %v1457, 0
      %v1506 = vsel %vm501, %v1459, 0
      %1508 = vmatprep.subr.bf16.mxu0 %v482
      %1509 = vmatpush1.bf16.msra.mxu0 %v481
      %1510 = vmatprep.subr.bf16.mxu0 %v480
      %1511 = vmatpush1.bf16.msra.mxu0 %v479
      %1512 = vmatprep.subr.bf16.mxu0 %v478
      %1513 = vmatpush1.bf16.msra.mxu0 %v477
      %1514 = vmatprep.subr.bf16.mxu0 %v476
      %1515 = vmatpush1.bf16.msra.mxu0 %v475
      %1516 = vmatprep.subr.bf16.mxu0 %v474
      %1517 = vmatpush1.bf16.msra.mxu0 %v473
      %1518 = vmatprep.subr.bf16.mxu0 %v472
      %1519 = vmatpush1.bf16.msra.mxu0 %v471
      %1520 = vmatprep.subr.bf16.mxu0 %v470
      %1521 = vmatpush1.bf16.msra.mxu0 %v469
      %1522 = vmatprep.subr.bf16.mxu0 %v468
      %1523 = vmatpush1.bf16.msra.mxu0 %v467
      %1524 = vmatprep.subr.bf16.mxu0 0
      %1525 = vmatpush2.bf16.msra.mxu0 0
      %1526 = vmatprep.subr.bf16.mxu0 0
      %1527 = vmatpush2.bf16.msra.mxu0 0
      %1528 = vmatprep.subr.bf16.mxu0 0
      %1529 = vmatpush2.bf16.msra.mxu0 0
      %1530 = vmatprep.subr.bf16.mxu0 0
      %1531 = vmatpush2.bf16.msra.mxu0 0
      %1532 = vmatprep.subr.bf16.mxu0 0
      %1533 = vmatpush2.bf16.msra.mxu0 0
      %1534 = vmatprep.subr.bf16.mxu0 0
      %1535 = vmatpush2.bf16.msra.mxu0 0
      %1536 = vmatprep.subr.bf16.mxu0 0
      %1537 = vmatpush2.bf16.msra.mxu0 0
      %1538 = vmatprep.subr.bf16.mxu0 %v543
      %1539 = vmatpush2.bf16.msra.mxu0 %v540
      %1540 = vmatprep.mubr.bf16.mxu0 %v1473
      %1541 = vmatmul.mubr.bf16.gmra.mxu0 %v1436
      %v1542 = vpop.f32.mrf.mxu0
      %v1543 = vadd.f32 0.0, %v1542
      %v1544 = vpop.f32.mrf.mxu0
      %v1545 = vadd.f32 0.0, %v1544
      %v1546 = vpop.f32.mrf.mxu0
      %v1547 = vadd.f32 0.0, %v1546
      %v1548 = vpop.f32.mrf.mxu0
      %v1549 = vadd.f32 0.0, %v1548
      %1550 = vmatprep.mubr.bf16.mxu0 %v1476
      %1551 = vmatmul.mubr.bf16.gmra.mxu0 %v1438
      %v1552 = vpop.f32.mrf.mxu0
      %v1553 = vadd.f32 0.0, %v1552
      %v1554 = vpop.f32.mrf.mxu0
      %v1555 = vadd.f32 0.0, %v1554
      %v1556 = vpop.f32.mrf.mxu0
      %v1557 = vadd.f32 0.0, %v1556
      %v1558 = vpop.f32.mrf.mxu0
      %v1559 = vadd.f32 0.0, %v1558
      %1560 = vmatprep.mubr.bf16.mxu0 %v1479
      %1561 = vmatmul.mubr.bf16.gmra.mxu0 %v1440
      %v1562 = vpop.f32.mrf.mxu0
      %v1563 = vadd.f32 0.0, %v1562
      %v1564 = vpop.f32.mrf.mxu0
      %v1565 = vadd.f32 0.0, %v1564
      %v1566 = vpop.f32.mrf.mxu0
      %v1567 = vadd.f32 0.0, %v1566
      %v1568 = vpop.f32.mrf.mxu0
      %v1569 = vadd.f32 0.0, %v1568
      %1570 = vmatprep.mubr.bf16.mxu0 %v1482
      %1571 = vmatmul.mubr.bf16.gmra.mxu0 %v1442
      %v1572 = vpop.f32.mrf.mxu0
      %v1573 = vadd.f32 0.0, %v1572
      %v1574 = vpop.f32.mrf.mxu0
      %v1575 = vadd.f32 0.0, %v1574
      %v1576 = vpop.f32.mrf.mxu0
      %v1577 = vadd.f32 0.0, %v1576
      %v1578 = vpop.f32.mrf.mxu0
      %v1579 = vadd.f32 0.0, %v1578
      %1580 = vmatprep.mubr.bf16.mxu0 %v1485
      %1581 = vmatmul.mubr.bf16.gmra.mxu0 %v1444
      %v1582 = vpop.f32.mrf.mxu0
      %v1583 = vadd.f32 0.0, %v1582
      %v1584 = vpop.f32.mrf.mxu0
      %v1585 = vadd.f32 0.0, %v1584
      %v1586 = vpop.f32.mrf.mxu0
      %v1587 = vadd.f32 0.0, %v1586
      %v1588 = vpop.f32.mrf.mxu0
      %v1589 = vadd.f32 0.0, %v1588
      %1590 = vmatprep.mubr.bf16.mxu0 %v1488
      %1591 = vmatmul.mubr.bf16.gmra.mxu0 %v1446
      %v1592 = vpop.f32.mrf.mxu0
      %v1593 = vadd.f32 0.0, %v1592
      %v1594 = vpop.f32.mrf.mxu0
      %v1595 = vadd.f32 0.0, %v1594
      %v1596 = vpop.f32.mrf.mxu0
      %v1597 = vadd.f32 0.0, %v1596
      %v1598 = vpop.f32.mrf.mxu0
      %v1599 = vadd.f32 0.0, %v1598
      %1600 = vmatprep.mubr.bf16.mxu0 %v1491
      %1601 = vmatmul.mubr.bf16.gmra.mxu0 %v1448
      %v1602 = vpop.f32.mrf.mxu0
      %v1603 = vadd.f32 0.0, %v1602
      %v1604 = vpop.f32.mrf.mxu0
      %v1605 = vadd.f32 0.0, %v1604
      %v1606 = vpop.f32.mrf.mxu0
      %v1607 = vadd.f32 0.0, %v1606
      %v1608 = vpop.f32.mrf.mxu0
      %v1609 = vadd.f32 0.0, %v1608
      %1610 = vmatprep.mubr.bf16.mxu0 %v1494
      %1611 = vmatmul.mubr.bf16.gmra.mxu0 %v1450
      %v1612 = vpop.f32.mrf.mxu0
      %v1613 = vadd.f32 0.0, %v1612
      %v1614 = vpop.f32.mrf.mxu0
      %v1615 = vadd.f32 0.0, %v1614
      %v1616 = vpop.f32.mrf.mxu0
      %v1617 = vadd.f32 0.0, %v1616
      %v1618 = vpop.f32.mrf.mxu0
      %v1619 = vadd.f32 0.0, %v1618
      %1620 = vmatprep.mubr.bf16.mxu0 %v1497
      %1621 = vmatmul.mubr.bf16.gmra.mxu0 %v1452
      %v1622 = vpop.f32.mrf.mxu0
      %v1623 = vadd.f32 0.0, %v1622
      %v1624 = vpop.f32.mrf.mxu0
      %v1625 = vadd.f32 0.0, %v1624
      %v1626 = vpop.f32.mrf.mxu0
      %v1627 = vadd.f32 0.0, %v1626
      %v1628 = vpop.f32.mrf.mxu0
      %v1629 = vadd.f32 0.0, %v1628
      %1630 = vmatprep.mubr.bf16.mxu0 %v1500
      %1631 = vmatmul.mubr.bf16.gmra.mxu0 %v1454
      %v1632 = vpop.f32.mrf.mxu0
      %v1633 = vadd.f32 0.0, %v1632
      %v1634 = vpop.f32.mrf.mxu0
      %v1635 = vadd.f32 0.0, %v1634
      %v1636 = vpop.f32.mrf.mxu0
      %v1637 = vadd.f32 0.0, %v1636
      %v1638 = vpop.f32.mrf.mxu0
      %v1639 = vadd.f32 0.0, %v1638
      %1640 = vmatprep.mubr.bf16.mxu0 %v1503
      %1641 = vmatmul.mubr.bf16.gmra.mxu0 %v1456
      %v1642 = vpop.f32.mrf.mxu0
      %v1643 = vadd.f32 0.0, %v1642
      %v1644 = vpop.f32.mrf.mxu0
      %v1645 = vadd.f32 0.0, %v1644
      %v1646 = vpop.f32.mrf.mxu0
      %v1647 = vadd.f32 0.0, %v1646
      %v1648 = vpop.f32.mrf.mxu0
      %v1649 = vadd.f32 0.0, %v1648
      %1650 = vmatprep.mubr.bf16.mxu0 %v1506
      %1651 = vmatmul.mubr.bf16.gmra.mxu0 %v1458
      %v1652 = vpop.f32.mrf.mxu0
      %v1653 = vadd.f32 0.0, %v1652
      %v1654 = vpop.f32.mrf.mxu0
      %v1655 = vadd.f32 0.0, %v1654
      %v1656 = vpop.f32.mrf.mxu0
      %v1657 = vadd.f32 0.0, %v1656
      %v1658 = vpop.f32.mrf.mxu0
      %v1659 = vadd.f32 0.0, %v1658
      %1660 = vdwg.mxu0
      %s1661 = scalar_lea.vmem %s250, 576
      %v1662 = vld [vmem:[%s1661] sm:$0xff]
      %v1663 = vld [vmem:[%s1661 + $0x8] sm:$0xff]
      %v1664 = vld [vmem:[%s1661 + $0x10] sm:$0xff]
      %v1665 = vld [vmem:[%s1661 + $0x18] sm:$0xff]
      %v1666 = vld [vmem:[%s1661 + $0x20] sm:$0xff]
      %v1667 = vld [vmem:[%s1661 + $0x28] sm:$0xff]
      %v1668 = vld [vmem:[%s1661 + $0x30] sm:$0xff]
      %v1669 = vld [vmem:[%s1661 + $0x38] sm:$0xff]
      %v1670 = vld [vmem:[%s1661 + $0x40] sm:$0xff]
      %v1671 = vld [vmem:[%s1661 + $0x48] sm:$0xff]
      %v1672 = vld [vmem:[%s1661 + $0x50] sm:$0xff]
      %v1673 = vld [vmem:[%s1661 + $0x58] sm:$0xff]
      %v1674 = vld [vmem:[%s1661 + $0x60] sm:$0xff]
      %v1675 = vld [vmem:[%s1661 + $0x68] sm:$0xff]
      %v1676 = vld [vmem:[%s1661 + $0x70] sm:$0xff]
      %v1677 = vld [vmem:[%s1661 + $0x78] sm:$0xff]
      %v1678 = vld [vmem:[%s1661 + $0x80] sm:$0xff]
      %v1679 = vld [vmem:[%s1661 + $0x88] sm:$0xff]
      %v1680 = vld [vmem:[%s1661 + $0x90] sm:$0xff]
      %v1681 = vld [vmem:[%s1661 + $0x98] sm:$0xff]
      %v1682 = vld [vmem:[%s1661 + $0xa0] sm:$0xff]
      %v1683 = vld [vmem:[%s1661 + $0xa8] sm:$0xff]
      %v1684 = vld [vmem:[%s1661 + $0xb0] sm:$0xff]
      %v1685 = vld [vmem:[%s1661 + $0xb8] sm:$0xff]
      %v1710 = vunpack.c.l.b16 %v1662
      %v1711 = vunpack.c.h.b16 %v1662
      %v1712 = vunpack.c.l.b16 %v1663
      %v1713 = vunpack.c.h.b16 %v1663
      %v1714 = vunpack.c.l.b16 %v1664
      %v1715 = vunpack.c.h.b16 %v1664
      %v1716 = vunpack.c.l.b16 %v1665
      %v1717 = vunpack.c.h.b16 %v1665
      %v1718 = vunpack.c.l.b16 %v1666
      %v1719 = vunpack.c.h.b16 %v1666
      %v1720 = vunpack.c.l.b16 %v1667
      %v1721 = vunpack.c.h.b16 %v1667
      %v1722 = vunpack.c.l.b16 %v1668
      %v1723 = vunpack.c.h.b16 %v1668
      %v1724 = vunpack.c.l.b16 %v1669
      %v1725 = vunpack.c.h.b16 %v1669
      %v1726 = vunpack.c.l.b16 %v1670
      %v1727 = vunpack.c.h.b16 %v1670
      %v1728 = vunpack.c.l.b16 %v1671
      %v1729 = vunpack.c.h.b16 %v1671
      %v1730 = vunpack.c.l.b16 %v1672
      %v1731 = vunpack.c.h.b16 %v1672
      %v1732 = vunpack.c.l.b16 %v1673
      %v1733 = vunpack.c.h.b16 %v1673
      %v1734 = vunpack.c.l.b16 %v1674
      %v1735 = vunpack.c.h.b16 %v1674
      %v1736 = vunpack.c.l.b16 %v1675
      %v1737 = vunpack.c.h.b16 %v1675
      %v1738 = vunpack.c.l.b16 %v1676
      %v1739 = vunpack.c.h.b16 %v1676
      %v1740 = vunpack.c.l.b16 %v1677
      %v1741 = vunpack.c.h.b16 %v1677
      %v1742 = vunpack.c.l.b16 %v1678
      %v1743 = vunpack.c.h.b16 %v1678
      %v1744 = vunpack.c.l.b16 %v1679
      %v1745 = vunpack.c.h.b16 %v1679
      %v1746 = vunpack.c.l.b16 %v1680
      %v1747 = vunpack.c.h.b16 %v1680
      %v1748 = vunpack.c.l.b16 %v1681
      %v1749 = vunpack.c.h.b16 %v1681
      %v1750 = vunpack.c.l.b16 %v1682
      %v1751 = vunpack.c.h.b16 %v1682
      %v1752 = vunpack.c.l.b16 %v1683
      %v1753 = vunpack.c.h.b16 %v1683
      %v1754 = vunpack.c.l.b16 %v1684
      %v1755 = vunpack.c.h.b16 %v1684
      %v1756 = vunpack.c.l.b16 %v1685
      %v1757 = vunpack.c.h.b16 %v1685
      %v1758 = vpack.c.b16 %v1712, %v1710
      %v1759 = vpack.c.b16 %v1713, %v1711
      %v1760 = vpack.c.b16 %v1716, %v1714
      %v1761 = vpack.c.b16 %v1717, %v1715
      %v1762 = vpack.c.b16 %v1720, %v1718
      %v1763 = vpack.c.b16 %v1721, %v1719
      %v1764 = vpack.c.b16 %v1724, %v1722
      %v1765 = vpack.c.b16 %v1725, %v1723
      %v1766 = vpack.c.b16 %v1728, %v1726
      %v1767 = vpack.c.b16 %v1729, %v1727
      %v1768 = vpack.c.b16 %v1732, %v1730
      %v1769 = vpack.c.b16 %v1733, %v1731
      %v1770 = vpack.c.b16 %v1736, %v1734
      %v1771 = vpack.c.b16 %v1737, %v1735
      %v1772 = vpack.c.b16 %v1740, %v1738
      %v1773 = vpack.c.b16 %v1741, %v1739
      %v1774 = vpack.c.b16 %v1744, %v1742
      %v1775 = vpack.c.b16 %v1745, %v1743
      %v1776 = vpack.c.b16 %v1748, %v1746
      %v1777 = vpack.c.b16 %v1749, %v1747
      %v1778 = vpack.c.b16 %v1752, %v1750
      %v1779 = vpack.c.b16 %v1753, %v1751
      %v1780 = vpack.c.b16 %v1756, %v1754
      %v1781 = vpack.c.b16 %v1757, %v1755
      %v1795 = vsel %vm501, %v1759, 0
      %v1798 = vsel %vm501, %v1761, 0
      %v1801 = vsel %vm501, %v1763, 0
      %v1804 = vsel %vm501, %v1765, 0
      %v1807 = vsel %vm501, %v1767, 0
      %v1810 = vsel %vm501, %v1769, 0
      %v1813 = vsel %vm501, %v1771, 0
      %v1816 = vsel %vm501, %v1773, 0
      %v1819 = vsel %vm501, %v1775, 0
      %v1822 = vsel %vm501, %v1777, 0
      %v1825 = vsel %vm501, %v1779, 0
      %v1828 = vsel %vm501, %v1781, 0
      %1830 = vmatprep.subr.bf16.mxu0 %v482
      %1831 = vmatpush1.bf16.msra.mxu0 %v481
      %1832 = vmatprep.subr.bf16.mxu0 %v480
      %1833 = vmatpush1.bf16.msra.mxu0 %v479
      %1834 = vmatprep.subr.bf16.mxu0 %v478
      %1835 = vmatpush1.bf16.msra.mxu0 %v477
      %1836 = vmatprep.subr.bf16.mxu0 %v476
      %1837 = vmatpush1.bf16.msra.mxu0 %v475
      %1838 = vmatprep.subr.bf16.mxu0 %v474
      %1839 = vmatpush1.bf16.msra.mxu0 %v473
      %1840 = vmatprep.subr.bf16.mxu0 %v472
      %1841 = vmatpush1.bf16.msra.mxu0 %v471
      %1842 = vmatprep.subr.bf16.mxu0 %v470
      %1843 = vmatpush1.bf16.msra.mxu0 %v469
      %1844 = vmatprep.subr.bf16.mxu0 %v468
      %1845 = vmatpush1.bf16.msra.mxu0 %v467
      %1846 = vmatprep.subr.bf16.mxu0 0
      %1847 = vmatpush2.bf16.msra.mxu0 0
      %1848 = vmatprep.subr.bf16.mxu0 0
      %1849 = vmatpush2.bf16.msra.mxu0 0
      %1850 = vmatprep.subr.bf16.mxu0 0
      %1851 = vmatpush2.bf16.msra.mxu0 0
      %1852 = vmatprep.subr.bf16.mxu0 0
      %1853 = vmatpush2.bf16.msra.mxu0 0
      %1854 = vmatprep.subr.bf16.mxu0 0
      %1855 = vmatpush2.bf16.msra.mxu0 0
      %1856 = vmatprep.subr.bf16.mxu0 0
      %1857 = vmatpush2.bf16.msra.mxu0 0
      %1858 = vmatprep.subr.bf16.mxu0 0
      %1859 = vmatpush2.bf16.msra.mxu0 0
      %1860 = vmatprep.subr.bf16.mxu0 %v543
      %1861 = vmatpush2.bf16.msra.mxu0 %v540
      %1862 = vmatprep.mubr.bf16.mxu0 %v1795
      %1863 = vmatmul.mubr.bf16.gmra.mxu0 %v1758
      %v1864 = vpop.f32.mrf.mxu0
      %v1865 = vadd.f32 0.0, %v1864
      %v1866 = vpop.f32.mrf.mxu0
      %v1867 = vadd.f32 0.0, %v1866
      %v1868 = vpop.f32.mrf.mxu0
      %v1869 = vadd.f32 0.0, %v1868
      %v1870 = vpop.f32.mrf.mxu0
      %v1871 = vadd.f32 0.0, %v1870
      %1872 = vmatprep.mubr.bf16.mxu0 %v1798
      %1873 = vmatmul.mubr.bf16.gmra.mxu0 %v1760
      %v1874 = vpop.f32.mrf.mxu0
      %v1875 = vadd.f32 0.0, %v1874
      %v1876 = vpop.f32.mrf.mxu0
      %v1877 = vadd.f32 0.0, %v1876
      %v1878 = vpop.f32.mrf.mxu0
      %v1879 = vadd.f32 0.0, %v1878
      %v1880 = vpop.f32.mrf.mxu0
      %v1881 = vadd.f32 0.0, %v1880
      %1882 = vmatprep.mubr.bf16.mxu0 %v1801
      %1883 = vmatmul.mubr.bf16.gmra.mxu0 %v1762
      %v1884 = vpop.f32.mrf.mxu0
      %v1885 = vadd.f32 0.0, %v1884
      %v1886 = vpop.f32.mrf.mxu0
      %v1887 = vadd.f32 0.0, %v1886
      %v1888 = vpop.f32.mrf.mxu0
      %v1889 = vadd.f32 0.0, %v1888
      %v1890 = vpop.f32.mrf.mxu0
      %v1891 = vadd.f32 0.0, %v1890
      %1892 = vmatprep.mubr.bf16.mxu0 %v1804
      %1893 = vmatmul.mubr.bf16.gmra.mxu0 %v1764
      %v1894 = vpop.f32.mrf.mxu0
      %v1895 = vadd.f32 0.0, %v1894
      %v1896 = vpop.f32.mrf.mxu0
      %v1897 = vadd.f32 0.0, %v1896
      %v1898 = vpop.f32.mrf.mxu0
      %v1899 = vadd.f32 0.0, %v1898
      %v1900 = vpop.f32.mrf.mxu0
      %v1901 = vadd.f32 0.0, %v1900
      %1902 = vmatprep.mubr.bf16.mxu0 %v1807
      %1903 = vmatmul.mubr.bf16.gmra.mxu0 %v1766
      %v1904 = vpop.f32.mrf.mxu0
      %v1905 = vadd.f32 0.0, %v1904
      %v1906 = vpop.f32.mrf.mxu0
      %v1907 = vadd.f32 0.0, %v1906
      %v1908 = vpop.f32.mrf.mxu0
      %v1909 = vadd.f32 0.0, %v1908
      %v1910 = vpop.f32.mrf.mxu0
      %v1911 = vadd.f32 0.0, %v1910
      %1912 = vmatprep.mubr.bf16.mxu0 %v1810
      %1913 = vmatmul.mubr.bf16.gmra.mxu0 %v1768
      %v1914 = vpop.f32.mrf.mxu0
      %v1915 = vadd.f32 0.0, %v1914
      %v1916 = vpop.f32.mrf.mxu0
      %v1917 = vadd.f32 0.0, %v1916
      %v1918 = vpop.f32.mrf.mxu0
      %v1919 = vadd.f32 0.0, %v1918
      %v1920 = vpop.f32.mrf.mxu0
      %v1921 = vadd.f32 0.0, %v1920
      %1922 = vmatprep.mubr.bf16.mxu0 %v1813
      %1923 = vmatmul.mubr.bf16.gmra.mxu0 %v1770
      %v1924 = vpop.f32.mrf.mxu0
      %v1925 = vadd.f32 0.0, %v1924
      %v1926 = vpop.f32.mrf.mxu0
      %v1927 = vadd.f32 0.0, %v1926
      %v1928 = vpop.f32.mrf.mxu0
      %v1929 = vadd.f32 0.0, %v1928
      %v1930 = vpop.f32.mrf.mxu0
      %v1931 = vadd.f32 0.0, %v1930
      %1932 = vmatprep.mubr.bf16.mxu0 %v1816
      %1933 = vmatmul.mubr.bf16.gmra.mxu0 %v1772
      %v1934 = vpop.f32.mrf.mxu0
      %v1935 = vadd.f32 0.0, %v1934
      %v1936 = vpop.f32.mrf.mxu0
      %v1937 = vadd.f32 0.0, %v1936
      %v1938 = vpop.f32.mrf.mxu0
      %v1939 = vadd.f32 0.0, %v1938
      %v1940 = vpop.f32.mrf.mxu0
      %v1941 = vadd.f32 0.0, %v1940
      %1942 = vmatprep.mubr.bf16.mxu0 %v1819
      %1943 = vmatmul.mubr.bf16.gmra.mxu0 %v1774
      %v1944 = vpop.f32.mrf.mxu0
      %v1945 = vadd.f32 0.0, %v1944
      %v1946 = vpop.f32.mrf.mxu0
      %v1947 = vadd.f32 0.0, %v1946
      %v1948 = vpop.f32.mrf.mxu0
      %v1949 = vadd.f32 0.0, %v1948
      %v1950 = vpop.f32.mrf.mxu0
      %v1951 = vadd.f32 0.0, %v1950
      %1952 = vmatprep.mubr.bf16.mxu0 %v1822
      %1953 = vmatmul.mubr.bf16.gmra.mxu0 %v1776
      %v1954 = vpop.f32.mrf.mxu0
      %v1955 = vadd.f32 0.0, %v1954
      %v1956 = vpop.f32.mrf.mxu0
      %v1957 = vadd.f32 0.0, %v1956
      %v1958 = vpop.f32.mrf.mxu0
      %v1959 = vadd.f32 0.0, %v1958
      %v1960 = vpop.f32.mrf.mxu0
      %v1961 = vadd.f32 0.0, %v1960
      %1962 = vmatprep.mubr.bf16.mxu0 %v1825
      %1963 = vmatmul.mubr.bf16.gmra.mxu0 %v1778
      %v1964 = vpop.f32.mrf.mxu0
      %v1965 = vadd.f32 0.0, %v1964
      %v1966 = vpop.f32.mrf.mxu0
      %v1967 = vadd.f32 0.0, %v1966
      %v1968 = vpop.f32.mrf.mxu0
      %v1969 = vadd.f32 0.0, %v1968
      %v1970 = vpop.f32.mrf.mxu0
      %v1971 = vadd.f32 0.0, %v1970
      %1972 = vmatprep.mubr.bf16.mxu0 %v1828
      %1973 = vmatmul.mubr.bf16.gmra.mxu0 %v1780
      %v1974 = vpop.f32.mrf.mxu0
      %v1975 = vadd.f32 0.0, %v1974
      %v1976 = vpop.f32.mrf.mxu0
      %v1977 = vadd.f32 0.0, %v1976
      %v1978 = vpop.f32.mrf.mxu0
      %v1979 = vadd.f32 0.0, %v1978
      %v1980 = vpop.f32.mrf.mxu0
      %v1981 = vadd.f32 0.0, %v1980
      %1982 = vdwg.mxu0
      %v1983 = vmax.f32 %v1543, %v1865
      %v1984 = vmax.f32 %v1545, %v1867
      %v1985 = vmax.f32 %v1547, %v1869
      %v1986 = vmax.f32 %v1549, %v1871
      %v1987 = vmax.f32 %v1553, %v1875
      %v1988 = vmax.f32 %v1555, %v1877
      %v1989 = vmax.f32 %v1557, %v1879
      %v1990 = vmax.f32 %v1559, %v1881
      %v1991 = vmax.f32 %v1563, %v1885
      %v1992 = vmax.f32 %v1565, %v1887
      %v1993 = vmax.f32 %v1567, %v1889
      %v1994 = vmax.f32 %v1569, %v1891
      %v1995 = vmax.f32 %v1573, %v1895
      %v1996 = vmax.f32 %v1575, %v1897
      %v1997 = vmax.f32 %v1577, %v1899
      %v1998 = vmax.f32 %v1579, %v1901
      %v1999 = vmax.f32 %v1583, %v1905
      %v2000 = vmax.f32 %v1585, %v1907
      %v2001 = vmax.f32 %v1587, %v1909
      %v2002 = vmax.f32 %v1589, %v1911
      %v2003 = vmax.f32 %v1593, %v1915
      %v2004 = vmax.f32 %v1595, %v1917
      %v2005 = vmax.f32 %v1597, %v1919
      %v2006 = vmax.f32 %v1599, %v1921
      %v2007 = vmax.f32 %v1603, %v1925
      %v2008 = vmax.f32 %v1605, %v1927
      %v2009 = vmax.f32 %v1607, %v1929
      %v2010 = vmax.f32 %v1609, %v1931
      %v2011 = vmax.f32 %v1613, %v1935
      %v2012 = vmax.f32 %v1615, %v1937
      %v2013 = vmax.f32 %v1617, %v1939
      %v2014 = vmax.f32 %v1619, %v1941
      %v2015 = vmax.f32 %v1623, %v1945
      %v2016 = vmax.f32 %v1625, %v1947
      %v2017 = vmax.f32 %v1627, %v1949
      %v2018 = vmax.f32 %v1629, %v1951
      %v2019 = vmax.f32 %v1633, %v1955
      %v2020 = vmax.f32 %v1635, %v1957
      %v2021 = vmax.f32 %v1637, %v1959
      %v2022 = vmax.f32 %v1639, %v1961
      %v2023 = vmax.f32 %v1643, %v1965
      %v2024 = vmax.f32 %v1645, %v1967
      %v2025 = vmax.f32 %v1647, %v1969
      %v2026 = vmax.f32 %v1649, %v1971
      %v2027 = vmax.f32 %v1653, %v1975
      %v2028 = vmax.f32 %v1655, %v1977
      %v2029 = vmax.f32 %v1657, %v1979
      %v2030 = vmax.f32 %v1659, %v1981
      %2079 = vrot.lane.b32.xlu0 %v1983, 8
      %v2080 = vpop.permute.xlu0 %2079
      %2081 = vrot.lane.b32.xlu0 %v1984, 8
      %v2082 = vpop.permute.xlu0 %2081
      %2083 = vrot.lane.b32.xlu0 %v1985, 8
      %v2084 = vpop.permute.xlu0 %2083
      %2085 = vrot.lane.b32.xlu0 %v1986, 8
      %v2086 = vpop.permute.xlu0 %2085
      %2087 = vrot.lane.b32.xlu0 %v1987, 8
      %v2088 = vpop.permute.xlu0 %2087
      %2089 = vrot.lane.b32.xlu0 %v1988, 8
      %v2090 = vpop.permute.xlu0 %2089
      %2091 = vrot.lane.b32.xlu0 %v1989, 8
      %v2092 = vpop.permute.xlu0 %2091
      %2093 = vrot.lane.b32.xlu0 %v1990, 8
      %v2094 = vpop.permute.xlu0 %2093
      %2095 = vrot.lane.b32.xlu0 %v1991, 8
      %v2096 = vpop.permute.xlu0 %2095
      %2097 = vrot.lane.b32.xlu0 %v1992, 8
      %v2098 = vpop.permute.xlu0 %2097
      %2099 = vrot.lane.b32.xlu0 %v1993, 8
      %v2100 = vpop.permute.xlu0 %2099
      %2101 = vrot.lane.b32.xlu0 %v1994, 8
      %v2102 = vpop.permute.xlu0 %2101
      %2103 = vrot.lane.b32.xlu0 %v1995, 8
      %v2104 = vpop.permute.xlu0 %2103
      %2105 = vrot.lane.b32.xlu0 %v1996, 8
      %v2106 = vpop.permute.xlu0 %2105
      %2107 = vrot.lane.b32.xlu0 %v1997, 8
      %v2108 = vpop.permute.xlu0 %2107
      %2109 = vrot.lane.b32.xlu0 %v1998, 8
      %v2110 = vpop.permute.xlu0 %2109
      %2111 = vrot.lane.b32.xlu0 %v1999, 8
      %v2112 = vpop.permute.xlu0 %2111
      %2113 = vrot.lane.b32.xlu0 %v2000, 8
      %v2114 = vpop.permute.xlu0 %2113
      %2115 = vrot.lane.b32.xlu0 %v2001, 8
      %v2116 = vpop.permute.xlu0 %2115
      %2117 = vrot.lane.b32.xlu0 %v2002, 8
      %v2118 = vpop.permute.xlu0 %2117
      %2119 = vrot.lane.b32.xlu0 %v2003, 8
      %v2120 = vpop.permute.xlu0 %2119
      %2121 = vrot.lane.b32.xlu0 %v2004, 8
      %v2122 = vpop.permute.xlu0 %2121
      %2123 = vrot.lane.b32.xlu0 %v2005, 8
      %v2124 = vpop.permute.xlu0 %2123
      %2125 = vrot.lane.b32.xlu0 %v2006, 8
      %v2126 = vpop.permute.xlu0 %2125
      %2127 = vrot.lane.b32.xlu0 %v2007, 8
      %v2128 = vpop.permute.xlu0 %2127
      %2129 = vrot.lane.b32.xlu0 %v2008, 8
      %v2130 = vpop.permute.xlu0 %2129
      %2131 = vrot.lane.b32.xlu0 %v2009, 8
      %v2132 = vpop.permute.xlu0 %2131
      %2133 = vrot.lane.b32.xlu0 %v2010, 8
      %v2134 = vpop.permute.xlu0 %2133
      %2135 = vrot.lane.b32.xlu0 %v2011, 8
      %v2136 = vpop.permute.xlu0 %2135
      %2137 = vrot.lane.b32.xlu0 %v2012, 8
      %v2138 = vpop.permute.xlu0 %2137
      %2139 = vrot.lane.b32.xlu0 %v2013, 8
      %v2140 = vpop.permute.xlu0 %2139
      %2141 = vrot.lane.b32.xlu0 %v2014, 8
      %v2142 = vpop.permute.xlu0 %2141
      %2143 = vrot.lane.b32.xlu0 %v2015, 8
      %v2144 = vpop.permute.xlu0 %2143
      %2145 = vrot.lane.b32.xlu0 %v2016, 8
      %v2146 = vpop.permute.xlu0 %2145
      %2147 = vrot.lane.b32.xlu0 %v2017, 8
      %v2148 = vpop.permute.xlu0 %2147
      %2149 = vrot.lane.b32.xlu0 %v2018, 8
      %v2150 = vpop.permute.xlu0 %2149
      %2151 = vrot.lane.b32.xlu0 %v2019, 8
      %v2152 = vpop.permute.xlu0 %2151
      %2153 = vrot.lane.b32.xlu0 %v2020, 8
      %v2154 = vpop.permute.xlu0 %2153
      %2155 = vrot.lane.b32.xlu0 %v2021, 8
      %v2156 = vpop.permute.xlu0 %2155
      %2157 = vrot.lane.b32.xlu0 %v2022, 8
      %v2158 = vpop.permute.xlu0 %2157
      %2159 = vrot.lane.b32.xlu0 %v2023, 8
      %v2160 = vpop.permute.xlu0 %2159
      %2161 = vrot.lane.b32.xlu0 %v2024, 8
      %v2162 = vpop.permute.xlu0 %2161
      %2163 = vrot.lane.b32.xlu0 %v2025, 8
      %v2164 = vpop.permute.xlu0 %2163
      %2165 = vrot.lane.b32.xlu0 %v2026, 8
      %v2166 = vpop.permute.xlu0 %2165
      %2167 = vrot.lane.b32.xlu0 %v2027, 8
      %v2168 = vpop.permute.xlu0 %2167
      %2169 = vrot.lane.b32.xlu0 %v2028, 8
      %v2170 = vpop.permute.xlu0 %2169
      %2171 = vrot.lane.b32.xlu0 %v2029, 8
      %v2172 = vpop.permute.xlu0 %2171
      %2173 = vrot.lane.b32.xlu0 %v2030, 8
      %v2174 = vpop.permute.xlu0 %2173
      %v2175 = vsel %vm1212, %v2080, %v2082
      %v2176 = vsel %vm1212, %v2084, %v2086
      %v2177 = vsel %vm1212, %v2088, %v2090
      %v2178 = vsel %vm1212, %v2092, %v2094
      %v2179 = vsel %vm1212, %v2096, %v2098
      %v2180 = vsel %vm1212, %v2100, %v2102
      %v2181 = vsel %vm1212, %v2104, %v2106
      %v2182 = vsel %vm1212, %v2108, %v2110
      %v2183 = vsel %vm1212, %v2112, %v2114
      %v2184 = vsel %vm1212, %v2116, %v2118
      %v2185 = vsel %vm1212, %v2120, %v2122
      %v2186 = vsel %vm1212, %v2124, %v2126
      %v2187 = vsel %vm1212, %v2128, %v2130
      %v2188 = vsel %vm1212, %v2132, %v2134
      %v2189 = vsel %vm1212, %v2136, %v2138
      %v2190 = vsel %vm1212, %v2140, %v2142
      %v2191 = vsel %vm1212, %v2144, %v2146
      %v2192 = vsel %vm1212, %v2148, %v2150
      %v2193 = vsel %vm1212, %v2152, %v2154
      %v2194 = vsel %vm1212, %v2156, %v2158
      %v2195 = vsel %vm1212, %v2160, %v2162
      %v2196 = vsel %vm1212, %v2164, %v2166
      %v2197 = vsel %vm1212, %v2168, %v2170
      %v2198 = vsel %vm1212, %v2172, %v2174
      %v2223 = vmax.f32 %v1983, %v2175
      %v2224 = vmax.f32 %v1985, %v2176
      %v2225 = vmax.f32 %v1987, %v2177
      %v2226 = vmax.f32 %v1989, %v2178
      %v2227 = vmax.f32 %v1991, %v2179
      %v2228 = vmax.f32 %v1993, %v2180
      %v2229 = vmax.f32 %v1995, %v2181
      %v2230 = vmax.f32 %v1997, %v2182
      %v2231 = vmax.f32 %v1999, %v2183
      %v2232 = vmax.f32 %v2001, %v2184
      %v2233 = vmax.f32 %v2003, %v2185
      %v2234 = vmax.f32 %v2005, %v2186
      %v2235 = vmax.f32 %v2007, %v2187
      %v2236 = vmax.f32 %v2009, %v2188
      %v2237 = vmax.f32 %v2011, %v2189
      %v2238 = vmax.f32 %v2013, %v2190
      %v2239 = vmax.f32 %v2015, %v2191
      %v2240 = vmax.f32 %v2017, %v2192
      %v2241 = vmax.f32 %v2019, %v2193
      %v2242 = vmax.f32 %v2021, %v2194
      %v2243 = vmax.f32 %v2023, %v2195
      %v2244 = vmax.f32 %v2025, %v2196
      %v2245 = vmax.f32 %v2027, %v2197
      %v2246 = vmax.f32 %v2029, %v2198
      %v2247 = vadd.f32 %v2223, %v1289
      %v2248 = vadd.f32 %v2224, %v1289
      %v2249 = vadd.f32 %v2225, %v1289
      %v2250 = vadd.f32 %v2226, %v1289
      %v2251 = vadd.f32 %v2227, %v1289
      %v2252 = vadd.f32 %v2228, %v1289
      %v2253 = vadd.f32 %v2229, %v1289
      %v2254 = vadd.f32 %v2230, %v1289
      %v2255 = vadd.f32 %v2231, %v1289
      %v2256 = vadd.f32 %v2232, %v1289
      %v2257 = vadd.f32 %v2233, %v1289
      %v2258 = vadd.f32 %v2234, %v1289
      %v2259 = vadd.f32 %v2235, %v1289
      %v2260 = vadd.f32 %v2236, %v1289
      %v2261 = vadd.f32 %v2237, %v1289
      %v2262 = vadd.f32 %v2238, %v1289
      %v2263 = vadd.f32 %v2239, %v1289
      %v2264 = vadd.f32 %v2240, %v1289
      %v2265 = vadd.f32 %v2241, %v1289
      %v2266 = vadd.f32 %v2242, %v1289
      %v2267 = vadd.f32 %v2243, %v1289
      %v2268 = vadd.f32 %v2244, %v1289
      %v2269 = vadd.f32 %v2245, %v1289
      %v2270 = vadd.f32 %v2246, %v1289
      %v2271 = vmax.f32 %v2247, 0.0
      %v2272 = vmax.f32 %v2248, 0.0
      %v2273 = vmax.f32 %v2249, 0.0
      %v2274 = vmax.f32 %v2250, 0.0
      %v2275 = vmax.f32 %v2251, 0.0
      %v2276 = vmax.f32 %v2252, 0.0
      %v2277 = vmax.f32 %v2253, 0.0
      %v2278 = vmax.f32 %v2254, 0.0
      %v2279 = vmax.f32 %v2255, 0.0
      %v2280 = vmax.f32 %v2256, 0.0
      %v2281 = vmax.f32 %v2257, 0.0
      %v2282 = vmax.f32 %v2258, 0.0
      %v2283 = vmax.f32 %v2259, 0.0
      %v2284 = vmax.f32 %v2260, 0.0
      %v2285 = vmax.f32 %v2261, 0.0
      %v2286 = vmax.f32 %v2262, 0.0
      %v2287 = vmax.f32 %v2263, 0.0
      %v2288 = vmax.f32 %v2264, 0.0
      %v2289 = vmax.f32 %v2265, 0.0
      %v2290 = vmax.f32 %v2266, 0.0
      %v2291 = vmax.f32 %v2267, 0.0
      %v2292 = vmax.f32 %v2268, 0.0
      %v2293 = vmax.f32 %v2269, 0.0
      %v2294 = vmax.f32 %v2270, 0.0
      %v2295 = vpack.c.bf16 %v1316, %v1315
      %v2296 = vpack.c.bf16 %v1318, %v1317
      %v2297 = vpack.c.bf16 %v1320, %v1319
      %v2298 = vpack.c.bf16 %v1322, %v1321
      %v2299 = vpack.c.bf16 %v1324, %v1323
      %v2300 = vpack.c.bf16 %v1326, %v1325
      %v2301 = vpack.c.bf16 %v1328, %v1327
      %v2302 = vpack.c.bf16 %v1330, %v1329
      %v2303 = vpack.c.bf16 %v1332, %v1331
      %v2304 = vpack.c.bf16 %v1334, %v1333
      %v2305 = vpack.c.bf16 %v1336, %v1335
      %v2306 = vpack.c.bf16 %v1338, %v1337
      %v2307 = vpack.c.bf16 %v2272, %v2271
      %v2308 = vpack.c.bf16 %v2274, %v2273
      %v2309 = vpack.c.bf16 %v2276, %v2275
      %v2310 = vpack.c.bf16 %v2278, %v2277
      %v2311 = vpack.c.bf16 %v2280, %v2279
      %v2312 = vpack.c.bf16 %v2282, %v2281
      %v2313 = vpack.c.bf16 %v2284, %v2283
      %v2314 = vpack.c.bf16 %v2286, %v2285
      %v2315 = vpack.c.bf16 %v2288, %v2287
      %v2316 = vpack.c.bf16 %v2290, %v2289
      %v2317 = vpack.c.bf16 %v2292, %v2291
      %v2318 = vpack.c.bf16 %v2294, %v2293
      %v2319 = vld [vmem:[%s2] sm:$0xff]
      %v2320 = vld [vmem:[%s2 + $0x8] sm:$0xff]
      %v2321 = vld [vmem:[%s2 + $0x10] sm:$0xff]
      %v2322 = vld [vmem:[%s2 + $0x18] sm:$0xff]
      %v2323 = vld [vmem:[%s2 + $0x20] sm:$0xff]
      %v2324 = vld [vmem:[%s2 + $0x28] sm:$0xff]
      %v2325 = vld [vmem:[%s2 + $0x30] sm:$0xff]
      %v2326 = vld [vmem:[%s2 + $0x38] sm:$0xff]
      %v2327 = vld [vmem:[%s2 + $0x40] sm:$0xff]
      %v2328 = vld [vmem:[%s2 + $0x48] sm:$0xff]
      %v2329 = vld [vmem:[%s2 + $0x50] sm:$0xff]
      %v2330 = vld [vmem:[%s2 + $0x58] sm:$0xff]
      %v2331 = vld [vmem:[%s2 + $0x60] sm:$0xff]
      %v2332 = vld [vmem:[%s2 + $0x68] sm:$0xff]
      %v2333 = vld [vmem:[%s2 + $0x70] sm:$0xff]
      %s2334 = scalar_lea.vmem %s2, 120
      %v2335 = vld [vmem:[%s2334] sm:$0xff]
      %v2336 = vld [vmem:[%s2334 + $0x8] sm:$0xff]
      %v2337 = vld [vmem:[%s2334 + $0x10] sm:$0xff]
      %v2338 = vld [vmem:[%s2334 + $0x18] sm:$0xff]
      %v2339 = vld [vmem:[%s2334 + $0x20] sm:$0xff]
      %v2340 = vld [vmem:[%s2334 + $0x28] sm:$0xff]
      %v2341 = vld [vmem:[%s2334 + $0x30] sm:$0xff]
      %v2342 = vld [vmem:[%s2334 + $0x38] sm:$0xff]
      %v2343 = vld [vmem:[%s2334 + $0x40] sm:$0xff]
      %v2344 = vld [vmem:[%s2334 + $0x48] sm:$0xff]
      %v2345 = vld [vmem:[%s2334 + $0x50] sm:$0xff]
      %v2346 = vld [vmem:[%s2334 + $0x58] sm:$0xff]
      %v2347 = vld [vmem:[%s2334 + $0x60] sm:$0xff]
      %v2348 = vld [vmem:[%s2334 + $0x68] sm:$0xff]
      %v2349 = vld [vmem:[%s2334 + $0x70] sm:$0xff]
      %v2365 = vunpack.c.l.b16 %v2335
      %v2366 = vunpack.c.h.b16 %v2335
      %v2367 = vunpack.c.l.b16 %v2336
      %v2368 = vunpack.c.h.b16 %v2336
      %v2369 = vunpack.c.l.b16 %v2337
      %v2370 = vunpack.c.h.b16 %v2337
      %v2371 = vunpack.c.l.b16 %v2338
      %v2372 = vunpack.c.h.b16 %v2338
      %v2373 = vunpack.c.l.b16 %v2339
      %v2374 = vunpack.c.h.b16 %v2339
      %v2375 = vunpack.c.l.b16 %v2340
      %v2376 = vunpack.c.h.b16 %v2340
      %v2377 = vunpack.c.l.b16 %v2341
      %v2378 = vunpack.c.h.b16 %v2341
      %v2379 = vunpack.c.l.b16 %v2342
      %v2380 = vunpack.c.h.b16 %v2342
      %v2381 = vunpack.c.l.b16 %v2343
      %v2382 = vunpack.c.h.b16 %v2343
      %v2383 = vunpack.c.l.b16 %v2344
      %v2384 = vunpack.c.h.b16 %v2344
      %v2385 = vunpack.c.l.b16 %v2345
      %v2386 = vunpack.c.h.b16 %v2345
      %v2387 = vunpack.c.l.b16 %v2346
      %v2388 = vunpack.c.h.b16 %v2346
      %v2389 = vunpack.c.l.b16 %v2347
      %v2390 = vunpack.c.h.b16 %v2347
      %v2391 = vunpack.c.l.b16 %v2348
      %v2392 = vunpack.c.h.b16 %v2348
      %v2393 = vunpack.c.l.b16 %v2349
      %v2394 = vunpack.c.h.b16 %v2349
      %v2395 = vpack.c.b16 %v2367, %v2365
      %v2396 = vpack.c.b16 %v2368, %v2366
      %v2397 = vpack.c.b16 %v2371, %v2369
      %v2398 = vpack.c.b16 %v2372, %v2370
      %v2399 = vpack.c.b16 %v2375, %v2373
      %v2400 = vpack.c.b16 %v2376, %v2374
      %v2401 = vpack.c.b16 %v2379, %v2377
      %v2402 = vpack.c.b16 %v2380, %v2378
      %v2403 = vpack.c.b16 %v2383, %v2381
      %v2404 = vpack.c.b16 %v2384, %v2382
      %v2405 = vpack.c.b16 %v2387, %v2385
      %v2406 = vpack.c.b16 %v2388, %v2386
      %v2407 = vpack.c.b16 %v2391, %v2389
      %v2408 = vpack.c.b16 %v2392, %v2390
      %v2409 = vpack.c.b16 %v2393, %v2393
      %v2410 = vpack.c.b16 %v2394, %v2394
      %vm2425 = vcmask 982016
      %v2427 = vsel %vm2425, %v2307, 0
      %v2430 = vsel %vm2425, %v2308, 0
      %v2433 = vsel %vm2425, %v2309, 0
      %v2436 = vsel %vm2425, %v2310, 0
      %v2439 = vsel %vm2425, %v2311, 0
      %v2442 = vsel %vm2425, %v2312, 0
      %v2445 = vsel %vm2425, %v2313, 0
      %v2448 = vsel %vm2425, %v2314, 0
      %vm2450 = vcmask 1043456
      %v2452 = vsel %vm2450, %v2409, 0
      %v2455 = vsel %vm2450, %v2410, 0
      %2457 = vmatprep.subr.bf16.mxu0 %v2455
      %2458 = vmatpush1.bf16.msra.mxu0 %v2452
      %2459 = vmatprep.subr.bf16.mxu0 %v2408
      %2460 = vmatpush1.bf16.msra.mxu0 %v2407
      %2461 = vmatprep.subr.bf16.mxu0 %v2406
      %2462 = vmatpush1.bf16.msra.mxu0 %v2405
      %2463 = vmatprep.subr.bf16.mxu0 %v2404
      %2464 = vmatpush1.bf16.msra.mxu0 %v2403
      %2465 = vmatprep.subr.bf16.mxu0 %v2402
      %2466 = vmatpush1.bf16.msra.mxu0 %v2401
      %2467 = vmatprep.subr.bf16.mxu0 %v2400
      %2468 = vmatpush1.bf16.msra.mxu0 %v2399
      %2469 = vmatprep.subr.bf16.mxu0 %v2398
      %2470 = vmatpush1.bf16.msra.mxu0 %v2397
      %2471 = vmatprep.subr.bf16.mxu0 %v2396
      %2472 = vmatpush1.bf16.msra.mxu0 %v2395
      %2473 = vmatprep.subr.bf16.mxu0 0
      %2474 = vmatpush2.bf16.msra.mxu0 0
      %2475 = vmatprep.subr.bf16.mxu0 0
      %2476 = vmatpush2.bf16.msra.mxu0 0
      %2477 = vmatprep.subr.bf16.mxu0 0
      %2478 = vmatpush2.bf16.msra.mxu0 0
      %2479 = vmatprep.subr.bf16.mxu0 0
      %2480 = vmatpush2.bf16.msra.mxu0 0
      %2481 = vmatprep.subr.bf16.mxu0 0
      %2482 = vmatpush2.bf16.msra.mxu0 0
      %2483 = vmatprep.subr.bf16.mxu0 0
      %2484 = vmatpush2.bf16.msra.mxu0 0
      %2485 = vmatprep.subr.bf16.mxu0 0
      %2486 = vmatpush2.bf16.msra.mxu0 0
      %2487 = vmatprep.subr.bf16.mxu0 0
      %2488 = vmatpush2.bf16.msra.mxu0 0
      %2489 = vmatprep.mubr.bf16.mxu0 0
      %2490 = vmatmul.mubr.bf16.gmra.mxu0 %v2427
      %v2491 = vpop.f32.mrf.mxu0
      %v2492 = vadd.f32 0.0, %v2491
      %v2493 = vpop.f32.mrf.mxu0
      %v2494 = vadd.f32 0.0, %v2493
      %v2495 = vpop.f32.mrf.mxu0
      %v2496 = vadd.f32 0.0, %v2495
      %v2497 = vpop.f32.mrf.mxu0
      %v2498 = vadd.f32 0.0, %v2497
      %2499 = vmatprep.mubr.bf16.mxu0 0
      %2500 = vmatmul.mubr.bf16.gmra.mxu0 %v2430
      %v2501 = vpop.f32.mrf.mxu0
      %v2502 = vadd.f32 0.0, %v2501
      %v2503 = vpop.f32.mrf.mxu0
      %v2504 = vadd.f32 0.0, %v2503
      %v2505 = vpop.f32.mrf.mxu0
      %v2506 = vadd.f32 0.0, %v2505
      %v2507 = vpop.f32.mrf.mxu0
      %v2508 = vadd.f32 0.0, %v2507
      %2509 = vmatprep.mubr.bf16.mxu0 0
      %2510 = vmatmul.mubr.bf16.gmra.mxu0 %v2433
      %v2511 = vpop.f32.mrf.mxu0
      %v2512 = vadd.f32 0.0, %v2511
      %v2513 = vpop.f32.mrf.mxu0
      %v2514 = vadd.f32 0.0, %v2513
      %v2515 = vpop.f32.mrf.mxu0
      %v2516 = vadd.f32 0.0, %v2515
      %v2517 = vpop.f32.mrf.mxu0
      %v2518 = vadd.f32 0.0, %v2517
      %2519 = vmatprep.mubr.bf16.mxu0 0
      %2520 = vmatmul.mubr.bf16.gmra.mxu0 %v2436
      %v2521 = vpop.f32.mrf.mxu0
      %v2522 = vadd.f32 0.0, %v2521
      %v2523 = vpop.f32.mrf.mxu0
      %v2524 = vadd.f32 0.0, %v2523
      %v2525 = vpop.f32.mrf.mxu0
      %v2526 = vadd.f32 0.0, %v2525
      %v2527 = vpop.f32.mrf.mxu0
      %v2528 = vadd.f32 0.0, %v2527
      %2529 = vmatprep.mubr.bf16.mxu0 0
      %2530 = vmatmul.mubr.bf16.gmra.mxu0 %v2439
      %v2531 = vpop.f32.mrf.mxu0
      %v2532 = vadd.f32 0.0, %v2531
      %v2533 = vpop.f32.mrf.mxu0
      %v2534 = vadd.f32 0.0, %v2533
      %v2535 = vpop.f32.mrf.mxu0
      %v2536 = vadd.f32 0.0, %v2535
      %v2537 = vpop.f32.mrf.mxu0
      %v2538 = vadd.f32 0.0, %v2537
      %2539 = vmatprep.mubr.bf16.mxu0 0
      %2540 = vmatmul.mubr.bf16.gmra.mxu0 %v2442
      %v2541 = vpop.f32.mrf.mxu0
      %v2542 = vadd.f32 0.0, %v2541
      %v2543 = vpop.f32.mrf.mxu0
      %v2544 = vadd.f32 0.0, %v2543
      %v2545 = vpop.f32.mrf.mxu0
      %v2546 = vadd.f32 0.0, %v2545
      %v2547 = vpop.f32.mrf.mxu0
      %v2548 = vadd.f32 0.0, %v2547
      %2549 = vmatprep.mubr.bf16.mxu0 0
      %2550 = vmatmul.mubr.bf16.gmra.mxu0 %v2445
      %v2551 = vpop.f32.mrf.mxu0
      %v2552 = vadd.f32 0.0, %v2551
      %v2553 = vpop.f32.mrf.mxu0
      %v2554 = vadd.f32 0.0, %v2553
      %v2555 = vpop.f32.mrf.mxu0
      %v2556 = vadd.f32 0.0, %v2555
      %v2557 = vpop.f32.mrf.mxu0
      %v2558 = vadd.f32 0.0, %v2557
      %2559 = vmatprep.mubr.bf16.mxu0 0
      %2560 = vmatmul.mubr.bf16.gmra.mxu0 %v2448
      %v2561 = vpop.f32.mrf.mxu0
      %v2562 = vadd.f32 0.0, %v2561
      %v2563 = vpop.f32.mrf.mxu0
      %v2564 = vadd.f32 0.0, %v2563
      %v2565 = vpop.f32.mrf.mxu0
      %v2566 = vadd.f32 0.0, %v2565
      %v2567 = vpop.f32.mrf.mxu0
      %v2568 = vadd.f32 0.0, %v2567
      %2569 = vdwg.mxu0
      %v2585 = vunpack.c.l.b16 %v2319
      %v2586 = vunpack.c.h.b16 %v2319
      %v2587 = vunpack.c.l.b16 %v2320
      %v2588 = vunpack.c.h.b16 %v2320
      %v2589 = vunpack.c.l.b16 %v2321
      %v2590 = vunpack.c.h.b16 %v2321
      %v2591 = vunpack.c.l.b16 %v2322
      %v2592 = vunpack.c.h.b16 %v2322
      %v2593 = vunpack.c.l.b16 %v2323
      %v2594 = vunpack.c.h.b16 %v2323
      %v2595 = vunpack.c.l.b16 %v2324
      %v2596 = vunpack.c.h.b16 %v2324
      %v2597 = vunpack.c.l.b16 %v2325
      %v2598 = vunpack.c.h.b16 %v2325
      %v2599 = vunpack.c.l.b16 %v2326
      %v2600 = vunpack.c.h.b16 %v2326
      %v2601 = vunpack.c.l.b16 %v2327
      %v2602 = vunpack.c.h.b16 %v2327
      %v2603 = vunpack.c.l.b16 %v2328
      %v2604 = vunpack.c.h.b16 %v2328
      %v2605 = vunpack.c.l.b16 %v2329
      %v2606 = vunpack.c.h.b16 %v2329
      %v2607 = vunpack.c.l.b16 %v2330
      %v2608 = vunpack.c.h.b16 %v2330
      %v2609 = vunpack.c.l.b16 %v2331
      %v2610 = vunpack.c.h.b16 %v2331
      %v2611 = vunpack.c.l.b16 %v2332
      %v2612 = vunpack.c.h.b16 %v2332
      %v2613 = vunpack.c.l.b16 %v2333
      %v2614 = vunpack.c.h.b16 %v2333
      %v2615 = vpack.c.b16 %v2587, %v2585
      %v2616 = vpack.c.b16 %v2588, %v2586
      %v2617 = vpack.c.b16 %v2591, %v2589
      %v2618 = vpack.c.b16 %v2592, %v2590
      %v2619 = vpack.c.b16 %v2595, %v2593
      %v2620 = vpack.c.b16 %v2596, %v2594
      %v2621 = vpack.c.b16 %v2599, %v2597
      %v2622 = vpack.c.b16 %v2600, %v2598
      %v2623 = vpack.c.b16 %v2603, %v2601
      %v2624 = vpack.c.b16 %v2604, %v2602
      %v2625 = vpack.c.b16 %v2607, %v2605
      %v2626 = vpack.c.b16 %v2608, %v2606
      %v2627 = vpack.c.b16 %v2611, %v2609
      %v2628 = vpack.c.b16 %v2612, %v2610
      %v2629 = vpack.c.b16 %v2613, %v2613
      %v2630 = vpack.c.b16 %v2614, %v2614
      %v2646 = vsel %vm2425, %v2295, 0
      %v2649 = vsel %vm2425, %v2296, 0
      %v2652 = vsel %vm2425, %v2297, 0
      %v2655 = vsel %vm2425, %v2298, 0
      %v2658 = vsel %vm2425, %v2299, 0
      %v2661 = vsel %vm2425, %v2300, 0
      %v2664 = vsel %vm2425, %v2301, 0
      %v2667 = vsel %vm2425, %v2302, 0
      %v2670 = vsel %vm2450, %v2629, 0
      %v2673 = vsel %vm2450, %v2630, 0
      %2675 = vmatprep.subr.bf16.mxu0 %v2673
      %2676 = vmatpush1.bf16.msra.mxu0 %v2670
      %2677 = vmatprep.subr.bf16.mxu0 %v2628
      %2678 = vmatpush1.bf16.msra.mxu0 %v2627
      %2679 = vmatprep.subr.bf16.mxu0 %v2626
      %2680 = vmatpush1.bf16.msra.mxu0 %v2625
      %2681 = vmatprep.subr.bf16.mxu0 %v2624
      %2682 = vmatpush1.bf16.msra.mxu0 %v2623
      %2683 = vmatprep.subr.bf16.mxu0 %v2622
      %2684 = vmatpush1.bf16.msra.mxu0 %v2621
      %2685 = vmatprep.subr.bf16.mxu0 %v2620
      %2686 = vmatpush1.bf16.msra.mxu0 %v2619
      %2687 = vmatprep.subr.bf16.mxu0 %v2618
      %2688 = vmatpush1.bf16.msra.mxu0 %v2617
      %2689 = vmatprep.subr.bf16.mxu0 %v2616
      %2690 = vmatpush1.bf16.msra.mxu0 %v2615
      %2691 = vmatprep.subr.bf16.mxu0 0
      %2692 = vmatpush2.bf16.msra.mxu0 0
      %2693 = vmatprep.subr.bf16.mxu0 0
      %2694 = vmatpush2.bf16.msra.mxu0 0
      %2695 = vmatprep.subr.bf16.mxu0 0
      %2696 = vmatpush2.bf16.msra.mxu0 0
      %2697 = vmatprep.subr.bf16.mxu0 0
      %2698 = vmatpush2.bf16.msra.mxu0 0
      %2699 = vmatprep.subr.bf16.mxu0 0
      %2700 = vmatpush2.bf16.msra.mxu0 0
      %2701 = vmatprep.subr.bf16.mxu0 0
      %2702 = vmatpush2.bf16.msra.mxu0 0
      %2703 = vmatprep.subr.bf16.mxu0 0
      %2704 = vmatpush2.bf16.msra.mxu0 0
      %2705 = vmatprep.subr.bf16.mxu0 0
      %2706 = vmatpush2.bf16.msra.mxu0 0
      %2707 = vmatprep.mubr.bf16.mxu0 0
      %2708 = vmatmul.mubr.bf16.gmra.mxu0 %v2646
      %v2709 = vpop.f32.mrf.mxu0
      %v2710 = vadd.f32 %v2492, %v2709
      %v2711 = vpop.f32.mrf.mxu0
      %v2712 = vadd.f32 %v2494, %v2711
      %v2713 = vpop.f32.mrf.mxu0
      %v2714 = vadd.f32 %v2496, %v2713
      %v2715 = vpop.f32.mrf.mxu0
      %v2716 = vadd.f32 %v2498, %v2715
      %2717 = vmatprep.mubr.bf16.mxu0 0
      %2718 = vmatmul.mubr.bf16.gmra.mxu0 %v2649
      %v2719 = vpop.f32.mrf.mxu0
      %v2720 = vadd.f32 %v2502, %v2719
      %v2721 = vpop.f32.mrf.mxu0
      %v2722 = vadd.f32 %v2504, %v2721
      %v2723 = vpop.f32.mrf.mxu0
      %v2724 = vadd.f32 %v2506, %v2723
      %v2725 = vpop.f32.mrf.mxu0
      %v2726 = vadd.f32 %v2508, %v2725
      %2727 = vmatprep.mubr.bf16.mxu0 0
      %2728 = vmatmul.mubr.bf16.gmra.mxu0 %v2652
      %v2729 = vpop.f32.mrf.mxu0
      %v2730 = vadd.f32 %v2512, %v2729
      %v2731 = vpop.f32.mrf.mxu0
      %v2732 = vadd.f32 %v2514, %v2731
      %v2733 = vpop.f32.mrf.mxu0
      %v2734 = vadd.f32 %v2516, %v2733
      %v2735 = vpop.f32.mrf.mxu0
      %v2736 = vadd.f32 %v2518, %v2735
      %2737 = vmatprep.mubr.bf16.mxu0 0
      %2738 = vmatmul.mubr.bf16.gmra.mxu0 %v2655
      %v2739 = vpop.f32.mrf.mxu0
      %v2740 = vadd.f32 %v2522, %v2739
      %v2741 = vpop.f32.mrf.mxu0
      %v2742 = vadd.f32 %v2524, %v2741
      %v2743 = vpop.f32.mrf.mxu0
      %v2744 = vadd.f32 %v2526, %v2743
      %v2745 = vpop.f32.mrf.mxu0
      %v2746 = vadd.f32 %v2528, %v2745
      %2747 = vmatprep.mubr.bf16.mxu0 0
      %2748 = vmatmul.mubr.bf16.gmra.mxu0 %v2658
      %v2749 = vpop.f32.mrf.mxu0
      %v2750 = vadd.f32 %v2532, %v2749
      %v2751 = vpop.f32.mrf.mxu0
      %v2752 = vadd.f32 %v2534, %v2751
      %v2753 = vpop.f32.mrf.mxu0
      %v2754 = vadd.f32 %v2536, %v2753
      %v2755 = vpop.f32.mrf.mxu0
      %v2756 = vadd.f32 %v2538, %v2755
      %2757 = vmatprep.mubr.bf16.mxu0 0
      %2758 = vmatmul.mubr.bf16.gmra.mxu0 %v2661
      %v2759 = vpop.f32.mrf.mxu0
      %v2760 = vadd.f32 %v2542, %v2759
      %v2761 = vpop.f32.mrf.mxu0
      %v2762 = vadd.f32 %v2544, %v2761
      %v2763 = vpop.f32.mrf.mxu0
      %v2764 = vadd.f32 %v2546, %v2763
      %v2765 = vpop.f32.mrf.mxu0
      %v2766 = vadd.f32 %v2548, %v2765
      %2767 = vmatprep.mubr.bf16.mxu0 0
      %2768 = vmatmul.mubr.bf16.gmra.mxu0 %v2664
      %v2769 = vpop.f32.mrf.mxu0
      %v2770 = vadd.f32 %v2552, %v2769
      %v2771 = vpop.f32.mrf.mxu0
      %v2772 = vadd.f32 %v2554, %v2771
      %v2773 = vpop.f32.mrf.mxu0
      %v2774 = vadd.f32 %v2556, %v2773
      %v2775 = vpop.f32.mrf.mxu0
      %v2776 = vadd.f32 %v2558, %v2775
      %2777 = vmatprep.mubr.bf16.mxu0 0
      %2778 = vmatmul.mubr.bf16.gmra.mxu0 %v2667
      %v2779 = vpop.f32.mrf.mxu0
      %v2780 = vadd.f32 %v2562, %v2779
      %v2781 = vpop.f32.mrf.mxu0
      %v2782 = vadd.f32 %v2564, %v2781
      %v2783 = vpop.f32.mrf.mxu0
      %v2784 = vadd.f32 %v2566, %v2783
      %v2785 = vpop.f32.mrf.mxu0
      %v2786 = vadd.f32 %v2568, %v2785
      %2787 = vdwg.mxu0
      %s2788 = scalar_lea.vmem %s2, 240
      %v2789 = vld [vmem:[%s2788] sm:$0xff]
      %v2790 = vld [vmem:[%s2788 + $0x8] sm:$0xff]
      %v2791 = vld [vmem:[%s2788 + $0x10] sm:$0xff]
      %v2792 = vld [vmem:[%s2788 + $0x18] sm:$0xff]
      %v2793 = vld [vmem:[%s2788 + $0x20] sm:$0xff]
      %v2794 = vld [vmem:[%s2788 + $0x28] sm:$0xff]
      %v2795 = vld [vmem:[%s2788 + $0x30] sm:$0xff]
      %v2796 = vld [vmem:[%s2788 + $0x38] sm:$0xff]
      %v2797 = vld [vmem:[%s2788 + $0x40] sm:$0xff]
      %v2798 = vld [vmem:[%s2788 + $0x48] sm:$0xff]
      %v2799 = vld [vmem:[%s2788 + $0x50] sm:$0xff]
      %v2800 = vld [vmem:[%s2788 + $0x58] sm:$0xff]
      %v2801 = vld [vmem:[%s2788 + $0x60] sm:$0xff]
      %v2802 = vld [vmem:[%s2788 + $0x68] sm:$0xff]
      %v2803 = vld [vmem:[%s2788 + $0x70] sm:$0xff]
      %v2819 = vunpack.c.l.b16 %v2789
      %v2820 = vunpack.c.h.b16 %v2789
      %v2821 = vunpack.c.l.b16 %v2790
      %v2822 = vunpack.c.h.b16 %v2790
      %v2823 = vunpack.c.l.b16 %v2791
      %v2824 = vunpack.c.h.b16 %v2791
      %v2825 = vunpack.c.l.b16 %v2792
      %v2826 = vunpack.c.h.b16 %v2792
      %v2827 = vunpack.c.l.b16 %v2793
      %v2828 = vunpack.c.h.b16 %v2793
      %v2829 = vunpack.c.l.b16 %v2794
      %v2830 = vunpack.c.h.b16 %v2794
      %v2831 = vunpack.c.l.b16 %v2795
      %v2832 = vunpack.c.h.b16 %v2795
      %v2833 = vunpack.c.l.b16 %v2796
      %v2834 = vunpack.c.h.b16 %v2796
      %v2835 = vunpack.c.l.b16 %v2797
      %v2836 = vunpack.c.h.b16 %v2797
      %v2837 = vunpack.c.l.b16 %v2798
      %v2838 = vunpack.c.h.b16 %v2798
      %v2839 = vunpack.c.l.b16 %v2799
      %v2840 = vunpack.c.h.b16 %v2799
      %v2841 = vunpack.c.l.b16 %v2800
      %v2842 = vunpack.c.h.b16 %v2800
      %v2843 = vunpack.c.l.b16 %v2801
      %v2844 = vunpack.c.h.b16 %v2801
      %v2845 = vunpack.c.l.b16 %v2802
      %v2846 = vunpack.c.h.b16 %v2802
      %v2847 = vunpack.c.l.b16 %v2803
      %v2848 = vunpack.c.h.b16 %v2803
      %v2849 = vpack.c.b16 %v2821, %v2819
      %v2850 = vpack.c.b16 %v2822, %v2820
      %v2851 = vpack.c.b16 %v2825, %v2823
      %v2852 = vpack.c.b16 %v2826, %v2824
      %v2853 = vpack.c.b16 %v2829, %v2827
      %v2854 = vpack.c.b16 %v2830, %v2828
      %v2855 = vpack.c.b16 %v2833, %v2831
      %v2856 = vpack.c.b16 %v2834, %v2832
      %v2857 = vpack.c.b16 %v2837, %v2835
      %v2858 = vpack.c.b16 %v2838, %v2836
      %v2859 = vpack.c.b16 %v2841, %v2839
      %v2860 = vpack.c.b16 %v2842, %v2840
      %v2861 = vpack.c.b16 %v2845, %v2843
      %v2862 = vpack.c.b16 %v2846, %v2844
      %v2863 = vpack.c.b16 %v2847, %v2847
      %v2864 = vpack.c.b16 %v2848, %v2848
      %v2880 = vsel %vm2425, %v2303, 0
      %v2883 = vsel %vm2425, %v2304, 0
      %v2886 = vsel %vm2450, %v2863, 0
      %v2889 = vsel %vm2450, %v2864, 0
      %2891 = vmatprep.subr.bf16.mxu0 %v2889
      %2892 = vmatpush1.bf16.msra.mxu0 %v2886
      %2893 = vmatprep.subr.bf16.mxu0 %v2862
      %2894 = vmatpush1.bf16.msra.mxu0 %v2861
      %2895 = vmatprep.subr.bf16.mxu0 %v2860
      %2896 = vmatpush1.bf16.msra.mxu0 %v2859
      %2897 = vmatprep.subr.bf16.mxu0 %v2858
      %2898 = vmatpush1.bf16.msra.mxu0 %v2857
      %2899 = vmatprep.subr.bf16.mxu0 %v2856
      %2900 = vmatpush1.bf16.msra.mxu0 %v2855
      %2901 = vmatprep.subr.bf16.mxu0 %v2854
      %2902 = vmatpush1.bf16.msra.mxu0 %v2853
      %2903 = vmatprep.subr.bf16.mxu0 %v2852
      %2904 = vmatpush1.bf16.msra.mxu0 %v2851
      %2905 = vmatprep.subr.bf16.mxu0 %v2850
      %2906 = vmatpush1.bf16.msra.mxu0 %v2849
      %2907 = vmatprep.subr.bf16.mxu0 0
      %2908 = vmatpush2.bf16.msra.mxu0 0
      %2909 = vmatprep.subr.bf16.mxu0 0
      %2910 = vmatpush2.bf16.msra.mxu0 0
      %2911 = vmatprep.subr.bf16.mxu0 0
      %2912 = vmatpush2.bf16.msra.mxu0 0
      %2913 = vmatprep.subr.bf16.mxu0 0
      %2914 = vmatpush2.bf16.msra.mxu0 0
      %2915 = vmatprep.subr.bf16.mxu0 0
      %2916 = vmatpush2.bf16.msra.mxu0 0
      %2917 = vmatprep.subr.bf16.mxu0 0
      %2918 = vmatpush2.bf16.msra.mxu0 0
      %2919 = vmatprep.subr.bf16.mxu0 0
      %2920 = vmatpush2.bf16.msra.mxu0 0
      %2921 = vmatprep.subr.bf16.mxu0 0
      %2922 = vmatpush2.bf16.msra.mxu0 0
      %2923 = vmatprep.mubr.bf16.mxu0 0
      %2924 = vmatmul.mubr.bf16.gmra.mxu0 %v2652
      %v2925 = vpop.f32.mrf.mxu0
      %v2926 = vadd.f32 0.0, %v2925
      %v2927 = vpop.f32.mrf.mxu0
      %v2928 = vadd.f32 0.0, %v2927
      %v2929 = vpop.f32.mrf.mxu0
      %v2930 = vadd.f32 0.0, %v2929
      %v2931 = vpop.f32.mrf.mxu0
      %v2932 = vadd.f32 0.0, %v2931
      %2933 = vmatprep.mubr.bf16.mxu0 0
      %2934 = vmatmul.mubr.bf16.gmra.mxu0 %v2655
      %v2935 = vpop.f32.mrf.mxu0
      %v2936 = vadd.f32 0.0, %v2935
      %v2937 = vpop.f32.mrf.mxu0
      %v2938 = vadd.f32 0.0, %v2937
      %v2939 = vpop.f32.mrf.mxu0
      %v2940 = vadd.f32 0.0, %v2939
      %v2941 = vpop.f32.mrf.mxu0
      %v2942 = vadd.f32 0.0, %v2941
      %2943 = vmatprep.mubr.bf16.mxu0 0
      %2944 = vmatmul.mubr.bf16.gmra.mxu0 %v2658
      %v2945 = vpop.f32.mrf.mxu0
      %v2946 = vadd.f32 0.0, %v2945
      %v2947 = vpop.f32.mrf.mxu0
      %v2948 = vadd.f32 0.0, %v2947
      %v2949 = vpop.f32.mrf.mxu0
      %v2950 = vadd.f32 0.0, %v2949
      %v2951 = vpop.f32.mrf.mxu0
      %v2952 = vadd.f32 0.0, %v2951
      %2953 = vmatprep.mubr.bf16.mxu0 0
      %2954 = vmatmul.mubr.bf16.gmra.mxu0 %v2661
      %v2955 = vpop.f32.mrf.mxu0
      %v2956 = vadd.f32 0.0, %v2955
      %v2957 = vpop.f32.mrf.mxu0
      %v2958 = vadd.f32 0.0, %v2957
      %v2959 = vpop.f32.mrf.mxu0
      %v2960 = vadd.f32 0.0, %v2959
      %v2961 = vpop.f32.mrf.mxu0
      %v2962 = vadd.f32 0.0, %v2961
      %2963 = vmatprep.mubr.bf16.mxu0 0
      %2964 = vmatmul.mubr.bf16.gmra.mxu0 %v2664
      %v2965 = vpop.f32.mrf.mxu0
      %v2966 = vadd.f32 0.0, %v2965
      %v2967 = vpop.f32.mrf.mxu0
      %v2968 = vadd.f32 0.0, %v2967
      %v2969 = vpop.f32.mrf.mxu0
      %v2970 = vadd.f32 0.0, %v2969
      %v2971 = vpop.f32.mrf.mxu0
      %v2972 = vadd.f32 0.0, %v2971
      %2973 = vmatprep.mubr.bf16.mxu0 0
      %2974 = vmatmul.mubr.bf16.gmra.mxu0 %v2667
      %v2975 = vpop.f32.mrf.mxu0
      %v2976 = vadd.f32 0.0, %v2975
      %v2977 = vpop.f32.mrf.mxu0
      %v2978 = vadd.f32 0.0, %v2977
      %v2979 = vpop.f32.mrf.mxu0
      %v2980 = vadd.f32 0.0, %v2979
      %v2981 = vpop.f32.mrf.mxu0
      %v2982 = vadd.f32 0.0, %v2981
      %2983 = vmatprep.mubr.bf16.mxu0 0
      %2984 = vmatmul.mubr.bf16.gmra.mxu0 %v2880
      %v2985 = vpop.f32.mrf.mxu0
      %v2986 = vadd.f32 0.0, %v2985
      %v2987 = vpop.f32.mrf.mxu0
      %v2988 = vadd.f32 0.0, %v2987
      %v2989 = vpop.f32.mrf.mxu0
      %v2990 = vadd.f32 0.0, %v2989
      %v2991 = vpop.f32.mrf.mxu0
      %v2992 = vadd.f32 0.0, %v2991
      %2993 = vmatprep.mubr.bf16.mxu0 0
      %2994 = vmatmul.mubr.bf16.gmra.mxu0 %v2883
      %v2995 = vpop.f32.mrf.mxu0
      %v2996 = vadd.f32 0.0, %v2995
      %v2997 = vpop.f32.mrf.mxu0
      %v2998 = vadd.f32 0.0, %v2997
      %v2999 = vpop.f32.mrf.mxu0
      %v3000 = vadd.f32 0.0, %v2999
      %v3001 = vpop.f32.mrf.mxu0
      %v3002 = vadd.f32 0.0, %v3001
      %3003 = vdwg.mxu0
      %v3004 = vadd.f32 %v2710, %v2926
      %v3005 = vadd.f32 %v2712, %v2928
      %v3006 = vadd.f32 %v2714, %v2930
      %v3007 = vadd.f32 %v2716, %v2932
      %v3008 = vadd.f32 %v2720, %v2936
      %v3009 = vadd.f32 %v2722, %v2938
      %v3010 = vadd.f32 %v2724, %v2940
      %v3011 = vadd.f32 %v2726, %v2942
      %v3012 = vadd.f32 %v2730, %v2946
      %v3013 = vadd.f32 %v2732, %v2948
      %v3014 = vadd.f32 %v2734, %v2950
      %v3015 = vadd.f32 %v2736, %v2952
      %v3016 = vadd.f32 %v2740, %v2956
      %v3017 = vadd.f32 %v2742, %v2958
      %v3018 = vadd.f32 %v2744, %v2960
      %v3019 = vadd.f32 %v2746, %v2962
      %v3020 = vadd.f32 %v2750, %v2966
      %v3021 = vadd.f32 %v2752, %v2968
      %v3022 = vadd.f32 %v2754, %v2970
      %v3023 = vadd.f32 %v2756, %v2972
      %v3024 = vadd.f32 %v2760, %v2976
      %v3025 = vadd.f32 %v2762, %v2978
      %v3026 = vadd.f32 %v2764, %v2980
      %v3027 = vadd.f32 %v2766, %v2982
      %v3028 = vadd.f32 %v2770, %v2986
      %v3029 = vadd.f32 %v2772, %v2988
      %v3030 = vadd.f32 %v2774, %v2990
      %v3031 = vadd.f32 %v2776, %v2992
      %v3032 = vadd.f32 %v2780, %v2996
      %v3033 = vadd.f32 %v2782, %v2998
      %v3034 = vadd.f32 %v2784, %v3000
      %v3035 = vadd.f32 %v2786, %v3002
      %s3036 = scalar_lea.vmem %s2, 360
      %v3037 = vld [vmem:[%s3036] sm:$0xff]
      %v3038 = vld [vmem:[%s3036 + $0x8] sm:$0xff]
      %v3039 = vld [vmem:[%s3036 + $0x10] sm:$0xff]
      %v3040 = vld [vmem:[%s3036 + $0x18] sm:$0xff]
      %v3041 = vld [vmem:[%s3036 + $0x20] sm:$0xff]
      %v3042 = vld [vmem:[%s3036 + $0x28] sm:$0xff]
      %v3043 = vld [vmem:[%s3036 + $0x30] sm:$0xff]
      %v3044 = vld [vmem:[%s3036 + $0x38] sm:$0xff]
      %v3045 = vld [vmem:[%s3036 + $0x40] sm:$0xff]
      %v3046 = vld [vmem:[%s3036 + $0x48] sm:$0xff]
      %v3047 = vld [vmem:[%s3036 + $0x50] sm:$0xff]
      %v3048 = vld [vmem:[%s3036 + $0x58] sm:$0xff]
      %v3049 = vld [vmem:[%s3036 + $0x60] sm:$0xff]
      %v3050 = vld [vmem:[%s3036 + $0x68] sm:$0xff]
      %v3051 = vld [vmem:[%s3036 + $0x70] sm:$0xff]
      %v3067 = vunpack.c.l.b16 %v3037
      %v3068 = vunpack.c.h.b16 %v3037
      %v3069 = vunpack.c.l.b16 %v3038
      %v3070 = vunpack.c.h.b16 %v3038
      %v3071 = vunpack.c.l.b16 %v3039
      %v3072 = vunpack.c.h.b16 %v3039
      %v3073 = vunpack.c.l.b16 %v3040
      %v3074 = vunpack.c.h.b16 %v3040
      %v3075 = vunpack.c.l.b16 %v3041
      %v3076 = vunpack.c.h.b16 %v3041
      %v3077 = vunpack.c.l.b16 %v3042
      %v3078 = vunpack.c.h.b16 %v3042
      %v3079 = vunpack.c.l.b16 %v3043
      %v3080 = vunpack.c.h.b16 %v3043
      %v3081 = vunpack.c.l.b16 %v3044
      %v3082 = vunpack.c.h.b16 %v3044
      %v3083 = vunpack.c.l.b16 %v3045
      %v3084 = vunpack.c.h.b16 %v3045
      %v3085 = vunpack.c.l.b16 %v3046
      %v3086 = vunpack.c.h.b16 %v3046
      %v3087 = vunpack.c.l.b16 %v3047
      %v3088 = vunpack.c.h.b16 %v3047
      %v3089 = vunpack.c.l.b16 %v3048
      %v3090 = vunpack.c.h.b16 %v3048
      %v3091 = vunpack.c.l.b16 %v3049
      %v3092 = vunpack.c.h.b16 %v3049
      %v3093 = vunpack.c.l.b16 %v3050
      %v3094 = vunpack.c.h.b16 %v3050
      %v3095 = vunpack.c.l.b16 %v3051
      %v3096 = vunpack.c.h.b16 %v3051
      %v3097 = vpack.c.b16 %v3069, %v3067
      %v3098 = vpack.c.b16 %v3070, %v3068
      %v3099 = vpack.c.b16 %v3073, %v3071
      %v3100 = vpack.c.b16 %v3074, %v3072
      %v3101 = vpack.c.b16 %v3077, %v3075
      %v3102 = vpack.c.b16 %v3078, %v3076
      %v3103 = vpack.c.b16 %v3081, %v3079
      %v3104 = vpack.c.b16 %v3082, %v3080
      %v3105 = vpack.c.b16 %v3085, %v3083
      %v3106 = vpack.c.b16 %v3086, %v3084
      %v3107 = vpack.c.b16 %v3089, %v3087
      %v3108 = vpack.c.b16 %v3090, %v3088
      %v3109 = vpack.c.b16 %v3093, %v3091
      %v3110 = vpack.c.b16 %v3094, %v3092
      %v3111 = vpack.c.b16 %v3095, %v3095
      %v3112 = vpack.c.b16 %v3096, %v3096
      %v3128 = vsel %vm2425, %v2315, 0
      %v3131 = vsel %vm2425, %v2316, 0
      %v3134 = vsel %vm2450, %v3111, 0
      %v3137 = vsel %vm2450, %v3112, 0
      %3139 = vmatprep.subr.bf16.mxu0 %v3137
      %3140 = vmatpush1.bf16.msra.mxu0 %v3134
      %3141 = vmatprep.subr.bf16.mxu0 %v3110
      %3142 = vmatpush1.bf16.msra.mxu0 %v3109
      %3143 = vmatprep.subr.bf16.mxu0 %v3108
      %3144 = vmatpush1.bf16.msra.mxu0 %v3107
      %3145 = vmatprep.subr.bf16.mxu0 %v3106
      %3146 = vmatpush1.bf16.msra.mxu0 %v3105
      %3147 = vmatprep.subr.bf16.mxu0 %v3104
      %3148 = vmatpush1.bf16.msra.mxu0 %v3103
      %3149 = vmatprep.subr.bf16.mxu0 %v3102
      %3150 = vmatpush1.bf16.msra.mxu0 %v3101
      %3151 = vmatprep.subr.bf16.mxu0 %v3100
      %3152 = vmatpush1.bf16.msra.mxu0 %v3099
      %3153 = vmatprep.subr.bf16.mxu0 %v3098
      %3154 = vmatpush1.bf16.msra.mxu0 %v3097
      %3155 = vmatprep.subr.bf16.mxu0 0
      %3156 = vmatpush2.bf16.msra.mxu0 0
      %3157 = vmatprep.subr.bf16.mxu0 0
      %3158 = vmatpush2.bf16.msra.mxu0 0
      %3159 = vmatprep.subr.bf16.mxu0 0
      %3160 = vmatpush2.bf16.msra.mxu0 0
      %3161 = vmatprep.subr.bf16.mxu0 0
      %3162 = vmatpush2.bf16.msra.mxu0 0
      %3163 = vmatprep.subr.bf16.mxu0 0
      %3164 = vmatpush2.bf16.msra.mxu0 0
      %3165 = vmatprep.subr.bf16.mxu0 0
      %3166 = vmatpush2.bf16.msra.mxu0 0
      %3167 = vmatprep.subr.bf16.mxu0 0
      %3168 = vmatpush2.bf16.msra.mxu0 0
      %3169 = vmatprep.subr.bf16.mxu0 0
      %3170 = vmatpush2.bf16.msra.mxu0 0
      %3171 = vmatprep.mubr.bf16.mxu0 0
      %3172 = vmatmul.mubr.bf16.gmra.mxu0 %v2433
      %v3173 = vpop.f32.mrf.mxu0
      %v3174 = vadd.f32 0.0, %v3173
      %v3175 = vpop.f32.mrf.mxu0
      %v3176 = vadd.f32 0.0, %v3175
      %v3177 = vpop.f32.mrf.mxu0
      %v3178 = vadd.f32 0.0, %v3177
      %v3179 = vpop.f32.mrf.mxu0
      %v3180 = vadd.f32 0.0, %v3179
      %3181 = vmatprep.mubr.bf16.mxu0 0
      %3182 = vmatmul.mubr.bf16.gmra.mxu0 %v2436
      %v3183 = vpop.f32.mrf.mxu0
      %v3184 = vadd.f32 0.0, %v3183
      %v3185 = vpop.f32.mrf.mxu0
      %v3186 = vadd.f32 0.0, %v3185
      %v3187 = vpop.f32.mrf.mxu0
      %v3188 = vadd.f32 0.0, %v3187
      %v3189 = vpop.f32.mrf.mxu0
      %v3190 = vadd.f32 0.0, %v3189
      %3191 = vmatprep.mubr.bf16.mxu0 0
      %3192 = vmatmul.mubr.bf16.gmra.mxu0 %v2439
      %v3193 = vpop.f32.mrf.mxu0
      %v3194 = vadd.f32 0.0, %v3193
      %v3195 = vpop.f32.mrf.mxu0
      %v3196 = vadd.f32 0.0, %v3195
      %v3197 = vpop.f32.mrf.mxu0
      %v3198 = vadd.f32 0.0, %v3197
      %v3199 = vpop.f32.mrf.mxu0
      %v3200 = vadd.f32 0.0, %v3199
      %3201 = vmatprep.mubr.bf16.mxu0 0
      %3202 = vmatmul.mubr.bf16.gmra.mxu0 %v2442
      %v3203 = vpop.f32.mrf.mxu0
      %v3204 = vadd.f32 0.0, %v3203
      %v3205 = vpop.f32.mrf.mxu0
      %v3206 = vadd.f32 0.0, %v3205
      %v3207 = vpop.f32.mrf.mxu0
      %v3208 = vadd.f32 0.0, %v3207
      %v3209 = vpop.f32.mrf.mxu0
      %v3210 = vadd.f32 0.0, %v3209
      %3211 = vmatprep.mubr.bf16.mxu0 0
      %3212 = vmatmul.mubr.bf16.gmra.mxu0 %v2445
      %v3213 = vpop.f32.mrf.mxu0
      %v3214 = vadd.f32 0.0, %v3213
      %v3215 = vpop.f32.mrf.mxu0
      %v3216 = vadd.f32 0.0, %v3215
      %v3217 = vpop.f32.mrf.mxu0
      %v3218 = vadd.f32 0.0, %v3217
      %v3219 = vpop.f32.mrf.mxu0
      %v3220 = vadd.f32 0.0, %v3219
      %3221 = vmatprep.mubr.bf16.mxu0 0
      %3222 = vmatmul.mubr.bf16.gmra.mxu0 %v2448
      %v3223 = vpop.f32.mrf.mxu0
      %v3224 = vadd.f32 0.0, %v3223
      %v3225 = vpop.f32.mrf.mxu0
      %v3226 = vadd.f32 0.0, %v3225
      %v3227 = vpop.f32.mrf.mxu0
      %v3228 = vadd.f32 0.0, %v3227
      %v3229 = vpop.f32.mrf.mxu0
      %v3230 = vadd.f32 0.0, %v3229
      %3231 = vmatprep.mubr.bf16.mxu0 0
      %3232 = vmatmul.mubr.bf16.gmra.mxu0 %v3128
      %v3233 = vpop.f32.mrf.mxu0
      %v3234 = vadd.f32 0.0, %v3233
      %v3235 = vpop.f32.mrf.mxu0
      %v3236 = vadd.f32 0.0, %v3235
      %v3237 = vpop.f32.mrf.mxu0
      %v3238 = vadd.f32 0.0, %v3237
      %v3239 = vpop.f32.mrf.mxu0
      %v3240 = vadd.f32 0.0, %v3239
      %3241 = vmatprep.mubr.bf16.mxu0 0
      %3242 = vmatmul.mubr.bf16.gmra.mxu0 %v3131
      %v3243 = vpop.f32.mrf.mxu0
      %v3244 = vadd.f32 0.0, %v3243
      %v3245 = vpop.f32.mrf.mxu0
      %v3246 = vadd.f32 0.0, %v3245
      %v3247 = vpop.f32.mrf.mxu0
      %v3248 = vadd.f32 0.0, %v3247
      %v3249 = vpop.f32.mrf.mxu0
      %v3250 = vadd.f32 0.0, %v3249
      %3251 = vdwg.mxu0
      %v3252 = vadd.f32 %v3004, %v3174
      %v3253 = vadd.f32 %v3005, %v3176
      %v3254 = vadd.f32 %v3006, %v3178
      %v3255 = vadd.f32 %v3007, %v3180
      %v3256 = vadd.f32 %v3008, %v3184
      %v3257 = vadd.f32 %v3009, %v3186
      %v3258 = vadd.f32 %v3010, %v3188
      %v3259 = vadd.f32 %v3011, %v3190
      %v3260 = vadd.f32 %v3012, %v3194
      %v3261 = vadd.f32 %v3013, %v3196
      %v3262 = vadd.f32 %v3014, %v3198
      %v3263 = vadd.f32 %v3015, %v3200
      %v3264 = vadd.f32 %v3016, %v3204
      %v3265 = vadd.f32 %v3017, %v3206
      %v3266 = vadd.f32 %v3018, %v3208
      %v3267 = vadd.f32 %v3019, %v3210
      %v3268 = vadd.f32 %v3020, %v3214
      %v3269 = vadd.f32 %v3021, %v3216
      %v3270 = vadd.f32 %v3022, %v3218
      %v3271 = vadd.f32 %v3023, %v3220
      %v3272 = vadd.f32 %v3024, %v3224
      %v3273 = vadd.f32 %v3025, %v3226
      %v3274 = vadd.f32 %v3026, %v3228
      %v3275 = vadd.f32 %v3027, %v3230
      %v3276 = vadd.f32 %v3028, %v3234
      %v3277 = vadd.f32 %v3029, %v3236
      %v3278 = vadd.f32 %v3030, %v3238
      %v3279 = vadd.f32 %v3031, %v3240
      %v3280 = vadd.f32 %v3032, %v3244
      %v3281 = vadd.f32 %v3033, %v3246
      %v3282 = vadd.f32 %v3034, %v3248
      %v3283 = vadd.f32 %v3035, %v3250
      %s3284 = scalar_lea.vmem %s2, 480
      %v3285 = vld [vmem:[%s3284] sm:$0xff]
      %v3286 = vld [vmem:[%s3284 + $0x8] sm:$0xff]
      %v3287 = vld [vmem:[%s3284 + $0x10] sm:$0xff]
      %v3288 = vld [vmem:[%s3284 + $0x18] sm:$0xff]
      %v3289 = vld [vmem:[%s3284 + $0x20] sm:$0xff]
      %v3290 = vld [vmem:[%s3284 + $0x28] sm:$0xff]
      %v3291 = vld [vmem:[%s3284 + $0x30] sm:$0xff]
      %v3292 = vld [vmem:[%s3284 + $0x38] sm:$0xff]
      %v3293 = vld [vmem:[%s3284 + $0x40] sm:$0xff]
      %v3294 = vld [vmem:[%s3284 + $0x48] sm:$0xff]
      %v3295 = vld [vmem:[%s3284 + $0x50] sm:$0xff]
      %v3296 = vld [vmem:[%s3284 + $0x58] sm:$0xff]
      %v3297 = vld [vmem:[%s3284 + $0x60] sm:$0xff]
      %v3298 = vld [vmem:[%s3284 + $0x68] sm:$0xff]
      %v3299 = vld [vmem:[%s3284 + $0x70] sm:$0xff]
      %v3315 = vunpack.c.l.b16 %v3285
      %v3316 = vunpack.c.h.b16 %v3285
      %v3317 = vunpack.c.l.b16 %v3286
      %v3318 = vunpack.c.h.b16 %v3286
      %v3319 = vunpack.c.l.b16 %v3287
      %v3320 = vunpack.c.h.b16 %v3287
      %v3321 = vunpack.c.l.b16 %v3288
      %v3322 = vunpack.c.h.b16 %v3288
      %v3323 = vunpack.c.l.b16 %v3289
      %v3324 = vunpack.c.h.b16 %v3289
      %v3325 = vunpack.c.l.b16 %v3290
      %v3326 = vunpack.c.h.b16 %v3290
      %v3327 = vunpack.c.l.b16 %v3291
      %v3328 = vunpack.c.h.b16 %v3291
      %v3329 = vunpack.c.l.b16 %v3292
      %v3330 = vunpack.c.h.b16 %v3292
      %v3331 = vunpack.c.l.b16 %v3293
      %v3332 = vunpack.c.h.b16 %v3293
      %v3333 = vunpack.c.l.b16 %v3294
      %v3334 = vunpack.c.h.b16 %v3294
      %v3335 = vunpack.c.l.b16 %v3295
      %v3336 = vunpack.c.h.b16 %v3295
      %v3337 = vunpack.c.l.b16 %v3296
      %v3338 = vunpack.c.h.b16 %v3296
      %v3339 = vunpack.c.l.b16 %v3297
      %v3340 = vunpack.c.h.b16 %v3297
      %v3341 = vunpack.c.l.b16 %v3298
      %v3342 = vunpack.c.h.b16 %v3298
      %v3343 = vunpack.c.l.b16 %v3299
      %v3344 = vunpack.c.h.b16 %v3299
      %v3345 = vpack.c.b16 %v3317, %v3315
      %v3346 = vpack.c.b16 %v3318, %v3316
      %v3347 = vpack.c.b16 %v3321, %v3319
      %v3348 = vpack.c.b16 %v3322, %v3320
      %v3349 = vpack.c.b16 %v3325, %v3323
      %v3350 = vpack.c.b16 %v3326, %v3324
      %v3351 = vpack.c.b16 %v3329, %v3327
      %v3352 = vpack.c.b16 %v3330, %v3328
      %v3353 = vpack.c.b16 %v3333, %v3331
      %v3354 = vpack.c.b16 %v3334, %v3332
      %v3355 = vpack.c.b16 %v3337, %v3335
      %v3356 = vpack.c.b16 %v3338, %v3336
      %v3357 = vpack.c.b16 %v3341, %v3339
      %v3358 = vpack.c.b16 %v3342, %v3340
      %v3359 = vpack.c.b16 %v3343, %v3343
      %v3360 = vpack.c.b16 %v3344, %v3344
      %v3376 = vsel %vm2425, %v2305, 0
      %v3379 = vsel %vm2425, %v2306, 0
      %v3382 = vsel %vm2450, %v3359, 0
      %v3385 = vsel %vm2450, %v3360, 0
      %3387 = vmatprep.subr.bf16.mxu0 %v3385
      %3388 = vmatpush1.bf16.msra.mxu0 %v3382
      %3389 = vmatprep.subr.bf16.mxu0 %v3358
      %3390 = vmatpush1.bf16.msra.mxu0 %v3357
      %3391 = vmatprep.subr.bf16.mxu0 %v3356
      %3392 = vmatpush1.bf16.msra.mxu0 %v3355
      %3393 = vmatprep.subr.bf16.mxu0 %v3354
      %3394 = vmatpush1.bf16.msra.mxu0 %v3353
      %3395 = vmatprep.subr.bf16.mxu0 %v3352
      %3396 = vmatpush1.bf16.msra.mxu0 %v3351
      %3397 = vmatprep.subr.bf16.mxu0 %v3350
      %3398 = vmatpush1.bf16.msra.mxu0 %v3349
      %3399 = vmatprep.subr.bf16.mxu0 %v3348
      %3400 = vmatpush1.bf16.msra.mxu0 %v3347
      %3401 = vmatprep.subr.bf16.mxu0 %v3346
      %3402 = vmatpush1.bf16.msra.mxu0 %v3345
      %3403 = vmatprep.subr.bf16.mxu0 0
      %3404 = vmatpush2.bf16.msra.mxu0 0
      %3405 = vmatprep.subr.bf16.mxu0 0
      %3406 = vmatpush2.bf16.msra.mxu0 0
      %3407 = vmatprep.subr.bf16.mxu0 0
      %3408 = vmatpush2.bf16.msra.mxu0 0
      %3409 = vmatprep.subr.bf16.mxu0 0
      %3410 = vmatpush2.bf16.msra.mxu0 0
      %3411 = vmatprep.subr.bf16.mxu0 0
      %3412 = vmatpush2.bf16.msra.mxu0 0
      %3413 = vmatprep.subr.bf16.mxu0 0
      %3414 = vmatpush2.bf16.msra.mxu0 0
      %3415 = vmatprep.subr.bf16.mxu0 0
      %3416 = vmatpush2.bf16.msra.mxu0 0
      %3417 = vmatprep.subr.bf16.mxu0 0
      %3418 = vmatpush2.bf16.msra.mxu0 0
      %3419 = vmatprep.mubr.bf16.mxu0 0
      %3420 = vmatmul.mubr.bf16.gmra.mxu0 %v2658
      %v3421 = vpop.f32.mrf.mxu0
      %v3422 = vadd.f32 0.0, %v3421
      %v3423 = vpop.f32.mrf.mxu0
      %v3424 = vadd.f32 0.0, %v3423
      %v3425 = vpop.f32.mrf.mxu0
      %v3426 = vadd.f32 0.0, %v3425
      %v3427 = vpop.f32.mrf.mxu0
      %v3428 = vadd.f32 0.0, %v3427
      %3429 = vmatprep.mubr.bf16.mxu0 0
      %3430 = vmatmul.mubr.bf16.gmra.mxu0 %v2661
      %v3431 = vpop.f32.mrf.mxu0
      %v3432 = vadd.f32 0.0, %v3431
      %v3433 = vpop.f32.mrf.mxu0
      %v3434 = vadd.f32 0.0, %v3433
      %v3435 = vpop.f32.mrf.mxu0
      %v3436 = vadd.f32 0.0, %v3435
      %v3437 = vpop.f32.mrf.mxu0
      %v3438 = vadd.f32 0.0, %v3437
      %3439 = vmatprep.mubr.bf16.mxu0 0
      %3440 = vmatmul.mubr.bf16.gmra.mxu0 %v2664
      %v3441 = vpop.f32.mrf.mxu0
      %v3442 = vadd.f32 0.0, %v3441
      %v3443 = vpop.f32.mrf.mxu0
      %v3444 = vadd.f32 0.0, %v3443
      %v3445 = vpop.f32.mrf.mxu0
      %v3446 = vadd.f32 0.0, %v3445
      %v3447 = vpop.f32.mrf.mxu0
      %v3448 = vadd.f32 0.0, %v3447
      %3449 = vmatprep.mubr.bf16.mxu0 0
      %3450 = vmatmul.mubr.bf16.gmra.mxu0 %v2667
      %v3451 = vpop.f32.mrf.mxu0
      %v3452 = vadd.f32 0.0, %v3451
      %v3453 = vpop.f32.mrf.mxu0
      %v3454 = vadd.f32 0.0, %v3453
      %v3455 = vpop.f32.mrf.mxu0
      %v3456 = vadd.f32 0.0, %v3455
      %v3457 = vpop.f32.mrf.mxu0
      %v3458 = vadd.f32 0.0, %v3457
      %3459 = vmatprep.mubr.bf16.mxu0 0
      %3460 = vmatmul.mubr.bf16.gmra.mxu0 %v2880
      %v3461 = vpop.f32.mrf.mxu0
      %v3462 = vadd.f32 0.0, %v3461
      %v3463 = vpop.f32.mrf.mxu0
      %v3464 = vadd.f32 0.0, %v3463
      %v3465 = vpop.f32.mrf.mxu0
      %v3466 = vadd.f32 0.0, %v3465
      %v3467 = vpop.f32.mrf.mxu0
      %v3468 = vadd.f32 0.0, %v3467
      %3469 = vmatprep.mubr.bf16.mxu0 0
      %3470 = vmatmul.mubr.bf16.gmra.mxu0 %v2883
      %v3471 = vpop.f32.mrf.mxu0
      %v3472 = vadd.f32 0.0, %v3471
      %v3473 = vpop.f32.mrf.mxu0
      %v3474 = vadd.f32 0.0, %v3473
      %v3475 = vpop.f32.mrf.mxu0
      %v3476 = vadd.f32 0.0, %v3475
      %v3477 = vpop.f32.mrf.mxu0
      %v3478 = vadd.f32 0.0, %v3477
      %3479 = vmatprep.mubr.bf16.mxu0 0
      %3480 = vmatmul.mubr.bf16.gmra.mxu0 %v3376
      %v3481 = vpop.f32.mrf.mxu0
      %v3482 = vadd.f32 0.0, %v3481
      %v3483 = vpop.f32.mrf.mxu0
      %v3484 = vadd.f32 0.0, %v3483
      %v3485 = vpop.f32.mrf.mxu0
      %v3486 = vadd.f32 0.0, %v3485
      %v3487 = vpop.f32.mrf.mxu0
      %v3488 = vadd.f32 0.0, %v3487
      %3489 = vmatprep.mubr.bf16.mxu0 0
      %3490 = vmatmul.mubr.bf16.gmra.mxu0 %v3379
      %v3491 = vpop.f32.mrf.mxu0
      %v3492 = vadd.f32 0.0, %v3491
      %v3493 = vpop.f32.mrf.mxu0
      %v3494 = vadd.f32 0.0, %v3493
      %v3495 = vpop.f32.mrf.mxu0
      %v3496 = vadd.f32 0.0, %v3495
      %v3497 = vpop.f32.mrf.mxu0
      %v3498 = vadd.f32 0.0, %v3497
      %3499 = vdwg.mxu0
      %v3500 = vadd.f32 %v3252, %v3422
      %v3501 = vadd.f32 %v3253, %v3424
      %v3502 = vadd.f32 %v3254, %v3426
      %v3503 = vadd.f32 %v3255, %v3428
      %v3504 = vadd.f32 %v3256, %v3432
      %v3505 = vadd.f32 %v3257, %v3434
      %v3506 = vadd.f32 %v3258, %v3436
      %v3507 = vadd.f32 %v3259, %v3438
      %v3508 = vadd.f32 %v3260, %v3442
      %v3509 = vadd.f32 %v3261, %v3444
      %v3510 = vadd.f32 %v3262, %v3446
      %v3511 = vadd.f32 %v3263, %v3448
      %v3512 = vadd.f32 %v3264, %v3452
      %v3513 = vadd.f32 %v3265, %v3454
      %v3514 = vadd.f32 %v3266, %v3456
      %v3515 = vadd.f32 %v3267, %v3458
      %v3516 = vadd.f32 %v3268, %v3462
      %v3517 = vadd.f32 %v3269, %v3464
      %v3518 = vadd.f32 %v3270, %v3466
      %v3519 = vadd.f32 %v3271, %v3468
      %v3520 = vadd.f32 %v3272, %v3472
      %v3521 = vadd.f32 %v3273, %v3474
      %v3522 = vadd.f32 %v3274, %v3476
      %v3523 = vadd.f32 %v3275, %v3478
      %v3524 = vadd.f32 %v3276, %v3482
      %v3525 = vadd.f32 %v3277, %v3484
      %v3526 = vadd.f32 %v3278, %v3486
      %v3527 = vadd.f32 %v3279, %v3488
      %v3528 = vadd.f32 %v3280, %v3492
      %v3529 = vadd.f32 %v3281, %v3494
      %v3530 = vadd.f32 %v3282, %v3496
      %v3531 = vadd.f32 %v3283, %v3498
      %3532 = vmatprep.subr.bf16.mxu0 %v2455
      %3533 = vmatpush1.bf16.msra.mxu0 %v2452
      %3534 = vmatprep.subr.bf16.mxu0 %v2408
      %3535 = vmatpush1.bf16.msra.mxu0 %v2407
      %3536 = vmatprep.subr.bf16.mxu0 %v2406
      %3537 = vmatpush1.bf16.msra.mxu0 %v2405
      %3538 = vmatprep.subr.bf16.mxu0 %v2404
      %3539 = vmatpush1.bf16.msra.mxu0 %v2403
      %3540 = vmatprep.subr.bf16.mxu0 %v2402
      %3541 = vmatpush1.bf16.msra.mxu0 %v2401
      %3542 = vmatprep.subr.bf16.mxu0 %v2400
      %3543 = vmatpush1.bf16.msra.mxu0 %v2399
      %3544 = vmatprep.subr.bf16.mxu0 %v2398
      %3545 = vmatpush1.bf16.msra.mxu0 %v2397
      %3546 = vmatprep.subr.bf16.mxu0 %v2396
      %3547 = vmatpush1.bf16.msra.mxu0 %v2395
      %3548 = vmatprep.subr.bf16.mxu0 0
      %3549 = vmatpush2.bf16.msra.mxu0 0
      %3550 = vmatprep.subr.bf16.mxu0 0
      %3551 = vmatpush2.bf16.msra.mxu0 0
      %3552 = vmatprep.subr.bf16.mxu0 0
      %3553 = vmatpush2.bf16.msra.mxu0 0
      %3554 = vmatprep.subr.bf16.mxu0 0
      %3555 = vmatpush2.bf16.msra.mxu0 0
      %3556 = vmatprep.subr.bf16.mxu0 0
      %3557 = vmatpush2.bf16.msra.mxu0 0
      %3558 = vmatprep.subr.bf16.mxu0 0
      %3559 = vmatpush2.bf16.msra.mxu0 0
      %3560 = vmatprep.subr.bf16.mxu0 0
      %3561 = vmatpush2.bf16.msra.mxu0 0
      %3562 = vmatprep.subr.bf16.mxu0 0
      %3563 = vmatpush2.bf16.msra.mxu0 0
      %3564 = vmatprep.mubr.bf16.mxu0 0
      %3565 = vmatmul.mubr.bf16.gmra.mxu0 %v2652
      %v3566 = vpop.f32.mrf.mxu0
      %v3567 = vadd.f32 0.0, %v3566
      %v3568 = vpop.f32.mrf.mxu0
      %v3569 = vadd.f32 0.0, %v3568
      %v3570 = vpop.f32.mrf.mxu0
      %v3571 = vadd.f32 0.0, %v3570
      %v3572 = vpop.f32.mrf.mxu0
      %v3573 = vadd.f32 0.0, %v3572
      %3574 = vmatprep.mubr.bf16.mxu0 0
      %3575 = vmatmul.mubr.bf16.gmra.mxu0 %v2655
      %v3576 = vpop.f32.mrf.mxu0
      %v3577 = vadd.f32 0.0, %v3576
      %v3578 = vpop.f32.mrf.mxu0
      %v3579 = vadd.f32 0.0, %v3578
      %v3580 = vpop.f32.mrf.mxu0
      %v3581 = vadd.f32 0.0, %v3580
      %v3582 = vpop.f32.mrf.mxu0
      %v3583 = vadd.f32 0.0, %v3582
      %3584 = vmatprep.mubr.bf16.mxu0 0
      %3585 = vmatmul.mubr.bf16.gmra.mxu0 %v2658
      %v3586 = vpop.f32.mrf.mxu0
      %v3587 = vadd.f32 0.0, %v3586
      %v3588 = vpop.f32.mrf.mxu0
      %v3589 = vadd.f32 0.0, %v3588
      %v3590 = vpop.f32.mrf.mxu0
      %v3591 = vadd.f32 0.0, %v3590
      %v3592 = vpop.f32.mrf.mxu0
      %v3593 = vadd.f32 0.0, %v3592
      %3594 = vmatprep.mubr.bf16.mxu0 0
      %3595 = vmatmul.mubr.bf16.gmra.mxu0 %v2661
      %v3596 = vpop.f32.mrf.mxu0
      %v3597 = vadd.f32 0.0, %v3596
      %v3598 = vpop.f32.mrf.mxu0
      %v3599 = vadd.f32 0.0, %v3598
      %v3600 = vpop.f32.mrf.mxu0
      %v3601 = vadd.f32 0.0, %v3600
      %v3602 = vpop.f32.mrf.mxu0
      %v3603 = vadd.f32 0.0, %v3602
      %3604 = vmatprep.mubr.bf16.mxu0 0
      %3605 = vmatmul.mubr.bf16.gmra.mxu0 %v2664
      %v3606 = vpop.f32.mrf.mxu0
      %v3607 = vadd.f32 0.0, %v3606
      %v3608 = vpop.f32.mrf.mxu0
      %v3609 = vadd.f32 0.0, %v3608
      %v3610 = vpop.f32.mrf.mxu0
      %v3611 = vadd.f32 0.0, %v3610
      %v3612 = vpop.f32.mrf.mxu0
      %v3613 = vadd.f32 0.0, %v3612
      %3614 = vmatprep.mubr.bf16.mxu0 0
      %3615 = vmatmul.mubr.bf16.gmra.mxu0 %v2667
      %v3616 = vpop.f32.mrf.mxu0
      %v3617 = vadd.f32 0.0, %v3616
      %v3618 = vpop.f32.mrf.mxu0
      %v3619 = vadd.f32 0.0, %v3618
      %v3620 = vpop.f32.mrf.mxu0
      %v3621 = vadd.f32 0.0, %v3620
      %v3622 = vpop.f32.mrf.mxu0
      %v3623 = vadd.f32 0.0, %v3622
      %3624 = vmatprep.mubr.bf16.mxu0 0
      %3625 = vmatmul.mubr.bf16.gmra.mxu0 %v2880
      %v3626 = vpop.f32.mrf.mxu0
      %v3627 = vadd.f32 0.0, %v3626
      %v3628 = vpop.f32.mrf.mxu0
      %v3629 = vadd.f32 0.0, %v3628
      %v3630 = vpop.f32.mrf.mxu0
      %v3631 = vadd.f32 0.0, %v3630
      %v3632 = vpop.f32.mrf.mxu0
      %v3633 = vadd.f32 0.0, %v3632
      %3634 = vmatprep.mubr.bf16.mxu0 0
      %3635 = vmatmul.mubr.bf16.gmra.mxu0 %v2883
      %v3636 = vpop.f32.mrf.mxu0
      %v3637 = vadd.f32 0.0, %v3636
      %v3638 = vpop.f32.mrf.mxu0
      %v3639 = vadd.f32 0.0, %v3638
      %v3640 = vpop.f32.mrf.mxu0
      %v3641 = vadd.f32 0.0, %v3640
      %v3642 = vpop.f32.mrf.mxu0
      %v3643 = vadd.f32 0.0, %v3642
      %3644 = vdwg.mxu0
      %3645 = vmatprep.subr.bf16.mxu0 %v2673
      %3646 = vmatpush1.bf16.msra.mxu0 %v2670
      %3647 = vmatprep.subr.bf16.mxu0 %v2628
      %3648 = vmatpush1.bf16.msra.mxu0 %v2627
      %3649 = vmatprep.subr.bf16.mxu0 %v2626
      %3650 = vmatpush1.bf16.msra.mxu0 %v2625
      %3651 = vmatprep.subr.bf16.mxu0 %v2624
      %3652 = vmatpush1.bf16.msra.mxu0 %v2623
      %3653 = vmatprep.subr.bf16.mxu0 %v2622
      %3654 = vmatpush1.bf16.msra.mxu0 %v2621
      %3655 = vmatprep.subr.bf16.mxu0 %v2620
      %3656 = vmatpush1.bf16.msra.mxu0 %v2619
      %3657 = vmatprep.subr.bf16.mxu0 %v2618
      %3658 = vmatpush1.bf16.msra.mxu0 %v2617
      %3659 = vmatprep.subr.bf16.mxu0 %v2616
      %3660 = vmatpush1.bf16.msra.mxu0 %v2615
      %3661 = vmatprep.subr.bf16.mxu0 0
      %3662 = vmatpush2.bf16.msra.mxu0 0
      %3663 = vmatprep.subr.bf16.mxu0 0
      %3664 = vmatpush2.bf16.msra.mxu0 0
      %3665 = vmatprep.subr.bf16.mxu0 0
      %3666 = vmatpush2.bf16.msra.mxu0 0
      %3667 = vmatprep.subr.bf16.mxu0 0
      %3668 = vmatpush2.bf16.msra.mxu0 0
      %3669 = vmatprep.subr.bf16.mxu0 0
      %3670 = vmatpush2.bf16.msra.mxu0 0
      %3671 = vmatprep.subr.bf16.mxu0 0
      %3672 = vmatpush2.bf16.msra.mxu0 0
      %3673 = vmatprep.subr.bf16.mxu0 0
      %3674 = vmatpush2.bf16.msra.mxu0 0
      %3675 = vmatprep.subr.bf16.mxu0 0
      %3676 = vmatpush2.bf16.msra.mxu0 0
      %3677 = vmatprep.mubr.bf16.mxu0 0
      %3678 = vmatmul.mubr.bf16.gmra.mxu0 %v2427
      %v3679 = vpop.f32.mrf.mxu0
      %v3680 = vadd.f32 %v3567, %v3679
      %v3681 = vpop.f32.mrf.mxu0
      %v3682 = vadd.f32 %v3569, %v3681
      %v3683 = vpop.f32.mrf.mxu0
      %v3684 = vadd.f32 %v3571, %v3683
      %v3685 = vpop.f32.mrf.mxu0
      %v3686 = vadd.f32 %v3573, %v3685
      %3687 = vmatprep.mubr.bf16.mxu0 0
      %3688 = vmatmul.mubr.bf16.gmra.mxu0 %v2430
      %v3689 = vpop.f32.mrf.mxu0
      %v3690 = vadd.f32 %v3577, %v3689
      %v3691 = vpop.f32.mrf.mxu0
      %v3692 = vadd.f32 %v3579, %v3691
      %v3693 = vpop.f32.mrf.mxu0
      %v3694 = vadd.f32 %v3581, %v3693
      %v3695 = vpop.f32.mrf.mxu0
      %v3696 = vadd.f32 %v3583, %v3695
      %3697 = vmatprep.mubr.bf16.mxu0 0
      %3698 = vmatmul.mubr.bf16.gmra.mxu0 %v2433
      %v3699 = vpop.f32.mrf.mxu0
      %v3700 = vadd.f32 %v3587, %v3699
      %v3701 = vpop.f32.mrf.mxu0
      %v3702 = vadd.f32 %v3589, %v3701
      %v3703 = vpop.f32.mrf.mxu0
      %v3704 = vadd.f32 %v3591, %v3703
      %v3705 = vpop.f32.mrf.mxu0
      %v3706 = vadd.f32 %v3593, %v3705
      %3707 = vmatprep.mubr.bf16.mxu0 0
      %3708 = vmatmul.mubr.bf16.gmra.mxu0 %v2436
      %v3709 = vpop.f32.mrf.mxu0
      %v3710 = vadd.f32 %v3597, %v3709
      %v3711 = vpop.f32.mrf.mxu0
      %v3712 = vadd.f32 %v3599, %v3711
      %v3713 = vpop.f32.mrf.mxu0
      %v3714 = vadd.f32 %v3601, %v3713
      %v3715 = vpop.f32.mrf.mxu0
      %v3716 = vadd.f32 %v3603, %v3715
      %3717 = vmatprep.mubr.bf16.mxu0 0
      %3718 = vmatmul.mubr.bf16.gmra.mxu0 %v2439
      %v3719 = vpop.f32.mrf.mxu0
      %v3720 = vadd.f32 %v3607, %v3719
      %v3721 = vpop.f32.mrf.mxu0
      %v3722 = vadd.f32 %v3609, %v3721
      %v3723 = vpop.f32.mrf.mxu0
      %v3724 = vadd.f32 %v3611, %v3723
      %v3725 = vpop.f32.mrf.mxu0
      %v3726 = vadd.f32 %v3613, %v3725
      %3727 = vmatprep.mubr.bf16.mxu0 0
      %3728 = vmatmul.mubr.bf16.gmra.mxu0 %v2442
      %v3729 = vpop.f32.mrf.mxu0
      %v3730 = vadd.f32 %v3617, %v3729
      %v3731 = vpop.f32.mrf.mxu0
      %v3732 = vadd.f32 %v3619, %v3731
      %v3733 = vpop.f32.mrf.mxu0
      %v3734 = vadd.f32 %v3621, %v3733
      %v3735 = vpop.f32.mrf.mxu0
      %v3736 = vadd.f32 %v3623, %v3735
      %3737 = vmatprep.mubr.bf16.mxu0 0
      %3738 = vmatmul.mubr.bf16.gmra.mxu0 %v2445
      %v3739 = vpop.f32.mrf.mxu0
      %v3740 = vadd.f32 %v3627, %v3739
      %v3741 = vpop.f32.mrf.mxu0
      %v3742 = vadd.f32 %v3629, %v3741
      %v3743 = vpop.f32.mrf.mxu0
      %v3744 = vadd.f32 %v3631, %v3743
      %v3745 = vpop.f32.mrf.mxu0
      %v3746 = vadd.f32 %v3633, %v3745
      %3747 = vmatprep.mubr.bf16.mxu0 0
      %3748 = vmatmul.mubr.bf16.gmra.mxu0 %v2448
      %v3749 = vpop.f32.mrf.mxu0
      %v3750 = vadd.f32 %v3637, %v3749
      %v3751 = vpop.f32.mrf.mxu0
      %v3752 = vadd.f32 %v3639, %v3751
      %v3753 = vpop.f32.mrf.mxu0
      %v3754 = vadd.f32 %v3641, %v3753
      %v3755 = vpop.f32.mrf.mxu0
      %v3756 = vadd.f32 %v3643, %v3755
      %3757 = vdwg.mxu0
      %3758 = vmatprep.subr.bf16.mxu0 %v2889
      %3759 = vmatpush1.bf16.msra.mxu0 %v2886
      %3760 = vmatprep.subr.bf16.mxu0 %v2862
      %3761 = vmatpush1.bf16.msra.mxu0 %v2861
      %3762 = vmatprep.subr.bf16.mxu0 %v2860
      %3763 = vmatpush1.bf16.msra.mxu0 %v2859
      %3764 = vmatprep.subr.bf16.mxu0 %v2858
      %3765 = vmatpush1.bf16.msra.mxu0 %v2857
      %3766 = vmatprep.subr.bf16.mxu0 %v2856
      %3767 = vmatpush1.bf16.msra.mxu0 %v2855
      %3768 = vmatprep.subr.bf16.mxu0 %v2854
      %3769 = vmatpush1.bf16.msra.mxu0 %v2853
      %3770 = vmatprep.subr.bf16.mxu0 %v2852
      %3771 = vmatpush1.bf16.msra.mxu0 %v2851
      %3772 = vmatprep.subr.bf16.mxu0 %v2850
      %3773 = vmatpush1.bf16.msra.mxu0 %v2849
      %3774 = vmatprep.subr.bf16.mxu0 0
      %3775 = vmatpush2.bf16.msra.mxu0 0
      %3776 = vmatprep.subr.bf16.mxu0 0
      %3777 = vmatpush2.bf16.msra.mxu0 0
      %3778 = vmatprep.subr.bf16.mxu0 0
      %3779 = vmatpush2.bf16.msra.mxu0 0
      %3780 = vmatprep.subr.bf16.mxu0 0
      %3781 = vmatpush2.bf16.msra.mxu0 0
      %3782 = vmatprep.subr.bf16.mxu0 0
      %3783 = vmatpush2.bf16.msra.mxu0 0
      %3784 = vmatprep.subr.bf16.mxu0 0
      %3785 = vmatpush2.bf16.msra.mxu0 0
      %3786 = vmatprep.subr.bf16.mxu0 0
      %3787 = vmatpush2.bf16.msra.mxu0 0
      %3788 = vmatprep.subr.bf16.mxu0 0
      %3789 = vmatpush2.bf16.msra.mxu0 0
      %3790 = vmatprep.mubr.bf16.mxu0 0
      %3791 = vmatmul.mubr.bf16.gmra.mxu0 %v2433
      %v3792 = vpop.f32.mrf.mxu0
      %v3793 = vadd.f32 0.0, %v3792
      %v3794 = vpop.f32.mrf.mxu0
      %v3795 = vadd.f32 0.0, %v3794
      %v3796 = vpop.f32.mrf.mxu0
      %v3797 = vadd.f32 0.0, %v3796
      %v3798 = vpop.f32.mrf.mxu0
      %v3799 = vadd.f32 0.0, %v3798
      %3800 = vmatprep.mubr.bf16.mxu0 0
      %3801 = vmatmul.mubr.bf16.gmra.mxu0 %v2436
      %v3802 = vpop.f32.mrf.mxu0
      %v3803 = vadd.f32 0.0, %v3802
      %v3804 = vpop.f32.mrf.mxu0
      %v3805 = vadd.f32 0.0, %v3804
      %v3806 = vpop.f32.mrf.mxu0
      %v3807 = vadd.f32 0.0, %v3806
      %v3808 = vpop.f32.mrf.mxu0
      %v3809 = vadd.f32 0.0, %v3808
      %3810 = vmatprep.mubr.bf16.mxu0 0
      %3811 = vmatmul.mubr.bf16.gmra.mxu0 %v2439
      %v3812 = vpop.f32.mrf.mxu0
      %v3813 = vadd.f32 0.0, %v3812
      %v3814 = vpop.f32.mrf.mxu0
      %v3815 = vadd.f32 0.0, %v3814
      %v3816 = vpop.f32.mrf.mxu0
      %v3817 = vadd.f32 0.0, %v3816
      %v3818 = vpop.f32.mrf.mxu0
      %v3819 = vadd.f32 0.0, %v3818
      %3820 = vmatprep.mubr.bf16.mxu0 0
      %3821 = vmatmul.mubr.bf16.gmra.mxu0 %v2442
      %v3822 = vpop.f32.mrf.mxu0
      %v3823 = vadd.f32 0.0, %v3822
      %v3824 = vpop.f32.mrf.mxu0
      %v3825 = vadd.f32 0.0, %v3824
      %v3826 = vpop.f32.mrf.mxu0
      %v3827 = vadd.f32 0.0, %v3826
      %v3828 = vpop.f32.mrf.mxu0
      %v3829 = vadd.f32 0.0, %v3828
      %3830 = vmatprep.mubr.bf16.mxu0 0
      %3831 = vmatmul.mubr.bf16.gmra.mxu0 %v2445
      %v3832 = vpop.f32.mrf.mxu0
      %v3833 = vadd.f32 0.0, %v3832
      %v3834 = vpop.f32.mrf.mxu0
      %v3835 = vadd.f32 0.0, %v3834
      %v3836 = vpop.f32.mrf.mxu0
      %v3837 = vadd.f32 0.0, %v3836
      %v3838 = vpop.f32.mrf.mxu0
      %v3839 = vadd.f32 0.0, %v3838
      %3840 = vmatprep.mubr.bf16.mxu0 0
      %3841 = vmatmul.mubr.bf16.gmra.mxu0 %v2448
      %v3842 = vpop.f32.mrf.mxu0
      %v3843 = vadd.f32 0.0, %v3842
      %v3844 = vpop.f32.mrf.mxu0
      %v3845 = vadd.f32 0.0, %v3844
      %v3846 = vpop.f32.mrf.mxu0
      %v3847 = vadd.f32 0.0, %v3846
      %v3848 = vpop.f32.mrf.mxu0
      %v3849 = vadd.f32 0.0, %v3848
      %3850 = vmatprep.mubr.bf16.mxu0 0
      %3851 = vmatmul.mubr.bf16.gmra.mxu0 %v3128
      %v3852 = vpop.f32.mrf.mxu0
      %v3853 = vadd.f32 0.0, %v3852
      %v3854 = vpop.f32.mrf.mxu0
      %v3855 = vadd.f32 0.0, %v3854
      %v3856 = vpop.f32.mrf.mxu0
      %v3857 = vadd.f32 0.0, %v3856
      %v3858 = vpop.f32.mrf.mxu0
      %v3859 = vadd.f32 0.0, %v3858
      %3860 = vmatprep.mubr.bf16.mxu0 0
      %3861 = vmatmul.mubr.bf16.gmra.mxu0 %v3131
      %v3862 = vpop.f32.mrf.mxu0
      %v3863 = vadd.f32 0.0, %v3862
      %v3864 = vpop.f32.mrf.mxu0
      %v3865 = vadd.f32 0.0, %v3864
      %v3866 = vpop.f32.mrf.mxu0
      %v3867 = vadd.f32 0.0, %v3866
      %v3868 = vpop.f32.mrf.mxu0
      %v3869 = vadd.f32 0.0, %v3868
      %3870 = vdwg.mxu0
      %v3871 = vadd.f32 %v3680, %v3793
      %v3872 = vadd.f32 %v3682, %v3795
      %v3873 = vadd.f32 %v3684, %v3797
      %v3874 = vadd.f32 %v3686, %v3799
      %v3875 = vadd.f32 %v3690, %v3803
      %v3876 = vadd.f32 %v3692, %v3805
      %v3877 = vadd.f32 %v3694, %v3807
      %v3878 = vadd.f32 %v3696, %v3809
      %v3879 = vadd.f32 %v3700, %v3813
      %v3880 = vadd.f32 %v3702, %v3815
      %v3881 = vadd.f32 %v3704, %v3817
      %v3882 = vadd.f32 %v3706, %v3819
      %v3883 = vadd.f32 %v3710, %v3823
      %v3884 = vadd.f32 %v3712, %v3825
      %v3885 = vadd.f32 %v3714, %v3827
      %v3886 = vadd.f32 %v3716, %v3829
      %v3887 = vadd.f32 %v3720, %v3833
      %v3888 = vadd.f32 %v3722, %v3835
      %v3889 = vadd.f32 %v3724, %v3837
      %v3890 = vadd.f32 %v3726, %v3839
      %v3891 = vadd.f32 %v3730, %v3843
      %v3892 = vadd.f32 %v3732, %v3845
      %v3893 = vadd.f32 %v3734, %v3847
      %v3894 = vadd.f32 %v3736, %v3849
      %v3895 = vadd.f32 %v3740, %v3853
      %v3896 = vadd.f32 %v3742, %v3855
      %v3897 = vadd.f32 %v3744, %v3857
      %v3898 = vadd.f32 %v3746, %v3859
      %v3899 = vadd.f32 %v3750, %v3863
      %v3900 = vadd.f32 %v3752, %v3865
      %v3901 = vadd.f32 %v3754, %v3867
      %v3902 = vadd.f32 %v3756, %v3869
      %3903 = vmatprep.subr.bf16.mxu0 %v3137
      %3904 = vmatpush1.bf16.msra.mxu0 %v3134
      %3905 = vmatprep.subr.bf16.mxu0 %v3110
      %3906 = vmatpush1.bf16.msra.mxu0 %v3109
      %3907 = vmatprep.subr.bf16.mxu0 %v3108
      %3908 = vmatpush1.bf16.msra.mxu0 %v3107
      %3909 = vmatprep.subr.bf16.mxu0 %v3106
      %3910 = vmatpush1.bf16.msra.mxu0 %v3105
      %3911 = vmatprep.subr.bf16.mxu0 %v3104
      %3912 = vmatpush1.bf16.msra.mxu0 %v3103
      %3913 = vmatprep.subr.bf16.mxu0 %v3102
      %3914 = vmatpush1.bf16.msra.mxu0 %v3101
      %3915 = vmatprep.subr.bf16.mxu0 %v3100
      %3916 = vmatpush1.bf16.msra.mxu0 %v3099
      %3917 = vmatprep.subr.bf16.mxu0 %v3098
      %3918 = vmatpush1.bf16.msra.mxu0 %v3097
      %3919 = vmatprep.subr.bf16.mxu0 0
      %3920 = vmatpush2.bf16.msra.mxu0 0
      %3921 = vmatprep.subr.bf16.mxu0 0
      %3922 = vmatpush2.bf16.msra.mxu0 0
      %3923 = vmatprep.subr.bf16.mxu0 0
      %3924 = vmatpush2.bf16.msra.mxu0 0
      %3925 = vmatprep.subr.bf16.mxu0 0
      %3926 = vmatpush2.bf16.msra.mxu0 0
      %3927 = vmatprep.subr.bf16.mxu0 0
      %3928 = vmatpush2.bf16.msra.mxu0 0
      %3929 = vmatprep.subr.bf16.mxu0 0
      %3930 = vmatpush2.bf16.msra.mxu0 0
      %3931 = vmatprep.subr.bf16.mxu0 0
      %3932 = vmatpush2.bf16.msra.mxu0 0
      %3933 = vmatprep.subr.bf16.mxu0 0
      %3934 = vmatpush2.bf16.msra.mxu0 0
      %3935 = vmatprep.mubr.bf16.mxu0 0
      %3936 = vmatmul.mubr.bf16.gmra.mxu0 %v2658
      %v3937 = vpop.f32.mrf.mxu0
      %v3938 = vadd.f32 0.0, %v3937
      %v3939 = vpop.f32.mrf.mxu0
      %v3940 = vadd.f32 0.0, %v3939
      %v3941 = vpop.f32.mrf.mxu0
      %v3942 = vadd.f32 0.0, %v3941
      %v3943 = vpop.f32.mrf.mxu0
      %v3944 = vadd.f32 0.0, %v3943
      %3945 = vmatprep.mubr.bf16.mxu0 0
      %3946 = vmatmul.mubr.bf16.gmra.mxu0 %v2661
      %v3947 = vpop.f32.mrf.mxu0
      %v3948 = vadd.f32 0.0, %v3947
      %v3949 = vpop.f32.mrf.mxu0
      %v3950 = vadd.f32 0.0, %v3949
      %v3951 = vpop.f32.mrf.mxu0
      %v3952 = vadd.f32 0.0, %v3951
      %v3953 = vpop.f32.mrf.mxu0
      %v3954 = vadd.f32 0.0, %v3953
      %3955 = vmatprep.mubr.bf16.mxu0 0
      %3956 = vmatmul.mubr.bf16.gmra.mxu0 %v2664
      %v3957 = vpop.f32.mrf.mxu0
      %v3958 = vadd.f32 0.0, %v3957
      %v3959 = vpop.f32.mrf.mxu0
      %v3960 = vadd.f32 0.0, %v3959
      %v3961 = vpop.f32.mrf.mxu0
      %v3962 = vadd.f32 0.0, %v3961
      %v3963 = vpop.f32.mrf.mxu0
      %v3964 = vadd.f32 0.0, %v3963
      %3965 = vmatprep.mubr.bf16.mxu0 0
      %3966 = vmatmul.mubr.bf16.gmra.mxu0 %v2667
      %v3967 = vpop.f32.mrf.mxu0
      %v3968 = vadd.f32 0.0, %v3967
      %v3969 = vpop.f32.mrf.mxu0
      %v3970 = vadd.f32 0.0, %v3969
      %v3971 = vpop.f32.mrf.mxu0
      %v3972 = vadd.f32 0.0, %v3971
      %v3973 = vpop.f32.mrf.mxu0
      %v3974 = vadd.f32 0.0, %v3973
      %3975 = vmatprep.mubr.bf16.mxu0 0
      %3976 = vmatmul.mubr.bf16.gmra.mxu0 %v2880
      %v3977 = vpop.f32.mrf.mxu0
      %v3978 = vadd.f32 0.0, %v3977
      %v3979 = vpop.f32.mrf.mxu0
      %v3980 = vadd.f32 0.0, %v3979
      %v3981 = vpop.f32.mrf.mxu0
      %v3982 = vadd.f32 0.0, %v3981
      %v3983 = vpop.f32.mrf.mxu0
      %v3984 = vadd.f32 0.0, %v3983
      %3985 = vmatprep.mubr.bf16.mxu0 0
      %3986 = vmatmul.mubr.bf16.gmra.mxu0 %v2883
      %v3987 = vpop.f32.mrf.mxu0
      %v3988 = vadd.f32 0.0, %v3987
      %v3989 = vpop.f32.mrf.mxu0
      %v3990 = vadd.f32 0.0, %v3989
      %v3991 = vpop.f32.mrf.mxu0
      %v3992 = vadd.f32 0.0, %v3991
      %v3993 = vpop.f32.mrf.mxu0
      %v3994 = vadd.f32 0.0, %v3993
      %3995 = vmatprep.mubr.bf16.mxu0 0
      %3996 = vmatmul.mubr.bf16.gmra.mxu0 %v3376
      %v3997 = vpop.f32.mrf.mxu0
      %v3998 = vadd.f32 0.0, %v3997
      %v3999 = vpop.f32.mrf.mxu0
      %v4000 = vadd.f32 0.0, %v3999
      %v4001 = vpop.f32.mrf.mxu0
      %v4002 = vadd.f32 0.0, %v4001
      %v4003 = vpop.f32.mrf.mxu0
      %v4004 = vadd.f32 0.0, %v4003
      %4005 = vmatprep.mubr.bf16.mxu0 0
      %4006 = vmatmul.mubr.bf16.gmra.mxu0 %v3379
      %v4007 = vpop.f32.mrf.mxu0
      %v4008 = vadd.f32 0.0, %v4007
      %v4009 = vpop.f32.mrf.mxu0
      %v4010 = vadd.f32 0.0, %v4009
      %v4011 = vpop.f32.mrf.mxu0
      %v4012 = vadd.f32 0.0, %v4011
      %v4013 = vpop.f32.mrf.mxu0
      %v4014 = vadd.f32 0.0, %v4013
      %4015 = vdwg.mxu0
      %v4016 = vadd.f32 %v3871, %v3938
      %v4017 = vadd.f32 %v3872, %v3940
      %v4018 = vadd.f32 %v3873, %v3942
      %v4019 = vadd.f32 %v3874, %v3944
      %v4020 = vadd.f32 %v3875, %v3948
      %v4021 = vadd.f32 %v3876, %v3950
      %v4022 = vadd.f32 %v3877, %v3952
      %v4023 = vadd.f32 %v3878, %v3954
      %v4024 = vadd.f32 %v3879, %v3958
      %v4025 = vadd.f32 %v3880, %v3960
      %v4026 = vadd.f32 %v3881, %v3962
      %v4027 = vadd.f32 %v3882, %v3964
      %v4028 = vadd.f32 %v3883, %v3968
      %v4029 = vadd.f32 %v3884, %v3970
      %v4030 = vadd.f32 %v3885, %v3972
      %v4031 = vadd.f32 %v3886, %v3974
      %v4032 = vadd.f32 %v3887, %v3978
      %v4033 = vadd.f32 %v3888, %v3980
      %v4034 = vadd.f32 %v3889, %v3982
      %v4035 = vadd.f32 %v3890, %v3984
      %v4036 = vadd.f32 %v3891, %v3988
      %v4037 = vadd.f32 %v3892, %v3990
      %v4038 = vadd.f32 %v3893, %v3992
      %v4039 = vadd.f32 %v3894, %v3994
      %v4040 = vadd.f32 %v3895, %v3998
      %v4041 = vadd.f32 %v3896, %v4000
      %v4042 = vadd.f32 %v3897, %v4002
      %v4043 = vadd.f32 %v3898, %v4004
      %v4044 = vadd.f32 %v3899, %v4008
      %v4045 = vadd.f32 %v3900, %v4010
      %v4046 = vadd.f32 %v3901, %v4012
      %v4047 = vadd.f32 %v3902, %v4014
      %v4049 = vsel %vm2425, %v2317, 0
      %v4052 = vsel %vm2425, %v2318, 0
      %4054 = vmatprep.subr.bf16.mxu0 %v3385
      %4055 = vmatpush1.bf16.msra.mxu0 %v3382
      %4056 = vmatprep.subr.bf16.mxu0 %v3358
      %4057 = vmatpush1.bf16.msra.mxu0 %v3357
      %4058 = vmatprep.subr.bf16.mxu0 %v3356
      %4059 = vmatpush1.bf16.msra.mxu0 %v3355
      %4060 = vmatprep.subr.bf16.mxu0 %v3354
      %4061 = vmatpush1.bf16.msra.mxu0 %v3353
      %4062 = vmatprep.subr.bf16.mxu0 %v3352
      %4063 = vmatpush1.bf16.msra.mxu0 %v3351
      %4064 = vmatprep.subr.bf16.mxu0 %v3350
      %4065 = vmatpush1.bf16.msra.mxu0 %v3349
      %4066 = vmatprep.subr.bf16.mxu0 %v3348
      %4067 = vmatpush1.bf16.msra.mxu0 %v3347
      %4068 = vmatprep.subr.bf16.mxu0 %v3346
      %4069 = vmatpush1.bf16.msra.mxu0 %v3345
      %4070 = vmatprep.subr.bf16.mxu0 0
      %4071 = vmatpush2.bf16.msra.mxu0 0
      %4072 = vmatprep.subr.bf16.mxu0 0
      %4073 = vmatpush2.bf16.msra.mxu0 0
      %4074 = vmatprep.subr.bf16.mxu0 0
      %4075 = vmatpush2.bf16.msra.mxu0 0
      %4076 = vmatprep.subr.bf16.mxu0 0
      %4077 = vmatpush2.bf16.msra.mxu0 0
      %4078 = vmatprep.subr.bf16.mxu0 0
      %4079 = vmatpush2.bf16.msra.mxu0 0
      %4080 = vmatprep.subr.bf16.mxu0 0
      %4081 = vmatpush2.bf16.msra.mxu0 0
      %4082 = vmatprep.subr.bf16.mxu0 0
      %4083 = vmatpush2.bf16.msra.mxu0 0
      %4084 = vmatprep.subr.bf16.mxu0 0
      %4085 = vmatpush2.bf16.msra.mxu0 0
      %4086 = vmatprep.mubr.bf16.mxu0 0
      %4087 = vmatmul.mubr.bf16.gmra.mxu0 %v2439
      %v4088 = vpop.f32.mrf.mxu0
      %v4089 = vadd.f32 0.0, %v4088
      %v4090 = vpop.f32.mrf.mxu0
      %v4091 = vadd.f32 0.0, %v4090
      %v4092 = vpop.f32.mrf.mxu0
      %v4093 = vadd.f32 0.0, %v4092
      %v4094 = vpop.f32.mrf.mxu0
      %v4095 = vadd.f32 0.0, %v4094
      %4096 = vmatprep.mubr.bf16.mxu0 0
      %4097 = vmatmul.mubr.bf16.gmra.mxu0 %v2442
      %v4098 = vpop.f32.mrf.mxu0
      %v4099 = vadd.f32 0.0, %v4098
      %v4100 = vpop.f32.mrf.mxu0
      %v4101 = vadd.f32 0.0, %v4100
      %v4102 = vpop.f32.mrf.mxu0
      %v4103 = vadd.f32 0.0, %v4102
      %v4104 = vpop.f32.mrf.mxu0
      %v4105 = vadd.f32 0.0, %v4104
      %4106 = vmatprep.mubr.bf16.mxu0 0
      %4107 = vmatmul.mubr.bf16.gmra.mxu0 %v2445
      %v4108 = vpop.f32.mrf.mxu0
      %v4109 = vadd.f32 0.0, %v4108
      %v4110 = vpop.f32.mrf.mxu0
      %v4111 = vadd.f32 0.0, %v4110
      %v4112 = vpop.f32.mrf.mxu0
      %v4113 = vadd.f32 0.0, %v4112
      %v4114 = vpop.f32.mrf.mxu0
      %v4115 = vadd.f32 0.0, %v4114
      %4116 = vmatprep.mubr.bf16.mxu0 0
      %4117 = vmatmul.mubr.bf16.gmra.mxu0 %v2448
      %v4118 = vpop.f32.mrf.mxu0
      %v4119 = vadd.f32 0.0, %v4118
      %v4120 = vpop.f32.mrf.mxu0
      %v4121 = vadd.f32 0.0, %v4120
      %v4122 = vpop.f32.mrf.mxu0
      %v4123 = vadd.f32 0.0, %v4122
      %v4124 = vpop.f32.mrf.mxu0
      %v4125 = vadd.f32 0.0, %v4124
      %4126 = vmatprep.mubr.bf16.mxu0 0
      %4127 = vmatmul.mubr.bf16.gmra.mxu0 %v3128
      %v4128 = vpop.f32.mrf.mxu0
      %v4129 = vadd.f32 0.0, %v4128
      %v4130 = vpop.f32.mrf.mxu0
      %v4131 = vadd.f32 0.0, %v4130
      %v4132 = vpop.f32.mrf.mxu0
      %v4133 = vadd.f32 0.0, %v4132
      %v4134 = vpop.f32.mrf.mxu0
      %v4135 = vadd.f32 0.0, %v4134
      %4136 = vmatprep.mubr.bf16.mxu0 0
      %4137 = vmatmul.mubr.bf16.gmra.mxu0 %v3131
      %v4138 = vpop.f32.mrf.mxu0
      %v4139 = vadd.f32 0.0, %v4138
      %v4140 = vpop.f32.mrf.mxu0
      %v4141 = vadd.f32 0.0, %v4140
      %v4142 = vpop.f32.mrf.mxu0
      %v4143 = vadd.f32 0.0, %v4142
      %v4144 = vpop.f32.mrf.mxu0
      %v4145 = vadd.f32 0.0, %v4144
      %4146 = vmatprep.mubr.bf16.mxu0 0
      %4147 = vmatmul.mubr.bf16.gmra.mxu0 %v4049
      %v4148 = vpop.f32.mrf.mxu0
      %v4149 = vadd.f32 0.0, %v4148
      %v4150 = vpop.f32.mrf.mxu0
      %v4151 = vadd.f32 0.0, %v4150
      %v4152 = vpop.f32.mrf.mxu0
      %v4153 = vadd.f32 0.0, %v4152
      %v4154 = vpop.f32.mrf.mxu0
      %v4155 = vadd.f32 0.0, %v4154
      %4156 = vmatprep.mubr.bf16.mxu0 0
      %4157 = vmatmul.mubr.bf16.gmra.mxu0 %v4052
      %v4158 = vpop.f32.mrf.mxu0
      %v4159 = vadd.f32 0.0, %v4158
      %v4160 = vpop.f32.mrf.mxu0
      %v4161 = vadd.f32 0.0, %v4160
      %v4162 = vpop.f32.mrf.mxu0
      %v4163 = vadd.f32 0.0, %v4162
      %v4164 = vpop.f32.mrf.mxu0
      %v4165 = vadd.f32 0.0, %v4164
      %4166 = vdwg.mxu0
      %v4167 = vadd.f32 %v4016, %v4089
      %v4168 = vadd.f32 %v4017, %v4091
      %v4169 = vadd.f32 %v4018, %v4093
      %v4170 = vadd.f32 %v4019, %v4095
      %v4171 = vadd.f32 %v4020, %v4099
      %v4172 = vadd.f32 %v4021, %v4101
      %v4173 = vadd.f32 %v4022, %v4103
      %v4174 = vadd.f32 %v4023, %v4105
      %v4175 = vadd.f32 %v4024, %v4109
      %v4176 = vadd.f32 %v4025, %v4111
      %v4177 = vadd.f32 %v4026, %v4113
      %v4178 = vadd.f32 %v4027, %v4115
      %v4179 = vadd.f32 %v4028, %v4119
      %v4180 = vadd.f32 %v4029, %v4121
      %v4181 = vadd.f32 %v4030, %v4123
      %v4182 = vadd.f32 %v4031, %v4125
      %v4183 = vadd.f32 %v4032, %v4129
      %v4184 = vadd.f32 %v4033, %v4131
      %v4185 = vadd.f32 %v4034, %v4133
      %v4186 = vadd.f32 %v4035, %v4135
      %v4187 = vadd.f32 %v4036, %v4139
      %v4188 = vadd.f32 %v4037, %v4141
      %v4189 = vadd.f32 %v4038, %v4143
      %v4190 = vadd.f32 %v4039, %v4145
      %v4191 = vadd.f32 %v4040, %v4149
      %v4192 = vadd.f32 %v4041, %v4151
      %v4193 = vadd.f32 %v4042, %v4153
      %v4194 = vadd.f32 %v4043, %v4155
      %v4195 = vadd.f32 %v4044, %v4159
      %v4196 = vadd.f32 %v4045, %v4161
      %v4197 = vadd.f32 %v4046, %v4163
      %v4198 = vadd.f32 %v4047, %v4165
      %v4199 = vmax.f32 %v3500, %v4167
      %v4200 = vmax.f32 %v3501, %v4168
      %v4201 = vmax.f32 %v3502, %v4169
      %v4202 = vmax.f32 %v3503, %v4170
      %v4203 = vmax.f32 %v3504, %v4171
      %v4204 = vmax.f32 %v3505, %v4172
      %v4205 = vmax.f32 %v3506, %v4173
      %v4206 = vmax.f32 %v3507, %v4174
      %v4207 = vmax.f32 %v3508, %v4175
      %v4208 = vmax.f32 %v3509, %v4176
      %v4209 = vmax.f32 %v3510, %v4177
      %v4210 = vmax.f32 %v3511, %v4178
      %v4211 = vmax.f32 %v3512, %v4179
      %v4212 = vmax.f32 %v3513, %v4180
      %v4213 = vmax.f32 %v3514, %v4181
      %v4214 = vmax.f32 %v3515, %v4182
      %v4215 = vmax.f32 %v3516, %v4183
      %v4216 = vmax.f32 %v3517, %v4184
      %v4217 = vmax.f32 %v3518, %v4185
      %v4218 = vmax.f32 %v3519, %v4186
      %v4219 = vmax.f32 %v3520, %v4187
      %v4220 = vmax.f32 %v3521, %v4188
      %v4221 = vmax.f32 %v3522, %v4189
      %v4222 = vmax.f32 %v3523, %v4190
      %v4223 = vmax.f32 %v3524, %v4191
      %v4224 = vmax.f32 %v3525, %v4192
      %v4225 = vmax.f32 %v3526, %v4193
      %v4226 = vmax.f32 %v3527, %v4194
      %v4227 = vmax.f32 %v3528, %v4195
      %v4228 = vmax.f32 %v3529, %v4196
      %v4229 = vmax.f32 %v3530, %v4197
      %v4230 = vmax.f32 %v3531, %v4198
      %4263 = vrot.lane.b32.xlu0 %v4199, 48
      %v4264 = vpop.permute.xlu0 %4263
      %4265 = vrot.lane.b32.xlu0 %v4200, 48
      %v4266 = vpop.permute.xlu0 %4265
      %4267 = vrot.lane.b32.xlu0 %v4201, 48
      %v4268 = vpop.permute.xlu0 %4267
      %4269 = vrot.lane.b32.xlu0 %v4202, 48
      %v4270 = vpop.permute.xlu0 %4269
      %4271 = vrot.lane.b32.xlu0 %v4203, 48
      %v4272 = vpop.permute.xlu0 %4271
      %4273 = vrot.lane.b32.xlu0 %v4204, 48
      %v4274 = vpop.permute.xlu0 %4273
      %4275 = vrot.lane.b32.xlu0 %v4205, 48
      %v4276 = vpop.permute.xlu0 %4275
      %4277 = vrot.lane.b32.xlu0 %v4206, 48
      %v4278 = vpop.permute.xlu0 %4277
      %4279 = vrot.lane.b32.xlu0 %v4207, 48
      %v4280 = vpop.permute.xlu0 %4279
      %4281 = vrot.lane.b32.xlu0 %v4208, 48
      %v4282 = vpop.permute.xlu0 %4281
      %4283 = vrot.lane.b32.xlu0 %v4209, 48
      %v4284 = vpop.permute.xlu0 %4283
      %4285 = vrot.lane.b32.xlu0 %v4210, 48
      %v4286 = vpop.permute.xlu0 %4285
      %4287 = vrot.lane.b32.xlu0 %v4211, 48
      %v4288 = vpop.permute.xlu0 %4287
      %4289 = vrot.lane.b32.xlu0 %v4212, 48
      %v4290 = vpop.permute.xlu0 %4289
      %4291 = vrot.lane.b32.xlu0 %v4213, 48
      %v4292 = vpop.permute.xlu0 %4291
      %4293 = vrot.lane.b32.xlu0 %v4214, 48
      %v4294 = vpop.permute.xlu0 %4293
      %4295 = vrot.lane.b32.xlu0 %v4215, 48
      %v4296 = vpop.permute.xlu0 %4295
      %4297 = vrot.lane.b32.xlu0 %v4216, 48
      %v4298 = vpop.permute.xlu0 %4297
      %4299 = vrot.lane.b32.xlu0 %v4217, 48
      %v4300 = vpop.permute.xlu0 %4299
      %4301 = vrot.lane.b32.xlu0 %v4218, 48
      %v4302 = vpop.permute.xlu0 %4301
      %4303 = vrot.lane.b32.xlu0 %v4219, 48
      %v4304 = vpop.permute.xlu0 %4303
      %4305 = vrot.lane.b32.xlu0 %v4220, 48
      %v4306 = vpop.permute.xlu0 %4305
      %4307 = vrot.lane.b32.xlu0 %v4221, 48
      %v4308 = vpop.permute.xlu0 %4307
      %4309 = vrot.lane.b32.xlu0 %v4222, 48
      %v4310 = vpop.permute.xlu0 %4309
      %4311 = vrot.lane.b32.xlu0 %v4223, 48
      %v4312 = vpop.permute.xlu0 %4311
      %4313 = vrot.lane.b32.xlu0 %v4224, 48
      %v4314 = vpop.permute.xlu0 %4313
      %4315 = vrot.lane.b32.xlu0 %v4225, 48
      %v4316 = vpop.permute.xlu0 %4315
      %4317 = vrot.lane.b32.xlu0 %v4226, 48
      %v4318 = vpop.permute.xlu0 %4317
      %4319 = vrot.lane.b32.xlu0 %v4227, 48
      %v4320 = vpop.permute.xlu0 %4319
      %4321 = vrot.lane.b32.xlu0 %v4228, 48
      %v4322 = vpop.permute.xlu0 %4321
      %4323 = vrot.lane.b32.xlu0 %v4229, 48
      %v4324 = vpop.permute.xlu0 %4323
      %4325 = vrot.lane.b32.xlu0 %v4230, 48
      %v4326 = vpop.permute.xlu0 %4325
      %vm4327 = vcmask 392192
      %v4328 = vsel %vm4327, %v4264, %v4266
      %v4329 = vsel %vm4327, %v4268, %v4270
      %v4330 = vsel %vm4327, %v4272, %v4274
      %v4331 = vsel %vm4327, %v4276, %v4278
      %v4332 = vsel %vm4327, %v4280, %v4282
      %v4333 = vsel %vm4327, %v4284, %v4286
      %v4334 = vsel %vm4327, %v4288, %v4290
      %v4335 = vsel %vm4327, %v4292, %v4294
      %v4336 = vsel %vm4327, %v4296, %v4298
      %v4337 = vsel %vm4327, %v4300, %v4302
      %v4338 = vsel %vm4327, %v4304, %v4306
      %v4339 = vsel %vm4327, %v4308, %v4310
      %v4340 = vsel %vm4327, %v4312, %v4314
      %v4341 = vsel %vm4327, %v4316, %v4318
      %v4342 = vsel %vm4327, %v4320, %v4322
      %v4343 = vsel %vm4327, %v4324, %v4326
      %v4360 = vmax.f32 %v4199, %v4328
      %v4361 = vmax.f32 %v4201, %v4329
      %v4362 = vmax.f32 %v4203, %v4330
      %v4363 = vmax.f32 %v4205, %v4331
      %v4364 = vmax.f32 %v4207, %v4332
      %v4365 = vmax.f32 %v4209, %v4333
      %v4366 = vmax.f32 %v4211, %v4334
      %v4367 = vmax.f32 %v4213, %v4335
      %v4368 = vmax.f32 %v4215, %v4336
      %v4369 = vmax.f32 %v4217, %v4337
      %v4370 = vmax.f32 %v4219, %v4338
      %v4371 = vmax.f32 %v4221, %v4339
      %v4372 = vmax.f32 %v4223, %v4340
      %v4373 = vmax.f32 %v4225, %v4341
      %v4374 = vmax.f32 %v4227, %v4342
      %v4375 = vmax.f32 %v4229, %v4343
      %v4377 = vlaneseq
      %v4378 = vshrl.u32 %v4377, 7
      %v4379 = vsub.s32 0, %v4378
      %v4380 = vrot.slane %v260, %v4379
      %v4382 = vadd.f32 %v4360, %v4380
      %v4383 = vadd.f32 %v4361, %v4380
      %v4384 = vadd.f32 %v4362, %v4380
      %v4385 = vadd.f32 %v4363, %v4380
      %v4386 = vadd.f32 %v4364, %v4380
      %v4387 = vadd.f32 %v4365, %v4380
      %v4388 = vadd.f32 %v4366, %v4380
      %v4389 = vadd.f32 %v4367, %v4380
      %v4390 = vadd.f32 %v4368, %v4380
      %v4391 = vadd.f32 %v4369, %v4380
      %v4392 = vadd.f32 %v4370, %v4380
      %v4393 = vadd.f32 %v4371, %v4380
      %v4394 = vadd.f32 %v4372, %v4380
      %v4395 = vadd.f32 %v4373, %v4380
      %v4396 = vadd.f32 %v4374, %v4380
      %v4397 = vadd.f32 %v4375, %v4380
      %v4398 = vmax.f32 %v4382, 0.0
      %v4399 = vmax.f32 %v4383, 0.0
      %v4400 = vmax.f32 %v4384, 0.0
      %v4401 = vmax.f32 %v4385, 0.0
      %v4402 = vmax.f32 %v4386, 0.0
      %v4403 = vmax.f32 %v4387, 0.0
      %v4404 = vmax.f32 %v4388, 0.0
      %v4405 = vmax.f32 %v4389, 0.0
      %v4406 = vmax.f32 %v4390, 0.0
      %v4407 = vmax.f32 %v4391, 0.0
      %v4408 = vmax.f32 %v4392, 0.0
      %v4409 = vmax.f32 %v4393, 0.0
      %v4410 = vmax.f32 %v4394, 0.0
      %v4411 = vmax.f32 %v4395, 0.0
      %v4412 = vmax.f32 %v4396, 0.0
      %v4413 = vmax.f32 %v4397, 0.0
      %v4414 = vpack.c.bf16 %v4399, %v4398
      %v4415 = vpack.c.bf16 %v4401, %v4400
      %v4416 = vpack.c.bf16 %v4403, %v4402
      %v4417 = vpack.c.bf16 %v4405, %v4404
      %v4418 = vpack.c.bf16 %v4407, %v4406
      %v4419 = vpack.c.bf16 %v4409, %v4408
      %v4420 = vpack.c.bf16 %v4411, %v4410
      %v4421 = vpack.c.bf16 %v4413, %v4412
      %v4422 = vld [vmem:[%s3] sm:$0xf]
      %v4423 = vld [vmem:[%s3 + $0x4] sm:$0xf]
      %v4424 = vld [vmem:[%s3 + $0x8] sm:$0xf]
      %v4425 = vld [vmem:[%s3 + $0xc] sm:$0xf]
      %v4426 = vld [vmem:[%s3 + $0x10] sm:$0xf]
      %v4427 = vld [vmem:[%s3 + $0x14] sm:$0xf]
      %v4428 = vld [vmem:[%s3 + $0x18] sm:$0xf]
      %v4429 = vld [vmem:[%s3 + $0x1c] sm:$0xf]
      %v4430 = vld [vmem:[%s3 + $0x20] sm:$0xf]
      %v4431 = vld [vmem:[%s3 + $0x24] sm:$0xf]
      %s4432 = scalar_lea.vmem %s3, 40
      %v4433 = vld [vmem:[%s4432] sm:$0xf]
      %v4434 = vld [vmem:[%s4432 + $0x4] sm:$0xf]
      %v4435 = vld [vmem:[%s4432 + $0x8] sm:$0xf]
      %v4436 = vld [vmem:[%s4432 + $0xc] sm:$0xf]
      %v4437 = vld [vmem:[%s4432 + $0x10] sm:$0xf]
      %v4438 = vld [vmem:[%s4432 + $0x14] sm:$0xf]
      %v4439 = vld [vmem:[%s4432 + $0x18] sm:$0xf]
      %v4440 = vld [vmem:[%s4432 + $0x1c] sm:$0xf]
      %v4441 = vld [vmem:[%s4432 + $0x20] sm:$0xf]
      %v4442 = vld [vmem:[%s4432 + $0x24] sm:$0xf]
      %v4453 = vunpack.c.l.b16 %v4433
      %v4454 = vunpack.c.l.b16 %v4434
      %v4455 = vunpack.c.l.b16 %v4435
      %v4456 = vunpack.c.l.b16 %v4436
      %v4457 = vunpack.c.l.b16 %v4437
      %v4458 = vunpack.c.l.b16 %v4438
      %v4459 = vunpack.c.l.b16 %v4439
      %v4460 = vunpack.c.l.b16 %v4440
      %v4461 = vunpack.c.l.b16 %v4441
      %v4462 = vunpack.c.l.b16 %v4442
      %v4463 = vpack.c.b16 %v4454, %v4453
      %v4464 = vpack.c.b16 %v4456, %v4455
      %v4465 = vpack.c.b16 %v4458, %v4457
      %v4466 = vpack.c.b16 %v4460, %v4459
      %v4467 = vpack.c.b16 %v4462, %v4461
      %vm4473 = vcmask 654336
      %v4475 = vsel %vm4473, %v4416, 0
      %v4478 = vsel %vm4473, %v4417, 0
      %4480 = vmatprep.subr.bf16.mxu0 0
      %4481 = vmatpush1.bf16.msra.mxu0 0
      %4482 = vmatprep.subr.bf16.mxu0 0
      %4483 = vmatpush1.bf16.msra.mxu0 0
      %4484 = vmatprep.subr.bf16.mxu0 0
      %4485 = vmatpush1.bf16.msra.mxu0 0
      %4486 = vmatprep.subr.bf16.mxu0 0
      %4487 = vmatpush1.bf16.msra.mxu0 %v4467
      %4488 = vmatprep.subr.bf16.mxu0 0
      %4489 = vmatpush1.bf16.msra.mxu0 %v4466
      %4490 = vmatprep.subr.bf16.mxu0 0
      %4491 = vmatpush1.bf16.msra.mxu0 %v4465
      %4492 = vmatprep.subr.bf16.mxu0 0
      %4493 = vmatpush1.bf16.msra.mxu0 %v4464
      %4494 = vmatprep.subr.bf16.mxu0 0
      %4495 = vmatpush1.bf16.msra.mxu0 %v4463
      %4496 = vmatprep.subr.bf16.mxu0 0
      %4497 = vmatpush2.bf16.msra.mxu0 0
      %4498 = vmatprep.subr.bf16.mxu0 0
      %4499 = vmatpush2.bf16.msra.mxu0 0
      %4500 = vmatprep.subr.bf16.mxu0 0
      %4501 = vmatpush2.bf16.msra.mxu0 0
      %4502 = vmatprep.subr.bf16.mxu0 0
      %4503 = vmatpush2.bf16.msra.mxu0 0
      %4504 = vmatprep.subr.bf16.mxu0 0
      %4505 = vmatpush2.bf16.msra.mxu0 0
      %4506 = vmatprep.subr.bf16.mxu0 0
      %4507 = vmatpush2.bf16.msra.mxu0 0
      %4508 = vmatprep.subr.bf16.mxu0 0
      %4509 = vmatpush2.bf16.msra.mxu0 0
      %4510 = vmatprep.subr.bf16.mxu0 0
      %4511 = vmatpush2.bf16.msra.mxu0 0
      %4512 = vmatprep.mubr.bf16.mxu0 0
      %4513 = vmatmul.mubr.bf16.gmra.mxu0 %v4475
      %v4514 = vpop.f32.mrf.mxu0
      %v4515 = vadd.f32 0.0, %v4514
      %v4516 = vpop.f32.mrf.mxu0
      %v4517 = vpop.f32.mrf.mxu0
      %v4518 = vadd.f32 0.0, %v4517
      %v4519 = vpop.f32.mrf.mxu0
      %4520 = vmatprep.mubr.bf16.mxu0 0
      %4521 = vmatmul.mubr.bf16.gmra.mxu0 %v4478
      %v4522 = vpop.f32.mrf.mxu0
      %v4523 = vadd.f32 0.0, %v4522
      %v4524 = vpop.f32.mrf.mxu0
      %v4525 = vpop.f32.mrf.mxu0
      %v4526 = vadd.f32 0.0, %v4525
      %v4527 = vpop.f32.mrf.mxu0
      %4528 = vdwg.mxu0
      %v4539 = vunpack.c.l.b16 %v4422
      %v4540 = vunpack.c.l.b16 %v4423
      %v4541 = vunpack.c.l.b16 %v4424
      %v4542 = vunpack.c.l.b16 %v4425
      %v4543 = vunpack.c.l.b16 %v4426
      %v4544 = vunpack.c.l.b16 %v4427
      %v4545 = vunpack.c.l.b16 %v4428
      %v4546 = vunpack.c.l.b16 %v4429
      %v4547 = vunpack.c.l.b16 %v4430
      %v4548 = vunpack.c.l.b16 %v4431
      %v4549 = vpack.c.b16 %v4540, %v4539
      %v4550 = vpack.c.b16 %v4542, %v4541
      %v4551 = vpack.c.b16 %v4544, %v4543
      %v4552 = vpack.c.b16 %v4546, %v4545
      %v4553 = vpack.c.b16 %v4548, %v4547
      %v4560 = vsel %vm4473, %v4414, 0
      %v4563 = vsel %vm4473, %v4415, 0
      %4565 = vmatprep.subr.bf16.mxu0 0
      %4566 = vmatpush1.bf16.msra.mxu0 0
      %4567 = vmatprep.subr.bf16.mxu0 0
      %4568 = vmatpush1.bf16.msra.mxu0 0
      %4569 = vmatprep.subr.bf16.mxu0 0
      %4570 = vmatpush1.bf16.msra.mxu0 0
      %4571 = vmatprep.subr.bf16.mxu0 0
      %4572 = vmatpush1.bf16.msra.mxu0 %v4553
      %4573 = vmatprep.subr.bf16.mxu0 0
      %4574 = vmatpush1.bf16.msra.mxu0 %v4552
      %4575 = vmatprep.subr.bf16.mxu0 0
      %4576 = vmatpush1.bf16.msra.mxu0 %v4551
      %4577 = vmatprep.subr.bf16.mxu0 0
      %4578 = vmatpush1.bf16.msra.mxu0 %v4550
      %4579 = vmatprep.subr.bf16.mxu0 0
      %4580 = vmatpush1.bf16.msra.mxu0 %v4549
      %4581 = vmatprep.subr.bf16.mxu0 0
      %4582 = vmatpush2.bf16.msra.mxu0 0
      %4583 = vmatprep.subr.bf16.mxu0 0
      %4584 = vmatpush2.bf16.msra.mxu0 0
      %4585 = vmatprep.subr.bf16.mxu0 0
      %4586 = vmatpush2.bf16.msra.mxu0 0
      %4587 = vmatprep.subr.bf16.mxu0 0
      %4588 = vmatpush2.bf16.msra.mxu0 0
      %4589 = vmatprep.subr.bf16.mxu0 0
      %4590 = vmatpush2.bf16.msra.mxu0 0
      %4591 = vmatprep.subr.bf16.mxu0 0
      %4592 = vmatpush2.bf16.msra.mxu0 0
      %4593 = vmatprep.subr.bf16.mxu0 0
      %4594 = vmatpush2.bf16.msra.mxu0 0
      %4595 = vmatprep.subr.bf16.mxu0 0
      %4596 = vmatpush2.bf16.msra.mxu0 0
      %4597 = vmatprep.mubr.bf16.mxu0 0
      %4598 = vmatmul.mubr.bf16.gmra.mxu0 %v4560
      %v4599 = vpop.f32.mrf.mxu0
      %v4600 = vadd.f32 %v4515, %v4599
      %v4601 = vpop.f32.mrf.mxu0
      %v4602 = vpop.f32.mrf.mxu0
      %v4603 = vadd.f32 %v4518, %v4602
      %v4604 = vpop.f32.mrf.mxu0
      %4605 = vmatprep.mubr.bf16.mxu0 0
      %4606 = vmatmul.mubr.bf16.gmra.mxu0 %v4563
      %v4607 = vpop.f32.mrf.mxu0
      %v4608 = vadd.f32 %v4523, %v4607
      %v4609 = vpop.f32.mrf.mxu0
      %v4610 = vpop.f32.mrf.mxu0
      %v4611 = vadd.f32 %v4526, %v4610
      %v4612 = vpop.f32.mrf.mxu0
      %4613 = vdwg.mxu0
      %s4614 = scalar_lea.vmem %s3, 80
      %v4615 = vld [vmem:[%s4614] sm:$0xf]
      %v4616 = vld [vmem:[%s4614 + $0x4] sm:$0xf]
      %v4617 = vld [vmem:[%s4614 + $0x8] sm:$0xf]
      %v4618 = vld [vmem:[%s4614 + $0xc] sm:$0xf]
      %v4619 = vld [vmem:[%s4614 + $0x10] sm:$0xf]
      %v4620 = vld [vmem:[%s4614 + $0x14] sm:$0xf]
      %v4621 = vld [vmem:[%s4614 + $0x18] sm:$0xf]
      %v4622 = vld [vmem:[%s4614 + $0x1c] sm:$0xf]
      %v4623 = vld [vmem:[%s4614 + $0x20] sm:$0xf]
      %v4624 = vld [vmem:[%s4614 + $0x24] sm:$0xf]
      %v4635 = vunpack.c.l.b16 %v4615
      %v4636 = vunpack.c.l.b16 %v4616
      %v4637 = vunpack.c.l.b16 %v4617
      %v4638 = vunpack.c.l.b16 %v4618
      %v4639 = vunpack.c.l.b16 %v4619
      %v4640 = vunpack.c.l.b16 %v4620
      %v4641 = vunpack.c.l.b16 %v4621
      %v4642 = vunpack.c.l.b16 %v4622
      %v4643 = vunpack.c.l.b16 %v4623
      %v4644 = vunpack.c.l.b16 %v4624
      %v4645 = vpack.c.b16 %v4636, %v4635
      %v4646 = vpack.c.b16 %v4638, %v4637
      %v4647 = vpack.c.b16 %v4640, %v4639
      %v4648 = vpack.c.b16 %v4642, %v4641
      %v4649 = vpack.c.b16 %v4644, %v4643
      %v4656 = vsel %vm4473, %v4418, 0
      %v4659 = vsel %vm4473, %v4419, 0
      %4661 = vmatprep.subr.bf16.mxu0 0
      %4662 = vmatpush1.bf16.msra.mxu0 0
      %4663 = vmatprep.subr.bf16.mxu0 0
      %4664 = vmatpush1.bf16.msra.mxu0 0
      %4665 = vmatprep.subr.bf16.mxu0 0
      %4666 = vmatpush1.bf16.msra.mxu0 0
      %4667 = vmatprep.subr.bf16.mxu0 0
      %4668 = vmatpush1.bf16.msra.mxu0 %v4649
      %4669 = vmatprep.subr.bf16.mxu0 0
      %4670 = vmatpush1.bf16.msra.mxu0 %v4648
      %4671 = vmatprep.subr.bf16.mxu0 0
      %4672 = vmatpush1.bf16.msra.mxu0 %v4647
      %4673 = vmatprep.subr.bf16.mxu0 0
      %4674 = vmatpush1.bf16.msra.mxu0 %v4646
      %4675 = vmatprep.subr.bf16.mxu0 0
      %4676 = vmatpush1.bf16.msra.mxu0 %v4645
      %4677 = vmatprep.subr.bf16.mxu0 0
      %4678 = vmatpush2.bf16.msra.mxu0 0
      %4679 = vmatprep.subr.bf16.mxu0 0
      %4680 = vmatpush2.bf16.msra.mxu0 0
      %4681 = vmatprep.subr.bf16.mxu0 0
      %4682 = vmatpush2.bf16.msra.mxu0 0
      %4683 = vmatprep.subr.bf16.mxu0 0
      %4684 = vmatpush2.bf16.msra.mxu0 0
      %4685 = vmatprep.subr.bf16.mxu0 0
      %4686 = vmatpush2.bf16.msra.mxu0 0
      %4687 = vmatprep.subr.bf16.mxu0 0
      %4688 = vmatpush2.bf16.msra.mxu0 0
      %4689 = vmatprep.subr.bf16.mxu0 0
      %4690 = vmatpush2.bf16.msra.mxu0 0
      %4691 = vmatprep.subr.bf16.mxu0 0
      %4692 = vmatpush2.bf16.msra.mxu0 0
      %4693 = vmatprep.mubr.bf16.mxu0 0
      %4694 = vmatmul.mubr.bf16.gmra.mxu0 %v4656
      %v4695 = vpop.f32.mrf.mxu0
      %v4696 = vadd.f32 0.0, %v4695
      %v4697 = vpop.f32.mrf.mxu0
      %v4698 = vpop.f32.mrf.mxu0
      %v4699 = vadd.f32 0.0, %v4698
      %v4700 = vpop.f32.mrf.mxu0
      %4701 = vmatprep.mubr.bf16.mxu0 0
      %4702 = vmatmul.mubr.bf16.gmra.mxu0 %v4659
      %v4703 = vpop.f32.mrf.mxu0
      %v4704 = vadd.f32 0.0, %v4703
      %v4705 = vpop.f32.mrf.mxu0
      %v4706 = vpop.f32.mrf.mxu0
      %v4707 = vadd.f32 0.0, %v4706
      %v4708 = vpop.f32.mrf.mxu0
      %4709 = vdwg.mxu0
      %v4710 = vadd.f32 %v4600, %v4696
      %v4711 = vadd.f32 %v4603, %v4699
      %v4712 = vadd.f32 %v4608, %v4704
      %v4713 = vadd.f32 %v4611, %v4707
      %s4714 = scalar_lea.vmem %s3, 120
      %v4715 = vld [vmem:[%s4714] sm:$0xf]
      %v4716 = vld [vmem:[%s4714 + $0x4] sm:$0xf]
      %v4717 = vld [vmem:[%s4714 + $0x8] sm:$0xf]
      %v4718 = vld [vmem:[%s4714 + $0xc] sm:$0xf]
      %v4719 = vld [vmem:[%s4714 + $0x10] sm:$0xf]
      %v4720 = vld [vmem:[%s4714 + $0x14] sm:$0xf]
      %v4721 = vld [vmem:[%s4714 + $0x18] sm:$0xf]
      %v4722 = vld [vmem:[%s4714 + $0x1c] sm:$0xf]
      %v4723 = vld [vmem:[%s4714 + $0x20] sm:$0xf]
      %v4724 = vld [vmem:[%s4714 + $0x24] sm:$0xf]
      %v4735 = vunpack.c.l.b16 %v4715
      %v4736 = vunpack.c.l.b16 %v4716
      %v4737 = vunpack.c.l.b16 %v4717
      %v4738 = vunpack.c.l.b16 %v4718
      %v4739 = vunpack.c.l.b16 %v4719
      %v4740 = vunpack.c.l.b16 %v4720
      %v4741 = vunpack.c.l.b16 %v4721
      %v4742 = vunpack.c.l.b16 %v4722
      %v4743 = vunpack.c.l.b16 %v4723
      %v4744 = vunpack.c.l.b16 %v4724
      %v4745 = vpack.c.b16 %v4736, %v4735
      %v4746 = vpack.c.b16 %v4738, %v4737
      %v4747 = vpack.c.b16 %v4740, %v4739
      %v4748 = vpack.c.b16 %v4742, %v4741
      %v4749 = vpack.c.b16 %v4744, %v4743
      %v4756 = vsel %vm4473, %v4420, 0
      %v4759 = vsel %vm4473, %v4421, 0
      %4761 = vmatprep.subr.bf16.mxu0 0
      %4762 = vmatpush1.bf16.msra.mxu0 0
      %4763 = vmatprep.subr.bf16.mxu0 0
      %4764 = vmatpush1.bf16.msra.mxu0 0
      %4765 = vmatprep.subr.bf16.mxu0 0
      %4766 = vmatpush1.bf16.msra.mxu0 0
      %4767 = vmatprep.subr.bf16.mxu0 0
      %4768 = vmatpush1.bf16.msra.mxu0 %v4749
      %4769 = vmatprep.subr.bf16.mxu0 0
      %4770 = vmatpush1.bf16.msra.mxu0 %v4748
      %4771 = vmatprep.subr.bf16.mxu0 0
      %4772 = vmatpush1.bf16.msra.mxu0 %v4747
      %4773 = vmatprep.subr.bf16.mxu0 0
      %4774 = vmatpush1.bf16.msra.mxu0 %v4746
      %4775 = vmatprep.subr.bf16.mxu0 0
      %4776 = vmatpush1.bf16.msra.mxu0 %v4745
      %4777 = vmatprep.subr.bf16.mxu0 0
      %4778 = vmatpush2.bf16.msra.mxu0 0
      %4779 = vmatprep.subr.bf16.mxu0 0
      %4780 = vmatpush2.bf16.msra.mxu0 0
      %4781 = vmatprep.subr.bf16.mxu0 0
      %4782 = vmatpush2.bf16.msra.mxu0 0
      %4783 = vmatprep.subr.bf16.mxu0 0
      %4784 = vmatpush2.bf16.msra.mxu0 0
      %4785 = vmatprep.subr.bf16.mxu0 0
      %4786 = vmatpush2.bf16.msra.mxu0 0
      %4787 = vmatprep.subr.bf16.mxu0 0
      %4788 = vmatpush2.bf16.msra.mxu0 0
      %4789 = vmatprep.subr.bf16.mxu0 0
      %4790 = vmatpush2.bf16.msra.mxu0 0
      %4791 = vmatprep.subr.bf16.mxu0 0
      %4792 = vmatpush2.bf16.msra.mxu0 0
      %4793 = vmatprep.mubr.bf16.mxu0 0
      %4794 = vmatmul.mubr.bf16.gmra.mxu0 %v4756
      %v4795 = vpop.f32.mrf.mxu0
      %v4796 = vadd.f32 0.0, %v4795
      %v4797 = vpop.f32.mrf.mxu0
      %v4798 = vpop.f32.mrf.mxu0
      %v4799 = vadd.f32 0.0, %v4798
      %v4800 = vpop.f32.mrf.mxu0
      %4801 = vmatprep.mubr.bf16.mxu0 0
      %4802 = vmatmul.mubr.bf16.gmra.mxu0 %v4759
      %v4803 = vpop.f32.mrf.mxu0
      %v4804 = vadd.f32 0.0, %v4803
      %v4805 = vpop.f32.mrf.mxu0
      %v4806 = vpop.f32.mrf.mxu0
      %v4807 = vadd.f32 0.0, %v4806
      %v4808 = vpop.f32.mrf.mxu0
      %4809 = vdwg.mxu0
      %v4810 = vadd.f32 %v4710, %v4796
      %v4811 = vadd.f32 %v4711, %v4799
      %v4812 = vadd.f32 %v4712, %v4804
      %v4813 = vadd.f32 %v4713, %v4807
      %v4815 = vlaneseq
      %v4816 = vshrl.u32 %v4815, 7
      %v4817 = vsub.s32 0, %v4816
      %v4818 = vrot.slane %v261, %v4817
      %v4820 = vadd.f32 %v4810, %v4818
      %v4821 = vadd.f32 %v4811, %v4818
      %v4822 = vadd.f32 %v4812, %v4818
      %v4823 = vadd.f32 %v4813, %v4818
      %v4824 = vmax.f32 %v4820, 0.0
      %v4825 = vmax.f32 %v4821, 0.0
      %v4826 = vmax.f32 %v4822, 0.0
      %v4827 = vmax.f32 %v4823, 0.0
      %v4828 = vpack.c.bf16 %v4825, %v4824
      %v4829 = vpack.c.bf16 %v4827, %v4826
      %v4830 = vld [vmem:[%s4] sm:$0xf]
      %v4831 = vld [vmem:[%s4 + $0x4] sm:$0xf]
      %v4832 = vld [vmem:[%s4 + $0x8] sm:$0xf]
      %v4833 = vld [vmem:[%s4 + $0xc] sm:$0xf]
      %v4834 = vld [vmem:[%s4 + $0x10] sm:$0xf]
      %v4835 = vld [vmem:[%s4 + $0x14] sm:$0xf]
      %v4836 = vld [vmem:[%s4 + $0x18] sm:$0x1]
      %v4838 = vlaneseq
      %v4839 = vshrl.u32 %v4838, 7
      %v4840 = vsub.s32 0, %v4839
      %v4841 = vrot.slane %v262, %v4840
      %v4850 = vunpack.c.l.b16 %v4830
      %v4851 = vunpack.c.l.b16 %v4831
      %v4852 = vunpack.c.l.b16 %v4832
      %v4853 = vunpack.c.l.b16 %v4833
      %v4854 = vunpack.c.l.b16 %v4834
      %v4855 = vunpack.c.l.b16 %v4835
      %v4856 = vunpack.c.l.b16 %v4836
      %v4857 = vpack.c.b16 %v4851, %v4850
      %v4858 = vpack.c.b16 %v4853, %v4852
      %v4859 = vpack.c.b16 %v4855, %v4854
      %v4860 = vpack.c.b16 %v4856, %v4856
      %vm4864 = vcmask 408576
      %v4866 = vsel %vm4864, %v4828, 0
      %v4869 = vsel %vm4864, %v4829, 0
      %vm4871 = vcmask 1040384
      %v4873 = vsel %vm4871, %v4860, 0
      %4875 = vmatprep.subr.bf16.mxu0 0
      %4876 = vmatpush1.bf16.msra.mxu0 0
      %4877 = vmatprep.subr.bf16.mxu0 0
      %4878 = vmatpush1.bf16.msra.mxu0 0
      %4879 = vmatprep.subr.bf16.mxu0 0
      %4880 = vmatpush1.bf16.msra.mxu0 0
      %4881 = vmatprep.subr.bf16.mxu0 0
      %4882 = vmatpush1.bf16.msra.mxu0 0
      %4883 = vmatprep.subr.bf16.mxu0 0
      %4884 = vmatpush1.bf16.msra.mxu0 %v4873
      %4885 = vmatprep.subr.bf16.mxu0 0
      %4886 = vmatpush1.bf16.msra.mxu0 %v4859
      %4887 = vmatprep.subr.bf16.mxu0 0
      %4888 = vmatpush1.bf16.msra.mxu0 %v4858
      %4889 = vmatprep.subr.bf16.mxu0 0
      %4890 = vmatpush1.bf16.msra.mxu0 %v4857
      %4891 = vmatprep.subr.bf16.mxu0 0
      %4892 = vmatpush2.bf16.msra.mxu0 0
      %4893 = vmatprep.subr.bf16.mxu0 0
      %4894 = vmatpush2.bf16.msra.mxu0 0
      %4895 = vmatprep.subr.bf16.mxu0 0
      %4896 = vmatpush2.bf16.msra.mxu0 0
      %4897 = vmatprep.subr.bf16.mxu0 0
      %4898 = vmatpush2.bf16.msra.mxu0 0
      %4899 = vmatprep.subr.bf16.mxu0 0
      %4900 = vmatpush2.bf16.msra.mxu0 0
      %4901 = vmatprep.subr.bf16.mxu0 0
      %4902 = vmatpush2.bf16.msra.mxu0 0
      %4903 = vmatprep.subr.bf16.mxu0 0
      %4904 = vmatpush2.bf16.msra.mxu0 0
      %4905 = vmatprep.subr.bf16.mxu0 0
      %4906 = vmatpush2.bf16.msra.mxu0 0
      %4907 = vmatprep.mubr.bf16.mxu0 0
      %4908 = vmatmul.mubr.bf16.gmra.mxu0 %v4866
      %v4909 = vpop.f32.mrf.mxu0
      %v4910 = vadd.f32 %v4841, %v4909
      %v4911 = vpop.f32.mrf.mxu0
      %v4912 = vpop.f32.mrf.mxu0
      %v4913 = vadd.f32 %v4841, %v4912
      %v4914 = vpop.f32.mrf.mxu0
      %4915 = vmatprep.mubr.bf16.mxu0 0
      %4916 = vmatmul.mubr.bf16.gmra.mxu0 %v4869
      %v4917 = vpop.f32.mrf.mxu0
      %v4918 = vadd.f32 %v4841, %v4917
      %v4919 = vpop.f32.mrf.mxu0
      %v4920 = vpop.f32.mrf.mxu0
      %v4921 = vadd.f32 %v4841, %v4920
      %v4922 = vpop.f32.mrf.mxu0
      %4923 = vdwg.mxu0
      %4924 = vmax.xlane.f32.xlu0 %v4910
      %v4925 = vpop.xlane.xlu0 %4924
      %4926 = vmax.xlane.f32.xlu0 %v4913
      %v4927 = vpop.xlane.xlu0 %4926
      %4928 = vmax.xlane.f32.xlu0 %v4918
      %v4929 = vpop.xlane.xlu0 %4928
      %4930 = vmax.xlane.f32.xlu0 %v4921
      %v4931 = vpop.xlane.xlu0 %4930
      %v4932 = vsub.f32 %v4910, %v4925
      %v4933 = vsub.f32 %v4913, %v4927
      %v4934 = vsub.f32 %v4918, %v4929
      %v4935 = vsub.f32 %v4921, %v4931
      %v4936 = vmul.f32 %v4932, 1.442695
      %v4937 = vpow.pop %v4936
      %v4938 = vmul.f32 %v4933, 1.442695
      %v4939 = vpow.pop %v4938
      %v4940 = vmul.f32 %v4934, 1.442695
      %v4941 = vpow.pop %v4940
      %v4942 = vmul.f32 %v4935, 1.442695
      %v4943 = vpow.pop %v4942
      %4944 = vadd.xlane.f32.xlu0 %v4937
      %v4945 = vpop.xlane.xlu0 %4944
      %4946 = vadd.xlane.f32.xlu0 %v4939
      %v4947 = vpop.xlane.xlu0 %4946
      %4948 = vadd.xlane.f32.xlu0 %v4941
      %v4949 = vpop.xlane.xlu0 %4948
      %4950 = vadd.xlane.f32.xlu0 %v4943
      %v4951 = vpop.xlane.xlu0 %4950
      %v4952 = vlog2.pop %v4945
      %v4953 = vmul.f32 %v4952, 0.6931472
      %v4954 = vlog2.pop %v4947
      %v4955 = vmul.f32 %v4954, 0.6931472
      %v4956 = vlog2.pop %v4949
      %v4957 = vmul.f32 %v4956, 0.6931472
      %v4958 = vlog2.pop %v4951
      %v4959 = vmul.f32 %v4958, 0.6931472
      %v4960 = vsub.f32 %v4932, %v4953
      %v4961 = vsub.f32 %v4933, %v4955
      %v4962 = vsub.f32 %v4934, %v4957
      %v4963 = vsub.f32 %v4935, %v4959
      %4964 = vst [vmem:[%s256] sm:$0xff] %v4960
      %4965 = vst [vmem:[%s256 + $0x8] sm:$0xff] %v4961
      %4966 = vst [vmem:[%s256 + $0x10] sm:$0xff] %v4962
      %4967 = vst [vmem:[%s256 + $0x18] sm:$0xff] %v4963
      %s4968 = smul.u32 4, %s17
      %p4969 = scmp.lt.s32.totalorder %s4968, 7
      %s4970 = scalar_select %p4969, %s4968, 7
      %s4971 = smul.addr %s4970, 8
      %s4972 = scalar_lea.vmem %s6, %s4971
      // Predicated region
      $region45: #{_lambda_.1} parent=43 // pred_check
        %p4973 = pneg %p166
      $region46: #{_lambda_.1} parent=43 // pred_check_branch
        %4975 = sbr.rel (%p4973) target = $region48
      $region47: #{_lambda_.1} parent=43 // pred_region
        %s4976 = smul.u32 4, %s17
      $region48: #{_lambda_.1} parent=43 // pred_fallthru
        _
    $region44: #{_lambda_.1} parent=5 // pred_fallthru
      _
    %p4977 = scmp.le.s32.totalorder 2, %s12
    // Predicated region
    $region49: #{_lambda_.1} parent=5 // pred_check
      %p4978 = pneg %p4977
    $region50: #{_lambda_.1} parent=5 // pred_check_branch
      %4980 = sbr.rel (%p4978) target = $region52
    $region51: #{_lambda_.1} parent=5 // pred_region
      %s4981 = ssub.s32 %s12, 2
      // Predicated region
      $region53: #{_lambda_.1} parent=51 // pred_check
        %p4982 = pneg %p172
      $region54: #{_lambda_.1} parent=51 // pred_check_branch
        %4984 = sbr.rel (%p4982) target = $region56
      $region55: #{_lambda_.1} parent=51 // pred_region
        %s4985 = smul.u32 4, %s18
        %p4986 = scmp.lt.s32.totalorder %s4985, 7
        %s4987 = scalar_select %p4986, %s4985, 7
        %s4988 = smul.addr %s4987, 8
        %s4989 = scalar_lea.vmem %s6, %s4988
      $region56: #{_lambda_.1} parent=51 // pred_fallthru
        _
    $region52: #{_lambda_.1} parent=5 // pred_fallthru
      _
  $region6: #{_lambda_.1} parent=0 // loop_footer
    %s16 = sadd.s32 1, %s12
  $region7: #{_lambda_.1} parent=0 // loop_footer_branch
    %11 = sbr.rel target = $region3
  $region8: #{_lambda_.1} parent=0 // loop_exit
    _

</llo_original>
